<compile_context>
chip_gen: v6e
topology: v6e:2x2x1
jax: 0.10.0
libtpu: 0.0.40
codegen_flags: <defaults>
</compile_context>

<pallas_src>
import jax
import jax.numpy as jnp
from jax.experimental import pallas as pl
from jax.experimental.pallas import tpu as pltpu

KSIZE = 5
POOL = 2
C1 = 6           # conv1 output channels
C2 = 16          # conv2 output channels
BATCH_BLOCK = 8  # images processed per grid step (keeps nb*H a multiple of 8)


def _dims(im_size):
    o1 = im_size - KSIZE + 1   # conv1 output H/W
    p1 = o1 // POOL            # pool1 output H/W
    o2 = p1 - KSIZE + 1        # conv2 output H/W
    p2 = o2 // POOL            # pool2 output H/W
    return o1, p1, o2, p2


# --------------- one-time parameter preparation (all layout work lives here) --

def _conv_toeplitz(w, iw, ow):
    """w: (Cout, Cin, K, K) -> T: (K, Cin*iw, Cout*ow) with
    T[ki, ci*iw + j + kj, co*ow + j] = w[co, ci, ki, kj], so a 'valid' KxK conv
    on the channel-widened layout X[h, ci*iw + w] is  sum_ki X[ki:ki+oh,:] @ T[ki]."""
    cout, cin, k, _ = w.shape
    t = jnp.zeros((k, cin * iw, cout * ow), jnp.float32)
    ki, co, ci, j, kj = jnp.meshgrid(
        jnp.arange(k), jnp.arange(cout), jnp.arange(cin),
        jnp.arange(ow), jnp.arange(k), indexing="ij")
    return t.at[ki, ci * iw + j + kj, co * ow + j].set(
        w[co, ci, ki, kj].astype(jnp.float32))


def _pool_row_sel_block(nb, in_stride, n_in_rows, ph, s_major):
    """Block-diagonal 0/1 row selector for a batch block of nb images.
    Picks row b*in_stride + 2*s of the shift-max matrix and writes it to output
    row b*ph + s (or s*nb + b if s_major)."""
    b, s = jnp.meshgrid(jnp.arange(nb), jnp.arange(ph), indexing="ij")
    rows = s * nb + b if s_major else b * ph + s
    cols = b * in_stride + 2 * s
    return jnp.zeros((nb * ph, n_in_rows), jnp.float32).at[rows, cols].set(1.0)


def _pool_col_sel(c, ow, pw):
    """(c*ow - 1, c*pw) 0/1 matrix selecting columns co*ow + 2t (right-multiply)."""
    co = jnp.repeat(jnp.arange(c), pw)
    t = jnp.tile(jnp.arange(pw), c)
    return jnp.zeros((c * ow - 1, c * pw), jnp.float32).at[
        co * ow + 2 * t, co * pw + t].set(1.0)


def prepare_kernel_params(params, im_size, batch_block=BATCH_BLOCK):
    o1, p1, o2, p2 = _dims(im_size)
    nb = batch_block
    # fc1 consumes torch's NCHW flatten (co, s, t); fold that permutation into
    # the weight so the kernel's (s-major rows, co*p2 + t lanes) layout is
    # consumed directly.
    a_fc1 = (params["fc1_w"].reshape(64, C2, p2, p2)   # [u, co, s, t]
             .transpose(2, 1, 3, 0)                    # [s, co, t, u]
             .reshape(p2, C2 * p2, 64))                # [s, co*p2 + t, u]
    return dict(
        t1=_conv_toeplitz(params["conv1_w"], im_size, o1),
        b1=jnp.repeat(params["conv1_b"], o1)[None, :].astype(jnp.float32),
        sh1=_pool_row_sel_block(nb, im_size, nb * im_size - KSIZE, p1, False),
        sw1=_pool_col_sel(C1, o1, p1),
        t2=_conv_toeplitz(params["conv2_w"], p1, o2),
        b2=jnp.repeat(params["conv2_b"], o2)[None, :].astype(jnp.float32),
        sh2=_pool_row_sel_block(nb, p1, nb * p1 - KSIZE, p2, True),
        sw2=_pool_col_sel(C2, o2, p2),
        a_fc1=a_fc1.astype(jnp.float32),
        b_fc1=params["fc1_b"][None, :].astype(jnp.float32),
        w_fc2=params["fc2_w"].T.astype(jnp.float32),
        b_fc2=params["fc2_b"][None, :].astype(jnp.float32),
        w_fc3=params["fc3_w"].T.astype(jnp.float32),
        b_fc3=params["fc3_b"][None, :].astype(jnp.float32),
    )


# ------------------------------ fused Pallas kernel ---------------------------

def _sigmoid_fast(z):
    # numerically stable sigmoid; reciprocal goes to the EUP (approx)
    e = jnp.exp(-jnp.abs(z))
    p = pl.reciprocal(1.0 + e, approx=True)
    return jnp.where(z >= 0.0, p, 1.0 - p)


def _sigmoid_exact(z):
    e = jnp.exp(-jnp.abs(z))
    p = 1.0 / (1.0 + e)
    return jnp.where(z >= 0.0, p, 1.0 - p)


def _make_cnn_kernel(nb, H, o1, p1, o2, p2):
    wide1 = C1 * o1
    wide2 = C2 * o2
    R1 = nb * H - (KSIZE - 1)    # conv1 shifted-sum rows (image b valid at b*H + i, i < o1)
    R2 = nb * p1 - (KSIZE - 1)   # conv2 shifted-sum rows (image b valid at b*p1 + i, i < o2)

    def kernel(x_ref, t1_ref, b1_ref, sh1_ref, sw1_ref,
               t2_ref, b2_ref, sh2_ref, sw2_ref,
               afc1_ref, bfc1_ref, wfc2_ref, bfc2_ref, wfc3_ref, bfc3_ref,
               out_ref):
        x = x_ref[...]                                       # (nb*H, W) image block

        # ---- conv1 (valid 5x5) over the whole block: 5 Toeplitz matmuls -----
        z = jnp.dot(x[0:R1, :], t1_ref[0], preferred_element_type=jnp.float32)
        for ki in range(1, KSIZE):
            z = z + jnp.dot(x[ki:ki + R1, :], t1_ref[ki],
                            preferred_element_type=jnp.float32)
        a = _sigmoid_fast(z + b1_ref[...])                   # (R1, C1*o1)

        # ---- maxpool1: 4-shift max + exact 0/1 selection matmuls -------------
        m = jnp.maximum(
            jnp.maximum(a[0:R1 - 1, 0:wide1 - 1], a[0:R1 - 1, 1:wide1]),
            jnp.maximum(a[1:R1, 0:wide1 - 1], a[1:R1, 1:wide1]))
        pool1 = jnp.dot(sh1_ref[...],
                        jnp.dot(m, sw1_ref[...],
                                preferred_element_type=jnp.float32),
                        preferred_element_type=jnp.float32)  # (nb*p1, C1*p1)

        # ---- conv2 over the block -------------------------------------------
        z = jnp.dot(pool1[0:R2, :], t2_ref[0], preferred_element_type=jnp.float32)
        for ki in range(1, KSIZE):
            z = z + jnp.dot(pool1[ki:ki + R2, :], t2_ref[ki],
                            preferred_element_type=jnp.float32)
        a = _sigmoid_fast(z + b2_ref[...])                   # (R2, C2*o2)

        # ---- maxpool2 (s-major rows so fc1 slices contiguous row blocks) -----
        m = jnp.maximum(
            jnp.maximum(a[0:R2 - 1, 0:wide2 - 1], a[0:R2 - 1, 1:wide2]),
            jnp.maximum(a[1:R2, 0:wide2 - 1], a[1:R2, 1:wide2]))
        pool2 = jnp.dot(sh2_ref[...],
                        jnp.dot(m, sw2_ref[...],
                                preferred_element_type=jnp.float32),
                        preferred_element_type=jnp.float32)  # (p2*nb, C2*p2)

        # ---- FC head, batched over the image block ---------------------------
        h = bfc1_ref[...]                                    # (1, 64) -> broadcasts
        for s in range(p2):
            h = h + jnp.dot(pool2[s * nb:(s + 1) * nb, :], afc1_ref[s],
                            preferred_element_type=jnp.float32)
        h = jnp.dot(h, wfc2_ref[...], preferred_element_type=jnp.float32) + bfc2_ref[...]
        h = jnp.dot(h, wfc3_ref[...], preferred_element_type=jnp.float32) + bfc3_ref[...]
        out_ref[...] = _sigmoid_exact(h)                     # (nb, 1)

    return kernel


def cnn_forward(x_nchw, kp):
    n, cin, h, w = x_nchw.shape
    assert cin == 1 and h == w
    o1, p1, o2, p2 = _dims(h)
    nb = kp["sh1"].shape[0] // p1            # batch block the params were built for
    n_pad = pl.cdiv(n, nb) * nb

    x3 = x_nchw[:, 0, :, :].astype(jnp.float32)
    if n_pad != n:
        x3 = jnp.concatenate([x3, jnp.zeros((n_pad - n, h, w), jnp.float32)], 0)
    x_flat = x3.reshape(n_pad * h, w)        # image b occupies rows [b*h, (b+1)*h)

    weights = (kp["t1"], kp["b1"], kp["sh1"], kp["sw1"],
               kp["t2"], kp["b2"], kp["sh2"], kp["sw2"],
               kp["a_fc1"], kp["b_fc1"], kp["w_fc2"], kp["b_fc2"],
               kp["w_fc3"], kp["b_fc3"])

    def _resident(arr):
        # full array in VMEM; constant block index => no re-DMA across grid steps
        return pl.BlockSpec(arr.shape, lambda i, nd=arr.ndim: (0,) * nd)

    out = pl.pallas_call(
        _make_cnn_kernel(nb, h, o1, p1, o2, p2),
        out_shape=jax.ShapeDtypeStruct((n_pad, 1), jnp.float32),
        grid=(n_pad // nb,),
        in_specs=[pl.BlockSpec((nb * h, w), lambda i: (i, 0))]
                 + [_resident(a) for a in weights],
        out_specs=pl.BlockSpec((nb, 1), lambda i: (i, 0)),
        compiler_params=pltpu.CompilerParams(
            dimension_semantics=("parallel",)),
    )(x_flat, *weights)
    return out[:n, 0]                                        # squeeze(-1)


# ------------------------- params + pure-JAX reference ------------------------

def init_params(im_size, key):
    """Deterministic init mimicking PyTorch's default uniform(-1/sqrt(fan_in), .)."""
    ks = jax.random.split(key, 10)

    def uni(k, shape, fan_in):
        bound = 1.0 / jnp.sqrt(float(fan_in))
        return jax.random.uniform(k, shape, jnp.float32, -bound, bound)

    feat = C2 * (((im_size - KSIZE) // POOL - KSIZE) // POOL) ** 2
    return {
        "conv1_w": uni(ks[0], (C1, 1, KSIZE, KSIZE), 1 * KSIZE * KSIZE),
        "conv1_b": uni(ks[1], (C1,), 1 * KSIZE * KSIZE),
        "conv2_w": uni(ks[2], (C2, C1, KSIZE, KSIZE), C1 * KSIZE * KSIZE),
        "conv2_b": uni(ks[3], (C2,), C1 * KSIZE * KSIZE),
        "fc1_w": uni(ks[4], (64, feat), feat),
        "fc1_b": uni(ks[5], (64,), feat),
        "fc2_w": uni(ks[6], (32, 64), 64),
        "fc2_b": uni(ks[7], (32,), 64),
        "fc3_w": uni(ks[8], (1, 32), 32),
        "fc3_b": uni(ks[9], (1,), 32),
    }


def cnn_reference(x_nchw, params):
    """Pure-JAX (XLA) reference of the torch forward, for correctness checking."""
    x = x_nchw.astype(jnp.float32)

    def conv(v, w, b):
        y = jax.lax.conv_general_dilated(
            v, w.astype(jnp.float32), window_strides=(1, 1), padding="VALID",
            dimension_numbers=("NCHW", "OIHW", "NCHW"))
        return y + b[None, :, None, None]

    def pool(v):
        return jax.lax.reduce_window(v, -jnp.inf, jax.lax.max,
                                     (1, 1, POOL, POOL), (1, 1, POOL, POOL), "VALID")

    a1 = pool(jax.nn.sigmoid(conv(x, params["conv1_w"], params["conv1_b"])))
    a2 = pool(jax.nn.sigmoid(conv(a1, params["conv2_w"], params["conv2_b"])))
    f = a2.reshape(a2.shape[0], -1)
    hh = f @ params["fc1_w"].T + params["fc1_b"]
    hh = hh @ params["fc2_w"].T + params["fc2_b"]
    hh = hh @ params["fc3_w"].T + params["fc3_b"]
    return jax.nn.sigmoid(hh[:, 0])


if __name__ == "__main__":
    IM_SIZE = 31     # odd size -> torch's fc1 sizing formula is self-consistent
    BATCH = 2
    key = jax.random.PRNGKey(0)
    kx, kpkey = jax.random.split(key)
    x = jax.random.normal(kx, (BATCH, 1, IM_SIZE, IM_SIZE), jnp.float32)

    params = init_params(IM_SIZE, kpkey)
    # one-time layout prep (batch block sized for this workload; 8 for large N)
    kparams = prepare_kernel_params(params, IM_SIZE,
                                    batch_block=min(BATCH_BLOCK, BATCH))

    y = jax.jit(cnn_forward)(x, kparams)
    y = jax.block_until_ready(y)
    assert y.shape == (BATCH,), y.shape
    assert bool(jnp.all((y >= 0.0) & (y <= 1.0)))

    y_ref = jax.block_until_ready(cnn_reference(x, params))
    err = float(jnp.max(jnp.abs(y - y_ref)))
    assert err < 5e-3, f"mismatch vs reference: {err}"
    print("KERNEL_OK")
</pallas_src>

<mosaic_0001>
module attributes {stable_mosaic.version = 11 : i64} {
  func.func @kernel(%arg0: i32, %arg1: memref<62x31xf32, #tpu.memory_space<vmem>>, %arg2: memref<5x31x162xf32, #tpu.memory_space<vmem>>, %arg3: memref<1x162xf32, #tpu.memory_space<vmem>>, %arg4: memref<26x57xf32, #tpu.memory_space<vmem>>, %arg5: memref<161x78xf32, #tpu.memory_space<vmem>>, %arg6: memref<5x78x144xf32, #tpu.memory_space<vmem>>, %arg7: memref<1x144xf32, #tpu.memory_space<vmem>>, %arg8: memref<8x21xf32, #tpu.memory_space<vmem>>, %arg9: memref<143x64xf32, #tpu.memory_space<vmem>>, %arg10: memref<4x64x64xf32, #tpu.memory_space<vmem>>, %arg11: memref<1x64xf32, #tpu.memory_space<vmem>>, %arg12: memref<64x32xf32, #tpu.memory_space<vmem>>, %arg13: memref<1x32xf32, #tpu.memory_space<vmem>>, %arg14: memref<32x1xf32, #tpu.memory_space<vmem>>, %arg15: memref<1x1xf32, #tpu.memory_space<vmem>>, %arg16: memref<2x1xf32, #tpu.memory_space<vmem>>) attributes {dimension_semantics = [#tpu.dimension_semantics<parallel>], iteration_bounds = array<i64: 1>, scalar_prefetch = 0 : i64, scratch_operands = 0 : i64, tpu.core_type = #tpu.core_type<tc>, window_params = [{transform_indices = @transform_0, window_bounds = array<i64: 62, 31>}, {pipeline_mode = #tpu.pipeline_mode<synchronous>, transform_indices = @transform_1, window_bounds = array<i64: 5, 31, 162>}, {pipeline_mode = #tpu.pipeline_mode<synchronous>, transform_indices = @transform_2, window_bounds = array<i64: 1, 162>}, {pipeline_mode = #tpu.pipeline_mode<synchronous>, transform_indices = @transform_3, window_bounds = array<i64: 26, 57>}, {pipeline_mode = #tpu.pipeline_mode<synchronous>, transform_indices = @transform_4, window_bounds = array<i64: 161, 78>}, {pipeline_mode = #tpu.pipeline_mode<synchronous>, transform_indices = @transform_5, window_bounds = array<i64: 5, 78, 144>}, {pipeline_mode = #tpu.pipeline_mode<synchronous>, transform_indices = @transform_6, window_bounds = array<i64: 1, 144>}, {pipeline_mode = #tpu.pipeline_mode<synchronous>, transform_indices = @transform_7, window_bounds = array<i64: 8, 21>}, {pipeline_mode = #tpu.pipeline_mode<synchronous>, transform_indices = @transform_8, window_bounds = array<i64: 143, 64>}, {pipeline_mode = #tpu.pipeline_mode<synchronous>, transform_indices = @transform_9, window_bounds = array<i64: 4, 64, 64>}, {pipeline_mode = #tpu.pipeline_mode<synchronous>, transform_indices = @transform_10, window_bounds = array<i64: 1, 64>}, {pipeline_mode = #tpu.pipeline_mode<synchronous>, transform_indices = @transform_11, window_bounds = array<i64: 64, 32>}, {pipeline_mode = #tpu.pipeline_mode<synchronous>, transform_indices = @transform_12, window_bounds = array<i64: 1, 32>}, {pipeline_mode = #tpu.pipeline_mode<synchronous>, transform_indices = @transform_13, window_bounds = array<i64: 32, 1>}, {pipeline_mode = #tpu.pipeline_mode<synchronous>, transform_indices = @transform_14, window_bounds = array<i64: 1, 1>}, {transform_indices = @transform_15, window_bounds = array<i64: 2, 1>}]} {
    %c0 = arith.constant 0 : index
    %c0_0 = arith.constant 0 : index
    %0 = vector.load %arg1[%c0, %c0_0] : memref<62x31xf32, #tpu.memory_space<vmem>>, vector<62x31xf32>
    %1 = vector.extract_strided_slice %0 {offsets = [0, 0], sizes = [58, 31], strides = [1, 1]} : vector<62x31xf32> to vector<58x31xf32>
    %c0_1 = arith.constant 0 : index
    %c0_2 = arith.constant 0 : index
    %c0_3 = arith.constant 0 : index
    %2 = vector.load %arg2[%c0_1, %c0_2, %c0_3] : memref<5x31x162xf32, #tpu.memory_space<vmem>>, vector<1x31x162xf32>
    %3 = vector.shape_cast %2 : vector<1x31x162xf32> to vector<31x162xf32>
    %cst = arith.constant dense<0.000000e+00> : vector<58x162xf32>
    %4 = tpu.matmul %1, %3, %cst {dimension_numbers = #tpu.dot_dimension_numbers<[1], [0], [0], [1], [0, 0, 1, 1], [], []>} : vector<58x31xf32>, vector<31x162xf32>, vector<58x162xf32> -> vector<58x162xf32>
    %5 = vector.extract_strided_slice %0 {offsets = [1, 0], sizes = [58, 31], strides = [1, 1]} : vector<62x31xf32> to vector<58x31xf32>
    %c1 = arith.constant 1 : index
    %c0_4 = arith.constant 0 : index
    %c0_5 = arith.constant 0 : index
    %6 = vector.load %arg2[%c1, %c0_4, %c0_5] : memref<5x31x162xf32, #tpu.memory_space<vmem>>, vector<1x31x162xf32>
    %7 = vector.shape_cast %6 : vector<1x31x162xf32> to vector<31x162xf32>
    %cst_6 = arith.constant dense<0.000000e+00> : vector<58x162xf32>
    %8 = tpu.matmul %5, %7, %cst_6 {dimension_numbers = #tpu.dot_dimension_numbers<[1], [0], [0], [1], [0, 0, 1, 1], [], []>} : vector<58x31xf32>, vector<31x162xf32>, vector<58x162xf32> -> vector<58x162xf32>
    %9 = arith.addf %4, %8 : vector<58x162xf32>
    %10 = vector.extract_strided_slice %0 {offsets = [2, 0], sizes = [58, 31], strides = [1, 1]} : vector<62x31xf32> to vector<58x31xf32>
    %c2 = arith.constant 2 : index
    %c0_7 = arith.constant 0 : index
    %c0_8 = arith.constant 0 : index
    %11 = vector.load %arg2[%c2, %c0_7, %c0_8] : memref<5x31x162xf32, #tpu.memory_space<vmem>>, vector<1x31x162xf32>
    %12 = vector.shape_cast %11 : vector<1x31x162xf32> to vector<31x162xf32>
    %cst_9 = arith.constant dense<0.000000e+00> : vector<58x162xf32>
    %13 = tpu.matmul %10, %12, %cst_9 {dimension_numbers = #tpu.dot_dimension_numbers<[1], [0], [0], [1], [0, 0, 1, 1], [], []>} : vector<58x31xf32>, vector<31x162xf32>, vector<58x162xf32> -> vector<58x162xf32>
    %14 = arith.addf %9, %13 : vector<58x162xf32>
    %15 = vector.extract_strided_slice %0 {offsets = [3, 0], sizes = [58, 31], strides = [1, 1]} : vector<62x31xf32> to vector<58x31xf32>
    %c3 = arith.constant 3 : index
    %c0_10 = arith.constant 0 : index
    %c0_11 = arith.constant 0 : index
    %16 = vector.load %arg2[%c3, %c0_10, %c0_11] : memref<5x31x162xf32, #tpu.memory_space<vmem>>, vector<1x31x162xf32>
    %17 = vector.shape_cast %16 : vector<1x31x162xf32> to vector<31x162xf32>
    %cst_12 = arith.constant dense<0.000000e+00> : vector<58x162xf32>
    %18 = tpu.matmul %15, %17, %cst_12 {dimension_numbers = #tpu.dot_dimension_numbers<[1], [0], [0], [1], [0, 0, 1, 1], [], []>} : vector<58x31xf32>, vector<31x162xf32>, vector<58x162xf32> -> vector<58x162xf32>
    %19 = arith.addf %14, %18 : vector<58x162xf32>
    %20 = vector.extract_strided_slice %0 {offsets = [4, 0], sizes = [58, 31], strides = [1, 1]} : vector<62x31xf32> to vector<58x31xf32>
    %c4 = arith.constant 4 : index
    %c0_13 = arith.constant 0 : index
    %c0_14 = arith.constant 0 : index
    %21 = vector.load %arg2[%c4, %c0_13, %c0_14] : memref<5x31x162xf32, #tpu.memory_space<vmem>>, vector<1x31x162xf32>
    %22 = vector.shape_cast %21 : vector<1x31x162xf32> to vector<31x162xf32>
    %cst_15 = arith.constant dense<0.000000e+00> : vector<58x162xf32>
    %23 = tpu.matmul %20, %22, %cst_15 {dimension_numbers = #tpu.dot_dimension_numbers<[1], [0], [0], [1], [0, 0, 1, 1], [], []>} : vector<58x31xf32>, vector<31x162xf32>, vector<58x162xf32> -> vector<58x162xf32>
    %24 = arith.addf %19, %23 : vector<58x162xf32>
    %c0_16 = arith.constant 0 : index
    %c0_17 = arith.constant 0 : index
    %25 = vector.load %arg3[%c0_16, %c0_17] : memref<1x162xf32, #tpu.memory_space<vmem>>, vector<1x162xf32>
    %26 = vector.broadcast %25 : vector<1x162xf32> to vector<58x162xf32>
    %27 = arith.addf %24, %26 : vector<58x162xf32>
    %28 = math.absf %27 : vector<58x162xf32>
    %cst_18 = arith.constant 0.000000e+00 : f32
    %29 = vector.broadcast %cst_18 : f32 to vector<58x162xf32>
    %30 = arith.subf %29, %28 : vector<58x162xf32>
    %31 = math.exp %30 : vector<58x162xf32>
    %cst_19 = arith.constant 1.000000e+00 : f32
    %32 = vector.broadcast %cst_19 : f32 to vector<58x162xf32>
    %33 = arith.addf %32, %31 : vector<58x162xf32>
    %34 = tpu.reciprocal %33 {approx = true} : vector<58x162xf32> -> vector<58x162xf32>
    %cst_20 = arith.constant 0.000000e+00 : f32
    %35 = vector.broadcast %cst_20 : f32 to vector<58x162xf32>
    %36 = arith.cmpf oge, %27, %35 : vector<58x162xf32>
    %cst_21 = arith.constant 1.000000e+00 : f32
    %37 = vector.broadcast %cst_21 : f32 to vector<58x162xf32>
    %38 = arith.subf %37, %34 : vector<58x162xf32>
    %39 = arith.select %36, %34, %38 : vector<58x162xi1>, vector<58x162xf32>
    %40 = vector.extract_strided_slice %39 {offsets = [0, 0], sizes = [57, 161], strides = [1, 1]} : vector<58x162xf32> to vector<57x161xf32>
    %41 = vector.extract_strided_slice %39 {offsets = [0, 1], sizes = [57, 161], strides = [1, 1]} : vector<58x162xf32> to vector<57x161xf32>
    %42 = arith.maximumf %40, %41 : vector<57x161xf32>
    %43 = vector.extract_strided_slice %39 {offsets = [1, 0], sizes = [57, 161], strides = [1, 1]} : vector<58x162xf32> to vector<57x161xf32>
    %44 = vector.extract_strided_slice %39 {offsets = [1, 1], sizes = [57, 161], strides = [1, 1]} : vector<58x162xf32> to vector<57x161xf32>
    %45 = arith.maximumf %43, %44 : vector<57x161xf32>
    %46 = arith.maximumf %42, %45 : vector<57x161xf32>
    %c0_22 = arith.constant 0 : index
    %c0_23 = arith.constant 0 : index
    %47 = vector.load %arg4[%c0_22, %c0_23] : memref<26x57xf32, #tpu.memory_space<vmem>>, vector<26x57xf32>
    %c0_24 = arith.constant 0 : index
    %c0_25 = arith.constant 0 : index
    %48 = vector.load %arg5[%c0_24, %c0_25] : memref<161x78xf32, #tpu.memory_space<vmem>>, vector<161x78xf32>
    %cst_26 = arith.constant dense<0.000000e+00> : vector<57x78xf32>
    %49 = tpu.matmul %46, %48, %cst_26 {dimension_numbers = #tpu.dot_dimension_numbers<[1], [0], [0], [1], [0, 0, 1, 1], [], []>} : vector<57x161xf32>, vector<161x78xf32>, vector<57x78xf32> -> vector<57x78xf32>
    %cst_27 = arith.constant dense<0.000000e+00> : vector<26x78xf32>
    %50 = tpu.matmul %47, %49, %cst_27 {dimension_numbers = #tpu.dot_dimension_numbers<[1], [0], [0], [1], [0, 0, 1, 1], [], []>} : vector<26x57xf32>, vector<57x78xf32>, vector<26x78xf32> -> vector<26x78xf32>
    %51 = vector.extract_strided_slice %50 {offsets = [0, 0], sizes = [22, 78], strides = [1, 1]} : vector<26x78xf32> to vector<22x78xf32>
    %c0_28 = arith.constant 0 : index
    %c0_29 = arith.constant 0 : index
    %c0_30 = arith.constant 0 : index
    %52 = vector.load %arg6[%c0_28, %c0_29, %c0_30] : memref<5x78x144xf32, #tpu.memory_space<vmem>>, vector<1x78x144xf32>
    %53 = vector.shape_cast %52 : vector<1x78x144xf32> to vector<78x144xf32>
    %cst_31 = arith.constant dense<0.000000e+00> : vector<22x144xf32>
    %54 = tpu.matmul %51, %53, %cst_31 {dimension_numbers = #tpu.dot_dimension_numbers<[1], [0], [0], [1], [0, 0, 1, 1], [], []>} : vector<22x78xf32>, vector<78x144xf32>, vector<22x144xf32> -> vector<22x144xf32>
    %55 = vector.extract_strided_slice %50 {offsets = [1, 0], sizes = [22, 78], strides = [1, 1]} : vector<26x78xf32> to vector<22x78xf32>
    %c1_32 = arith.constant 1 : index
    %c0_33 = arith.constant 0 : index
    %c0_34 = arith.constant 0 : index
    %56 = vector.load %arg6[%c1_32, %c0_33, %c0_34] : memref<5x78x144xf32, #tpu.memory_space<vmem>>, vector<1x78x144xf32>
    %57 = vector.shape_cast %56 : vector<1x78x144xf32> to vector<78x144xf32>
    %cst_35 = arith.constant dense<0.000000e+00> : vector<22x144xf32>
    %58 = tpu.matmul %55, %57, %cst_35 {dimension_numbers = #tpu.dot_dimension_numbers<[1], [0], [0], [1], [0, 0, 1, 1], [], []>} : vector<22x78xf32>, vector<78x144xf32>, vector<22x144xf32> -> vector<22x144xf32>
    %59 = arith.addf %54, %58 : vector<22x144xf32>
    %60 = vector.extract_strided_slice %50 {offsets = [2, 0], sizes = [22, 78], strides = [1, 1]} : vector<26x78xf32> to vector<22x78xf32>
    %c2_36 = arith.constant 2 : index
    %c0_37 = arith.constant 0 : index
    %c0_38 = arith.constant 0 : index
    %61 = vector.load %arg6[%c2_36, %c0_37, %c0_38] : memref<5x78x144xf32, #tpu.memory_space<vmem>>, vector<1x78x144xf32>
    %62 = vector.shape_cast %61 : vector<1x78x144xf32> to vector<78x144xf32>
    %cst_39 = arith.constant dense<0.000000e+00> : vector<22x144xf32>
    %63 = tpu.matmul %60, %62, %cst_39 {dimension_numbers = #tpu.dot_dimension_numbers<[1], [0], [0], [1], [0, 0, 1, 1], [], []>} : vector<22x78xf32>, vector<78x144xf32>, vector<22x144xf32> -> vector<22x144xf32>
    %64 = arith.addf %59, %63 : vector<22x144xf32>
    %65 = vector.extract_strided_slice %50 {offsets = [3, 0], sizes = [22, 78], strides = [1, 1]} : vector<26x78xf32> to vector<22x78xf32>
    %c3_40 = arith.constant 3 : index
    %c0_41 = arith.constant 0 : index
    %c0_42 = arith.constant 0 : index
    %66 = vector.load %arg6[%c3_40, %c0_41, %c0_42] : memref<5x78x144xf32, #tpu.memory_space<vmem>>, vector<1x78x144xf32>
    %67 = vector.shape_cast %66 : vector<1x78x144xf32> to vector<78x144xf32>
    %cst_43 = arith.constant dense<0.000000e+00> : vector<22x144xf32>
    %68 = tpu.matmul %65, %67, %cst_43 {dimension_numbers = #tpu.dot_dimension_numbers<[1], [0], [0], [1], [0, 0, 1, 1], [], []>} : vector<22x78xf32>, vector<78x144xf32>, vector<22x144xf32> -> vector<22x144xf32>
    %69 = arith.addf %64, %68 : vector<22x144xf32>
    %70 = vector.extract_strided_slice %50 {offsets = [4, 0], sizes = [22, 78], strides = [1, 1]} : vector<26x78xf32> to vector<22x78xf32>
    %c4_44 = arith.constant 4 : index
    %c0_45 = arith.constant 0 : index
    %c0_46 = arith.constant 0 : index
    %71 = vector.load %arg6[%c4_44, %c0_45, %c0_46] : memref<5x78x144xf32, #tpu.memory_space<vmem>>, vector<1x78x144xf32>
    %72 = vector.shape_cast %71 : vector<1x78x144xf32> to vector<78x144xf32>
    %cst_47 = arith.constant dense<0.000000e+00> : vector<22x144xf32>
    %73 = tpu.matmul %70, %72, %cst_47 {dimension_numbers = #tpu.dot_dimension_numbers<[1], [0], [0], [1], [0, 0, 1, 1], [], []>} : vector<22x78xf32>, vector<78x144xf32>, vector<22x144xf32> -> vector<22x144xf32>
    %74 = arith.addf %69, %73 : vector<22x144xf32>
    %c0_48 = arith.constant 0 : index
    %c0_49 = arith.constant 0 : index
    %75 = vector.load %arg7[%c0_48, %c0_49] : memref<1x144xf32, #tpu.memory_space<vmem>>, vector<1x144xf32>
    %76 = vector.broadcast %75 : vector<1x144xf32> to vector<22x144xf32>
    %77 = arith.addf %74, %76 : vector<22x144xf32>
    %78 = math.absf %77 : vector<22x144xf32>
    %cst_50 = arith.constant 0.000000e+00 : f32
    %79 = vector.broadcast %cst_50 : f32 to vector<22x144xf32>
    %80 = arith.subf %79, %78 : vector<22x144xf32>
    %81 = math.exp %80 : vector<22x144xf32>
    %cst_51 = arith.constant 1.000000e+00 : f32
    %82 = vector.broadcast %cst_51 : f32 to vector<22x144xf32>
    %83 = arith.addf %82, %81 : vector<22x144xf32>
    %84 = tpu.reciprocal %83 {approx = true} : vector<22x144xf32> -> vector<22x144xf32>
    %cst_52 = arith.constant 0.000000e+00 : f32
    %85 = vector.broadcast %cst_52 : f32 to vector<22x144xf32>
    %86 = arith.cmpf oge, %77, %85 : vector<22x144xf32>
    %cst_53 = arith.constant 1.000000e+00 : f32
    %87 = vector.broadcast %cst_53 : f32 to vector<22x144xf32>
    %88 = arith.subf %87, %84 : vector<22x144xf32>
    %89 = arith.select %86, %84, %88 : vector<22x144xi1>, vector<22x144xf32>
    %90 = vector.extract_strided_slice %89 {offsets = [0, 0], sizes = [21, 143], strides = [1, 1]} : vector<22x144xf32> to vector<21x143xf32>
    %91 = vector.extract_strided_slice %89 {offsets = [0, 1], sizes = [21, 143], strides = [1, 1]} : vector<22x144xf32> to vector<21x143xf32>
    %92 = arith.maximumf %90, %91 : vector<21x143xf32>
    %93 = vector.extract_strided_slice %89 {offsets = [1, 0], sizes = [21, 143], strides = [1, 1]} : vector<22x144xf32> to vector<21x143xf32>
    %94 = vector.extract_strided_slice %89 {offsets = [1, 1], sizes = [21, 143], strides = [1, 1]} : vector<22x144xf32> to vector<21x143xf32>
    %95 = arith.maximumf %93, %94 : vector<21x143xf32>
    %96 = arith.maximumf %92, %95 : vector<21x143xf32>
    %c0_54 = arith.constant 0 : index
    %c0_55 = arith.constant 0 : index
    %97 = vector.load %arg8[%c0_54, %c0_55] : memref<8x21xf32, #tpu.memory_space<vmem>>, vector<8x21xf32>
    %c0_56 = arith.constant 0 : index
    %c0_57 = arith.constant 0 : index
    %98 = vector.load %arg9[%c0_56, %c0_57] : memref<143x64xf32, #tpu.memory_space<vmem>>, vector<143x64xf32>
    %cst_58 = arith.constant dense<0.000000e+00> : vector<21x64xf32>
    %99 = tpu.matmul %96, %98, %cst_58 {dimension_numbers = #tpu.dot_dimension_numbers<[1], [0], [0], [1], [0, 0, 1, 1], [], []>} : vector<21x143xf32>, vector<143x64xf32>, vector<21x64xf32> -> vector<21x64xf32>
    %cst_59 = arith.constant dense<0.000000e+00> : vector<8x64xf32>
    %100 = tpu.matmul %97, %99, %cst_59 {dimension_numbers = #tpu.dot_dimension_numbers<[1], [0], [0], [1], [0, 0, 1, 1], [], []>} : vector<8x21xf32>, vector<21x64xf32>, vector<8x64xf32> -> vector<8x64xf32>
    %c0_60 = arith.constant 0 : index
    %c0_61 = arith.constant 0 : index
    %101 = vector.load %arg11[%c0_60, %c0_61] : memref<1x64xf32, #tpu.memory_space<vmem>>, vector<1x64xf32>
    %102 = vector.extract_strided_slice %100 {offsets = [0, 0], sizes = [2, 64], strides = [1, 1]} : vector<8x64xf32> to vector<2x64xf32>
    %c0_62 = arith.constant 0 : index
    %c0_63 = arith.constant 0 : index
    %c0_64 = arith.constant 0 : index
    %103 = vector.load %arg10[%c0_62, %c0_63, %c0_64] : memref<4x64x64xf32, #tpu.memory_space<vmem>>, vector<1x64x64xf32>
    %104 = vector.shape_cast %103 : vector<1x64x64xf32> to vector<64x64xf32>
    %cst_65 = arith.constant dense<0.000000e+00> : vector<2x64xf32>
    %105 = tpu.matmul %102, %104, %cst_65 {dimension_numbers = #tpu.dot_dimension_numbers<[1], [0], [0], [1], [0, 0, 1, 1], [], []>} : vector<2x64xf32>, vector<64x64xf32>, vector<2x64xf32> -> vector<2x64xf32>
    %106 = vector.broadcast %101 : vector<1x64xf32> to vector<2x64xf32>
    %107 = arith.addf %106, %105 : vector<2x64xf32>
    %108 = vector.extract_strided_slice %100 {offsets = [2, 0], sizes = [2, 64], strides = [1, 1]} : vector<8x64xf32> to vector<2x64xf32>
    %c1_66 = arith.constant 1 : index
    %c0_67 = arith.constant 0 : index
    %c0_68 = arith.constant 0 : index
    %109 = vector.load %arg10[%c1_66, %c0_67, %c0_68] : memref<4x64x64xf32, #tpu.memory_space<vmem>>, vector<1x64x64xf32>
    %110 = vector.shape_cast %109 : vector<1x64x64xf32> to vector<64x64xf32>
    %cst_69 = arith.constant dense<0.000000e+00> : vector<2x64xf32>
    %111 = tpu.matmul %108, %110, %cst_69 {dimension_numbers = #tpu.dot_dimension_numbers<[1], [0], [0], [1], [0, 0, 1, 1], [], []>} : vector<2x64xf32>, vector<64x64xf32>, vector<2x64xf32> -> vector<2x64xf32>
    %112 = arith.addf %107, %111 : vector<2x64xf32>
    %113 = vector.extract_strided_slice %100 {offsets = [4, 0], sizes = [2, 64], strides = [1, 1]} : vector<8x64xf32> to vector<2x64xf32>
    %c2_70 = arith.constant 2 : index
    %c0_71 = arith.constant 0 : index
    %c0_72 = arith.constant 0 : index
    %114 = vector.load %arg10[%c2_70, %c0_71, %c0_72] : memref<4x64x64xf32, #tpu.memory_space<vmem>>, vector<1x64x64xf32>
    %115 = vector.shape_cast %114 : vector<1x64x64xf32> to vector<64x64xf32>
    %cst_73 = arith.constant dense<0.000000e+00> : vector<2x64xf32>
    %116 = tpu.matmul %113, %115, %cst_73 {dimension_numbers = #tpu.dot_dimension_numbers<[1], [0], [0], [1], [0, 0, 1, 1], [], []>} : vector<2x64xf32>, vector<64x64xf32>, vector<2x64xf32> -> vector<2x64xf32>
    %117 = arith.addf %112, %116 : vector<2x64xf32>
    %118 = vector.extract_strided_slice %100 {offsets = [6, 0], sizes = [2, 64], strides = [1, 1]} : vector<8x64xf32> to vector<2x64xf32>
    %c3_74 = arith.constant 3 : index
    %c0_75 = arith.constant 0 : index
    %c0_76 = arith.constant 0 : index
    %119 = vector.load %arg10[%c3_74, %c0_75, %c0_76] : memref<4x64x64xf32, #tpu.memory_space<vmem>>, vector<1x64x64xf32>
    %120 = vector.shape_cast %119 : vector<1x64x64xf32> to vector<64x64xf32>
    %cst_77 = arith.constant dense<0.000000e+00> : vector<2x64xf32>
    %121 = tpu.matmul %118, %120, %cst_77 {dimension_numbers = #tpu.dot_dimension_numbers<[1], [0], [0], [1], [0, 0, 1, 1], [], []>} : vector<2x64xf32>, vector<64x64xf32>, vector<2x64xf32> -> vector<2x64xf32>
    %122 = arith.addf %117, %121 : vector<2x64xf32>
    %c0_78 = arith.constant 0 : index
    %c0_79 = arith.constant 0 : index
    %123 = vector.load %arg12[%c0_78, %c0_79] : memref<64x32xf32, #tpu.memory_space<vmem>>, vector<64x32xf32>
    %cst_80 = arith.constant dense<0.000000e+00> : vector<2x32xf32>
    %124 = tpu.matmul %122, %123, %cst_80 {dimension_numbers = #tpu.dot_dimension_numbers<[1], [0], [0], [1], [0, 0, 1, 1], [], []>} : vector<2x64xf32>, vector<64x32xf32>, vector<2x32xf32> -> vector<2x32xf32>
    %c0_81 = arith.constant 0 : index
    %c0_82 = arith.constant 0 : index
    %125 = vector.load %arg13[%c0_81, %c0_82] : memref<1x32xf32, #tpu.memory_space<vmem>>, vector<1x32xf32>
    %126 = vector.broadcast %125 : vector<1x32xf32> to vector<2x32xf32>
    %127 = arith.addf %124, %126 : vector<2x32xf32>
    %c0_83 = arith.constant 0 : index
    %c0_84 = arith.constant 0 : index
    %128 = vector.load %arg14[%c0_83, %c0_84] : memref<32x1xf32, #tpu.memory_space<vmem>>, vector<32x1xf32>
    %cst_85 = arith.constant dense<0.000000e+00> : vector<2x1xf32>
    %129 = tpu.matmul %127, %128, %cst_85 {dimension_numbers = #tpu.dot_dimension_numbers<[1], [0], [0], [1], [0, 0, 1, 1], [], []>} : vector<2x32xf32>, vector<32x1xf32>, vector<2x1xf32> -> vector<2x1xf32>
    %c0_86 = arith.constant 0 : index
    %c0_87 = arith.constant 0 : index
    %130 = vector.load %arg15[%c0_86, %c0_87] : memref<1x1xf32, #tpu.memory_space<vmem>>, vector<1x1xf32>
    %131 = vector.broadcast %130 : vector<1x1xf32> to vector<2x1xf32>
    %132 = arith.addf %129, %131 : vector<2x1xf32>
    %133 = math.absf %132 : vector<2x1xf32>
    %cst_88 = arith.constant 0.000000e+00 : f32
    %134 = vector.broadcast %cst_88 : f32 to vector<2x1xf32>
    %135 = arith.subf %134, %133 : vector<2x1xf32>
    %136 = math.exp %135 : vector<2x1xf32>
    %cst_89 = arith.constant 1.000000e+00 : f32
    %137 = vector.broadcast %cst_89 : f32 to vector<2x1xf32>
    %138 = arith.addf %137, %136 : vector<2x1xf32>
    %cst_90 = arith.constant 1.000000e+00 : f32
    %139 = vector.broadcast %cst_90 : f32 to vector<2x1xf32>
    %140 = arith.divf %139, %138 : vector<2x1xf32>
    %cst_91 = arith.constant 0.000000e+00 : f32
    %141 = vector.broadcast %cst_91 : f32 to vector<2x1xf32>
    %142 = arith.cmpf oge, %132, %141 : vector<2x1xf32>
    %cst_92 = arith.constant 1.000000e+00 : f32
    %143 = vector.broadcast %cst_92 : f32 to vector<2x1xf32>
    %144 = arith.subf %143, %140 : vector<2x1xf32>
    %145 = arith.select %142, %140, %144 : vector<2x1xi1>, vector<2x1xf32>
    %c0_93 = arith.constant 0 : index
    %c0_94 = arith.constant 0 : index
    %146 = vector.load %arg16[%c0_93, %c0_94] : memref<2x1xf32, #tpu.memory_space<vmem>>, vector<2x1xf32>
    tpu.vector_store %arg16[%c0_93, %c0_94], %145 {strides = array<i32>} : memref<2x1xf32, #tpu.memory_space<vmem>>, vector<2x1xf32>,
    return
  }
  func.func @transform_0(%arg0: i32) -> (i32, i32) {
    %c0_i32 = arith.constant 0 : i32
    %c0_i32_0 = arith.constant 0 : i32
    return %arg0, %c0_i32 : i32, i32
  }
  func.func @transform_1(%arg0: i32) -> (i32, i32, i32) {
    %c0_i32 = arith.constant 0 : i32
    %c0_i32_0 = arith.constant 0 : i32
    %c0_i32_1 = arith.constant 0 : i32
    %c0_i32_2 = arith.constant 0 : i32
    return %c0_i32, %c0_i32_0, %c0_i32_1 : i32, i32, i32
  }
  func.func @transform_2(%arg0: i32) -> (i32, i32) {
    %c0_i32 = arith.constant 0 : i32
    %c0_i32_0 = arith.constant 0 : i32
    %c0_i32_1 = arith.constant 0 : i32
    return %c0_i32, %c0_i32_0 : i32, i32
  }
  func.func @transform_3(%arg0: i32) -> (i32, i32) {
    %c0_i32 = arith.constant 0 : i32
    %c0_i32_0 = arith.constant 0 : i32
    %c0_i32_1 = arith.constant 0 : i32
    return %c0_i32, %c0_i32_0 : i32, i32
  }
  func.func @transform_4(%arg0: i32) -> (i32, i32) {
    %c0_i32 = arith.constant 0 : i32
    %c0_i32_0 = arith.constant 0 : i32
    %c0_i32_1 = arith.constant 0 : i32
    return %c0_i32, %c0_i32_0 : i32, i32
  }
  func.func @transform_5(%arg0: i32) -> (i32, i32, i32) {
    %c0_i32 = arith.constant 0 : i32
    %c0_i32_0 = arith.constant 0 : i32
    %c0_i32_1 = arith.constant 0 : i32
    %c0_i32_2 = arith.constant 0 : i32
    return %c0_i32, %c0_i32_0, %c0_i32_1 : i32, i32, i32
  }
  func.func @transform_6(%arg0: i32) -> (i32, i32) {
    %c0_i32 = arith.constant 0 : i32
    %c0_i32_0 = arith.constant 0 : i32
    %c0_i32_1 = arith.constant 0 : i32
    return %c0_i32, %c0_i32_0 : i32, i32
  }
  func.func @transform_7(%arg0: i32) -> (i32, i32) {
    %c0_i32 = arith.constant 0 : i32
    %c0_i32_0 = arith.constant 0 : i32
    %c0_i32_1 = arith.constant 0 : i32
    return %c0_i32, %c0_i32_0 : i32, i32
  }
  func.func @transform_8(%arg0: i32) -> (i32, i32) {
    %c0_i32 = arith.constant 0 : i32
    %c0_i32_0 = arith.constant 0 : i32
    %c0_i32_1 = arith.constant 0 : i32
    return %c0_i32, %c0_i32_0 : i32, i32
  }
  func.func @transform_9(%arg0: i32) -> (i32, i32, i32) {
    %c0_i32 = arith.constant 0 : i32
    %c0_i32_0 = arith.constant 0 : i32
    %c0_i32_1 = arith.constant 0 : i32
    %c0_i32_2 = arith.constant 0 : i32
    return %c0_i32, %c0_i32_0, %c0_i32_1 : i32, i32, i32
  }
  func.func @transform_10(%arg0: i32) -> (i32, i32) {
    %c0_i32 = arith.constant 0 : i32
    %c0_i32_0 = arith.constant 0 : i32
    %c0_i32_1 = arith.constant 0 : i32
    return %c0_i32, %c0_i32_0 : i32, i32
  }
  func.func @transform_11(%arg0: i32) -> (i32, i32) {
    %c0_i32 = arith.constant 0 : i32
    %c0_i32_0 = arith.constant 0 : i32
    %c0_i32_1 = arith.constant 0 : i32
    return %c0_i32, %c0_i32_0 : i32, i32
  }
  func.func @transform_12(%arg0: i32) -> (i32, i32) {
    %c0_i32 = arith.constant 0 : i32
    %c0_i32_0 = arith.constant 0 : i32
    %c0_i32_1 = arith.constant 0 : i32
    return %c0_i32, %c0_i32_0 : i32, i32
  }
  func.func @transform_13(%arg0: i32) -> (i32, i32) {
    %c0_i32 = arith.constant 0 : i32
    %c0_i32_0 = arith.constant 0 : i32
    %c0_i32_1 = arith.constant 0 : i32
    return %c0_i32, %c0_i32_0 : i32, i32
  }
  func.func @transform_14(%arg0: i32) -> (i32, i32) {
    %c0_i32 = arith.constant 0 : i32
    %c0_i32_0 = arith.constant 0 : i32
    %c0_i32_1 = arith.constant 0 : i32
    return %c0_i32, %c0_i32_0 : i32, i32
  }
  func.func @transform_15(%arg0: i32) -> (i32, i32) {
    %c0_i32 = arith.constant 0 : i32
    %c0_i32_0 = arith.constant 0 : i32
    return %arg0, %c0_i32 : i32, i32
  }
}

</mosaic_0001>

<llo_original>
// kernel: cnn_forward.1
$region0: #{cnn_forward.1}
  #allocation0 [shape = 'u32[]', space=smem, size = 0x4, offset = 0x4, fixed_abs, tag = 'smem constant byte address 0x4 - core index']
  #allocation1 [shape = 'u32[144,128]{1,0:T(1,128)}', space=vmem, size = 0x12000, scoped, tag = 'internal scratch']
  #allocation2 [shape = 'f32[1,1]{1,0:T(1,128)S(1)}', space=vmem, size = 0x200, scoped, tag = 'scoped memory for cnn_forward.1']
  %s0 = inlined_call_operand.vmem [shape: f32[62,31], index: 0, kind: input, shape index: {}]
  %s1 = inlined_call_operand.vmem [shape: f32[5,31,162], index: 1, kind: input, shape index: {}]
  %s2 = inlined_call_operand.vmem [shape: f32[1,162], index: 2, kind: input, shape index: {}]
  %s3 = inlined_call_operand.vmem [shape: f32[26,57], index: 3, kind: input, shape index: {}]
  %s4 = inlined_call_operand.vmem [shape: f32[161,78], index: 4, kind: input, shape index: {}]
  %s5 = inlined_call_operand.vmem [shape: f32[5,78,144], index: 5, kind: input, shape index: {}]
  %s6 = inlined_call_operand.vmem [shape: f32[1,144], index: 6, kind: input, shape index: {}]
  %s7 = inlined_call_operand.vmem [shape: f32[8,21], index: 7, kind: input, shape index: {}]
  %s8 = inlined_call_operand.vmem [shape: f32[143,64], index: 8, kind: input, shape index: {}]
  %s9 = inlined_call_operand.vmem [shape: f32[4,64,64], index: 9, kind: input, shape index: {}]
  %s10 = inlined_call_operand.vmem [shape: f32[1,64], index: 10, kind: input, shape index: {}]
  %s11 = inlined_call_operand.vmem [shape: f32[64,32], index: 11, kind: input, shape index: {}]
  %s12 = inlined_call_operand.vmem [shape: f32[1,32], index: 12, kind: input, shape index: {}]
  %s13 = inlined_call_operand.vmem [shape: f32[32,1], index: 13, kind: input, shape index: {}]
  %s14 = inlined_call_operand.<no memory space> [shape: f32[1,1], index: 14, kind: input, shape index: {}]
  %s15 = inlined_call_operand.vmem [shape: f32[2,1], index: 15, kind: output, shape index: {}]
  %s16 = sld [smem:[#allocation0]]
  $region70: #{cnn_forward.1} parent=0
    _
  %s18 = ssub.s32 1, %s16
  %s19 = scalar_select 0, %s18, %s16
  %v20 = vstv %s14
  %21 = vst [vmem:[#allocation2] sm:$0x1] %v20
  // Predicated region
  $region2: #{cnn_forward.1} parent=0 // pred_check
    _
  $region3: #{cnn_forward.1} parent=0 // pred_check_branch
    %23 = sbr.rel (0) target = $region5
  $region4: #{cnn_forward.1} parent=0 // pred_region
    _
  $region5: #{cnn_forward.1} parent=0 // pred_fallthru
    _
  // Predicated region
  $region6: #{cnn_forward.1} parent=0 // pred_check
    _
  $region7: #{cnn_forward.1} parent=0 // pred_check_branch
    %25 = sbr.rel (0) target = $region9
  $region8: #{cnn_forward.1} parent=0 // pred_region
    _
  $region9: #{cnn_forward.1} parent=0 // pred_fallthru
    _
  // Predicated region
  $region10: #{cnn_forward.1} parent=0 // pred_check
    _
  $region11: #{cnn_forward.1} parent=0 // pred_check_branch
    %27 = sbr.rel (0) target = $region13
  $region12: #{cnn_forward.1} parent=0 // pred_region
    _
  $region13: #{cnn_forward.1} parent=0 // pred_fallthru
    _
  // Predicated region
  $region14: #{cnn_forward.1} parent=0 // pred_check
    _
  $region15: #{cnn_forward.1} parent=0 // pred_check_branch
    %29 = sbr.rel (0) target = $region17
  $region16: #{cnn_forward.1} parent=0 // pred_region
    _
  $region17: #{cnn_forward.1} parent=0 // pred_fallthru
    _
  // Predicated region
  $region18: #{cnn_forward.1} parent=0 // pred_check
    _
  $region19: #{cnn_forward.1} parent=0 // pred_check_branch
    %31 = sbr.rel (0) target = $region21
  $region20: #{cnn_forward.1} parent=0 // pred_region
    _
  $region21: #{cnn_forward.1} parent=0 // pred_fallthru
    _
  // Predicated region
  $region22: #{cnn_forward.1} parent=0 // pred_check
    _
  $region23: #{cnn_forward.1} parent=0 // pred_check_branch
    %33 = sbr.rel (0) target = $region25
  $region24: #{cnn_forward.1} parent=0 // pred_region
    _
  $region25: #{cnn_forward.1} parent=0 // pred_fallthru
    _
  // Predicated region
  $region26: #{cnn_forward.1} parent=0 // pred_check
    _
  $region27: #{cnn_forward.1} parent=0 // pred_check_branch
    %35 = sbr.rel (0) target = $region29
  $region28: #{cnn_forward.1} parent=0 // pred_region
    _
  $region29: #{cnn_forward.1} parent=0 // pred_fallthru
    _
  // Predicated region
  $region30: #{cnn_forward.1} parent=0 // pred_check
    _
  $region31: #{cnn_forward.1} parent=0 // pred_check_branch
    %37 = sbr.rel (0) target = $region33
  $region32: #{cnn_forward.1} parent=0 // pred_region
    _
  $region33: #{cnn_forward.1} parent=0 // pred_fallthru
    _
  // Predicated region
  $region34: #{cnn_forward.1} parent=0 // pred_check
    _
  $region35: #{cnn_forward.1} parent=0 // pred_check_branch
    %39 = sbr.rel (0) target = $region37
  $region36: #{cnn_forward.1} parent=0 // pred_region
    _
  $region37: #{cnn_forward.1} parent=0 // pred_fallthru
    _
  // Predicated region
  $region38: #{cnn_forward.1} parent=0 // pred_check
    _
  $region39: #{cnn_forward.1} parent=0 // pred_check_branch
    %41 = sbr.rel (0) target = $region41
  $region40: #{cnn_forward.1} parent=0 // pred_region
    _
  $region41: #{cnn_forward.1} parent=0 // pred_fallthru
    _
  // Predicated region
  $region42: #{cnn_forward.1} parent=0 // pred_check
    _
  $region43: #{cnn_forward.1} parent=0 // pred_check_branch
    %43 = sbr.rel (0) target = $region45
  $region44: #{cnn_forward.1} parent=0 // pred_region
    _
  $region45: #{cnn_forward.1} parent=0 // pred_fallthru
    _
  // Predicated region
  $region46: #{cnn_forward.1} parent=0 // pred_check
    _
  $region47: #{cnn_forward.1} parent=0 // pred_check_branch
    %45 = sbr.rel (0) target = $region49
  $region48: #{cnn_forward.1} parent=0 // pred_region
    _
  $region49: #{cnn_forward.1} parent=0 // pred_fallthru
    _
  // Predicated region
  $region50: #{cnn_forward.1} parent=0 // pred_check
    _
  $region51: #{cnn_forward.1} parent=0 // pred_check_branch
    %47 = sbr.rel (0) target = $region53
  $region52: #{cnn_forward.1} parent=0 // pred_region
    _
  $region53: #{cnn_forward.1} parent=0 // pred_fallthru
    _
  // Predicated region
  $region54: #{cnn_forward.1} parent=0 // pred_check
    _
  $region55: #{cnn_forward.1} parent=0 // pred_check_branch
    %49 = sbr.rel (0) target = $region57
  $region56: #{cnn_forward.1} parent=0 // pred_region
    _
  $region57: #{cnn_forward.1} parent=0 // pred_fallthru
    _
  // Predicated region
  $region58: #{cnn_forward.1} parent=0 // pred_check
    _
  $region59: #{cnn_forward.1} parent=0 // pred_check_branch
    %51 = sbr.rel (0) target = $region61
  $region60: #{cnn_forward.1} parent=0 // pred_region
    _
  $region61: #{cnn_forward.1} parent=0 // pred_fallthru
    _
  %v52 = vld [vmem:[%s0] sm:$0xff]
  %v53 = vld [vmem:[%s0 + $0x8] sm:$0xff]
  %v54 = vld [vmem:[%s0 + $0x10] sm:$0xff]
  %v55 = vld [vmem:[%s0 + $0x18] sm:$0xff]
  %v56 = vld [vmem:[%s0 + $0x20] sm:$0xff]
  %v57 = vld [vmem:[%s0 + $0x28] sm:$0xff]
  %v58 = vld [vmem:[%s0 + $0x30] sm:$0xff]
  %v59 = vld [vmem:[%s0 + $0x38] sm:$0x3f]
  %v60 = vld [vmem:[%s1] sm:$0xff]
  %v61 = vld [vmem:[%s1 + $0x8] sm:$0xff]
  %v62 = vld [vmem:[%s1 + $0x10] sm:$0xff]
  %v63 = vld [vmem:[%s1 + $0x18] sm:$0xff]
  %v64 = vld [vmem:[%s1 + $0x20] sm:$0xff]
  %v65 = vld [vmem:[%s1 + $0x28] sm:$0xff]
  %v66 = vld [vmem:[%s1 + $0x30] sm:$0x7f]
  %v67 = vld [vmem:[%s1 + $0x38] sm:$0x7f]
  %s68 = scalar_lea.vmem %s1, 64
  %v69 = vld [vmem:[%s68] sm:$0xff]
  %v70 = vld [vmem:[%s68 + $0x8] sm:$0xff]
  %v71 = vld [vmem:[%s68 + $0x10] sm:$0xff]
  %v72 = vld [vmem:[%s68 + $0x18] sm:$0xff]
  %v73 = vld [vmem:[%s68 + $0x20] sm:$0xff]
  %v74 = vld [vmem:[%s68 + $0x28] sm:$0xff]
  %v75 = vld [vmem:[%s68 + $0x30] sm:$0x7f]
  %v76 = vld [vmem:[%s68 + $0x38] sm:$0x7f]
  %vm85 = vcmask 1046528
  %v86 = vrot.slane %v52, 1
  %v87 = vrot.slane %v53, 1
  %v88 = vsel %vm85, %v86, %v87
  %v89 = vrot.slane %v54, 1
  %v90 = vsel %vm85, %v87, %v89
  %v91 = vrot.slane %v55, 1
  %v92 = vsel %vm85, %v89, %v91
  %v93 = vrot.slane %v56, 1
  %v94 = vsel %vm85, %v91, %v93
  %v95 = vrot.slane %v57, 1
  %v96 = vsel %vm85, %v93, %v95
  %v97 = vrot.slane %v58, 1
  %v98 = vsel %vm85, %v95, %v97
  %v99 = vrot.slane %v59, 1
  %v100 = vsel %vm85, %v97, %v99
  %vm101 = vcmask 252928
  %v102 = vsel %vm101, %v88, 0
  %v104 = vsel %vm101, %v90, 0
  %v106 = vsel %vm101, %v92, 0
  %v108 = vsel %vm101, %v94, 0
  %v110 = vsel %vm101, %v96, 0
  %v112 = vsel %vm101, %v98, 0
  %v114 = vsel %vm101, %v100, 0
  %v116 = vsel %vm101, %v99, 0
  %v119 = vsel %vm85, %v75, 0
  %v122 = vsel %vm85, %v76, 0
  %124 = vmatprep.subr.mxu0 0.0
  %125 = vmatpush1.msra.mxu0 0.0
  %126 = vmatprep.subr.mxu0 0.0
  %127 = vmatpush1.msra.mxu0 0.0
  %128 = vmatprep.subr.mxu0 0.0
  %129 = vmatpush1.msra.mxu0 0.0
  %130 = vmatprep.subr.mxu0 0.0
  %131 = vmatpush1.msra.mxu0 0.0
  %132 = vmatprep.subr.mxu0 0.0
  %133 = vmatpush1.msra.mxu0 0.0
  %134 = vmatprep.subr.mxu0 0.0
  %135 = vmatpush1.msra.mxu0 0.0
  %136 = vmatprep.subr.mxu0 0.0
  %137 = vmatpush1.msra.mxu0 0.0
  %138 = vmatprep.subr.mxu0 0.0
  %139 = vmatpush1.msra.mxu0 0.0
  %140 = vmatprep.subr.mxu0 0.0
  %141 = vmatpush1.msra.mxu0 0.0
  %142 = vmatprep.subr.mxu0 0.0
  %143 = vmatpush1.msra.mxu0 0.0
  %144 = vmatprep.subr.mxu0 0.0
  %145 = vmatpush1.msra.mxu0 0.0
  %146 = vmatprep.subr.mxu0 0.0
  %147 = vmatpush1.msra.mxu0 0.0
  %148 = vmatprep.subr.mxu0 %v122
  %149 = vmatpush1.msra.mxu0 %v119
  %150 = vmatprep.subr.mxu0 %v74
  %151 = vmatpush1.msra.mxu0 %v73
  %152 = vmatprep.subr.mxu0 %v72
  %153 = vmatpush1.msra.mxu0 %v71
  %154 = vmatprep.subr.mxu0 %v70
  %155 = vmatpush1.msra.mxu0 %v69
  %156 = vmatprep.subr.mxu0 0.0
  %157 = vmatpush2.msra.mxu0 0.0
  %158 = vmatprep.subr.mxu0 0.0
  %159 = vmatpush2.msra.mxu0 0.0
  %160 = vmatprep.subr.mxu0 0.0
  %161 = vmatpush2.msra.mxu0 0.0
  %162 = vmatprep.subr.mxu0 0.0
  %163 = vmatpush2.msra.mxu0 0.0
  %164 = vmatprep.subr.mxu0 0.0
  %165 = vmatpush2.msra.mxu0 0.0
  %166 = vmatprep.subr.mxu0 0.0
  %167 = vmatpush2.msra.mxu0 0.0
  %168 = vmatprep.subr.mxu0 0.0
  %169 = vmatpush2.msra.mxu0 0.0
  %170 = vmatprep.subr.mxu0 0.0
  %171 = vmatpush2.msra.mxu0 0.0
  %172 = vmatprep.subr.mxu0 0.0
  %173 = vmatpush2.msra.mxu0 0.0
  %174 = vmatprep.subr.mxu0 0.0
  %175 = vmatpush2.msra.mxu0 0.0
  %176 = vmatprep.subr.mxu0 0.0
  %177 = vmatpush2.msra.mxu0 0.0
  %178 = vmatprep.subr.mxu0 0.0
  %179 = vmatpush2.msra.mxu0 0.0
  %180 = vmatprep.subr.mxu0 0.0
  %181 = vmatpush2.msra.mxu0 0.0
  %182 = vmatprep.subr.mxu0 0.0
  %183 = vmatpush2.msra.mxu0 0.0
  %184 = vmatprep.subr.mxu0 0.0
  %185 = vmatpush2.msra.mxu0 0.0
  %186 = vmatprep.subr.mxu0 0.0
  %187 = vmatpush2.msra.mxu0 0.0
  %188 = vmatprep.mubr.f32.mxu0 0.0
  %189 = vmatmul.mubr.f32.gmra.mxu0 %v102
  %v190 = vpop.f32.mrf.mxu0
  %v191 = vadd.f32 0.0, %v190
  %v192 = vpop.f32.mrf.mxu0
  %v193 = vadd.f32 0.0, %v192
  %194 = vmatprep.mubr.f32.mxu0 0.0
  %195 = vmatmul.mubr.f32.gmra.mxu0 %v104
  %v196 = vpop.f32.mrf.mxu0
  %v197 = vadd.f32 0.0, %v196
  %v198 = vpop.f32.mrf.mxu0
  %v199 = vadd.f32 0.0, %v198
  %200 = vmatprep.mubr.f32.mxu0 0.0
  %201 = vmatmul.mubr.f32.gmra.mxu0 %v106
  %v202 = vpop.f32.mrf.mxu0
  %v203 = vadd.f32 0.0, %v202
  %v204 = vpop.f32.mrf.mxu0
  %v205 = vadd.f32 0.0, %v204
  %206 = vmatprep.mubr.f32.mxu0 0.0
  %207 = vmatmul.mubr.f32.gmra.mxu0 %v108
  %v208 = vpop.f32.mrf.mxu0
  %v209 = vadd.f32 0.0, %v208
  %v210 = vpop.f32.mrf.mxu0
  %v211 = vadd.f32 0.0, %v210
  %212 = vmatprep.mubr.f32.mxu0 0.0
  %213 = vmatmul.mubr.f32.gmra.mxu0 %v110
  %v214 = vpop.f32.mrf.mxu0
  %v215 = vadd.f32 0.0, %v214
  %v216 = vpop.f32.mrf.mxu0
  %v217 = vadd.f32 0.0, %v216
  %218 = vmatprep.mubr.f32.mxu0 0.0
  %219 = vmatmul.mubr.f32.gmra.mxu0 %v112
  %v220 = vpop.f32.mrf.mxu0
  %v221 = vadd.f32 0.0, %v220
  %v222 = vpop.f32.mrf.mxu0
  %v223 = vadd.f32 0.0, %v222
  %224 = vmatprep.mubr.f32.mxu0 0.0
  %225 = vmatmul.mubr.f32.gmra.mxu0 %v114
  %v226 = vpop.f32.mrf.mxu0
  %v227 = vadd.f32 0.0, %v226
  %v228 = vpop.f32.mrf.mxu0
  %v229 = vadd.f32 0.0, %v228
  %230 = vmatprep.mubr.f32.mxu0 0.0
  %231 = vmatmul.mubr.f32.gmra.mxu0 %v116
  %v232 = vpop.f32.mrf.mxu0
  %v233 = vadd.f32 0.0, %v232
  %v234 = vpop.f32.mrf.mxu0
  %v235 = vadd.f32 0.0, %v234
  %236 = vdwg.mxu0
  %v237 = vsel %vm101, %v52, 0
  %v239 = vsel %vm101, %v53, 0
  %v241 = vsel %vm101, %v54, 0
  %v243 = vsel %vm101, %v55, 0
  %v245 = vsel %vm101, %v56, 0
  %v247 = vsel %vm101, %v57, 0
  %v249 = vsel %vm101, %v58, 0
  %v251 = vsel %vm101, %v59, 0
  %v254 = vsel %vm85, %v66, 0
  %v257 = vsel %vm85, %v67, 0
  %259 = vmatprep.subr.mxu0 0.0
  %260 = vmatpush1.msra.mxu0 0.0
  %261 = vmatprep.subr.mxu0 0.0
  %262 = vmatpush1.msra.mxu0 0.0
  %263 = vmatprep.subr.mxu0 0.0
  %264 = vmatpush1.msra.mxu0 0.0
  %265 = vmatprep.subr.mxu0 0.0
  %266 = vmatpush1.msra.mxu0 0.0
  %267 = vmatprep.subr.mxu0 0.0
  %268 = vmatpush1.msra.mxu0 0.0
  %269 = vmatprep.subr.mxu0 0.0
  %270 = vmatpush1.msra.mxu0 0.0
  %271 = vmatprep.subr.mxu0 0.0
  %272 = vmatpush1.msra.mxu0 0.0
  %273 = vmatprep.subr.mxu0 0.0
  %274 = vmatpush1.msra.mxu0 0.0
  %275 = vmatprep.subr.mxu0 0.0
  %276 = vmatpush1.msra.mxu0 0.0
  %277 = vmatprep.subr.mxu0 0.0
  %278 = vmatpush1.msra.mxu0 0.0
  %279 = vmatprep.subr.mxu0 0.0
  %280 = vmatpush1.msra.mxu0 0.0
  %281 = vmatprep.subr.mxu0 0.0
  %282 = vmatpush1.msra.mxu0 0.0
  %283 = vmatprep.subr.mxu0 %v257
  %284 = vmatpush1.msra.mxu0 %v254
  %285 = vmatprep.subr.mxu0 %v65
  %286 = vmatpush1.msra.mxu0 %v64
  %287 = vmatprep.subr.mxu0 %v63
  %288 = vmatpush1.msra.mxu0 %v62
  %289 = vmatprep.subr.mxu0 %v61
  %290 = vmatpush1.msra.mxu0 %v60
  %291 = vmatprep.subr.mxu0 0.0
  %292 = vmatpush2.msra.mxu0 0.0
  %293 = vmatprep.subr.mxu0 0.0
  %294 = vmatpush2.msra.mxu0 0.0
  %295 = vmatprep.subr.mxu0 0.0
  %296 = vmatpush2.msra.mxu0 0.0
  %297 = vmatprep.subr.mxu0 0.0
  %298 = vmatpush2.msra.mxu0 0.0
  %299 = vmatprep.subr.mxu0 0.0
  %300 = vmatpush2.msra.mxu0 0.0
  %301 = vmatprep.subr.mxu0 0.0
  %302 = vmatpush2.msra.mxu0 0.0
  %303 = vmatprep.subr.mxu0 0.0
  %304 = vmatpush2.msra.mxu0 0.0
  %305 = vmatprep.subr.mxu0 0.0
  %306 = vmatpush2.msra.mxu0 0.0
  %307 = vmatprep.subr.mxu0 0.0
  %308 = vmatpush2.msra.mxu0 0.0
  %309 = vmatprep.subr.mxu0 0.0
  %310 = vmatpush2.msra.mxu0 0.0
  %311 = vmatprep.subr.mxu0 0.0
  %312 = vmatpush2.msra.mxu0 0.0
  %313 = vmatprep.subr.mxu0 0.0
  %314 = vmatpush2.msra.mxu0 0.0
  %315 = vmatprep.subr.mxu0 0.0
  %316 = vmatpush2.msra.mxu0 0.0
  %317 = vmatprep.subr.mxu0 0.0
  %318 = vmatpush2.msra.mxu0 0.0
  %319 = vmatprep.subr.mxu0 0.0
  %320 = vmatpush2.msra.mxu0 0.0
  %321 = vmatprep.subr.mxu0 0.0
  %322 = vmatpush2.msra.mxu0 0.0
  %323 = vmatprep.mubr.f32.mxu0 0.0
  %324 = vmatmul.mubr.f32.gmra.mxu0 %v237
  %v325 = vpop.f32.mrf.mxu0
  %v326 = vadd.f32 %v191, %v325
  %v327 = vpop.f32.mrf.mxu0
  %v328 = vadd.f32 %v193, %v327
  %329 = vmatprep.mubr.f32.mxu0 0.0
  %330 = vmatmul.mubr.f32.gmra.mxu0 %v239
  %v331 = vpop.f32.mrf.mxu0
  %v332 = vadd.f32 %v197, %v331
  %v333 = vpop.f32.mrf.mxu0
  %v334 = vadd.f32 %v199, %v333
  %335 = vmatprep.mubr.f32.mxu0 0.0
  %336 = vmatmul.mubr.f32.gmra.mxu0 %v241
  %v337 = vpop.f32.mrf.mxu0
  %v338 = vadd.f32 %v203, %v337
  %v339 = vpop.f32.mrf.mxu0
  %v340 = vadd.f32 %v205, %v339
  %341 = vmatprep.mubr.f32.mxu0 0.0
  %342 = vmatmul.mubr.f32.gmra.mxu0 %v243
  %v343 = vpop.f32.mrf.mxu0
  %v344 = vadd.f32 %v209, %v343
  %v345 = vpop.f32.mrf.mxu0
  %v346 = vadd.f32 %v211, %v345
  %347 = vmatprep.mubr.f32.mxu0 0.0
  %348 = vmatmul.mubr.f32.gmra.mxu0 %v245
  %v349 = vpop.f32.mrf.mxu0
  %v350 = vadd.f32 %v215, %v349
  %v351 = vpop.f32.mrf.mxu0
  %v352 = vadd.f32 %v217, %v351
  %353 = vmatprep.mubr.f32.mxu0 0.0
  %354 = vmatmul.mubr.f32.gmra.mxu0 %v247
  %v355 = vpop.f32.mrf.mxu0
  %v356 = vadd.f32 %v221, %v355
  %v357 = vpop.f32.mrf.mxu0
  %v358 = vadd.f32 %v223, %v357
  %359 = vmatprep.mubr.f32.mxu0 0.0
  %360 = vmatmul.mubr.f32.gmra.mxu0 %v249
  %v361 = vpop.f32.mrf.mxu0
  %v362 = vadd.f32 %v227, %v361
  %v363 = vpop.f32.mrf.mxu0
  %v364 = vadd.f32 %v229, %v363
  %365 = vmatprep.mubr.f32.mxu0 0.0
  %366 = vmatmul.mubr.f32.gmra.mxu0 %v251
  %v367 = vpop.f32.mrf.mxu0
  %v368 = vadd.f32 %v233, %v367
  %v369 = vpop.f32.mrf.mxu0
  %v370 = vadd.f32 %v235, %v369
  %371 = vdwg.mxu0
  %s372 = scalar_lea.vmem %s1, 128
  %v373 = vld [vmem:[%s372] sm:$0xff]
  %v374 = vld [vmem:[%s372 + $0x8] sm:$0xff]
  %v375 = vld [vmem:[%s372 + $0x10] sm:$0xff]
  %v376 = vld [vmem:[%s372 + $0x18] sm:$0xff]
  %v377 = vld [vmem:[%s372 + $0x20] sm:$0xff]
  %v378 = vld [vmem:[%s372 + $0x28] sm:$0xff]
  %v379 = vld [vmem:[%s372 + $0x30] sm:$0x7f]
  %v380 = vld [vmem:[%s372 + $0x38] sm:$0x7f]
  %vm381 = vcmask 1045504
  %v382 = vrot.slane %v52, 2
  %v383 = vrot.slane %v53, 2
  %v384 = vsel %vm381, %v382, %v383
  %v385 = vrot.slane %v54, 2
  %v386 = vsel %vm381, %v383, %v385
  %v387 = vrot.slane %v55, 2
  %v388 = vsel %vm381, %v385, %v387
  %v389 = vrot.slane %v56, 2
  %v390 = vsel %vm381, %v387, %v389
  %v391 = vrot.slane %v57, 2
  %v392 = vsel %vm381, %v389, %v391
  %v393 = vrot.slane %v58, 2
  %v394 = vsel %vm381, %v391, %v393
  %v395 = vrot.slane %v59, 2
  %v396 = vsel %vm381, %v393, %v395
  %v397 = vsel %vm101, %v384, 0
  %v399 = vsel %vm101, %v386, 0
  %v401 = vsel %vm101, %v388, 0
  %v403 = vsel %vm101, %v390, 0
  %v405 = vsel %vm101, %v392, 0
  %v407 = vsel %vm101, %v394, 0
  %v409 = vsel %vm101, %v396, 0
  %v411 = vsel %vm101, %v395, 0
  %v414 = vsel %vm85, %v379, 0
  %v417 = vsel %vm85, %v380, 0
  %419 = vmatprep.subr.mxu0 0.0
  %420 = vmatpush1.msra.mxu0 0.0
  %421 = vmatprep.subr.mxu0 0.0
  %422 = vmatpush1.msra.mxu0 0.0
  %423 = vmatprep.subr.mxu0 0.0
  %424 = vmatpush1.msra.mxu0 0.0
  %425 = vmatprep.subr.mxu0 0.0
  %426 = vmatpush1.msra.mxu0 0.0
  %427 = vmatprep.subr.mxu0 0.0
  %428 = vmatpush1.msra.mxu0 0.0
  %429 = vmatprep.subr.mxu0 0.0
  %430 = vmatpush1.msra.mxu0 0.0
  %431 = vmatprep.subr.mxu0 0.0
  %432 = vmatpush1.msra.mxu0 0.0
  %433 = vmatprep.subr.mxu0 0.0
  %434 = vmatpush1.msra.mxu0 0.0
  %435 = vmatprep.subr.mxu0 0.0
  %436 = vmatpush1.msra.mxu0 0.0
  %437 = vmatprep.subr.mxu0 0.0
  %438 = vmatpush1.msra.mxu0 0.0
  %439 = vmatprep.subr.mxu0 0.0
  %440 = vmatpush1.msra.mxu0 0.0
  %441 = vmatprep.subr.mxu0 0.0
  %442 = vmatpush1.msra.mxu0 0.0
  %443 = vmatprep.subr.mxu0 %v417
  %444 = vmatpush1.msra.mxu0 %v414
  %445 = vmatprep.subr.mxu0 %v378
  %446 = vmatpush1.msra.mxu0 %v377
  %447 = vmatprep.subr.mxu0 %v376
  %448 = vmatpush1.msra.mxu0 %v375
  %449 = vmatprep.subr.mxu0 %v374
  %450 = vmatpush1.msra.mxu0 %v373
  %451 = vmatprep.subr.mxu0 0.0
  %452 = vmatpush2.msra.mxu0 0.0
  %453 = vmatprep.subr.mxu0 0.0
  %454 = vmatpush2.msra.mxu0 0.0
  %455 = vmatprep.subr.mxu0 0.0
  %456 = vmatpush2.msra.mxu0 0.0
  %457 = vmatprep.subr.mxu0 0.0
  %458 = vmatpush2.msra.mxu0 0.0
  %459 = vmatprep.subr.mxu0 0.0
  %460 = vmatpush2.msra.mxu0 0.0
  %461 = vmatprep.subr.mxu0 0.0
  %462 = vmatpush2.msra.mxu0 0.0
  %463 = vmatprep.subr.mxu0 0.0
  %464 = vmatpush2.msra.mxu0 0.0
  %465 = vmatprep.subr.mxu0 0.0
  %466 = vmatpush2.msra.mxu0 0.0
  %467 = vmatprep.subr.mxu0 0.0
  %468 = vmatpush2.msra.mxu0 0.0
  %469 = vmatprep.subr.mxu0 0.0
  %470 = vmatpush2.msra.mxu0 0.0
  %471 = vmatprep.subr.mxu0 0.0
  %472 = vmatpush2.msra.mxu0 0.0
  %473 = vmatprep.subr.mxu0 0.0
  %474 = vmatpush2.msra.mxu0 0.0
  %475 = vmatprep.subr.mxu0 0.0
  %476 = vmatpush2.msra.mxu0 0.0
  %477 = vmatprep.subr.mxu0 0.0
  %478 = vmatpush2.msra.mxu0 0.0
  %479 = vmatprep.subr.mxu0 0.0
  %480 = vmatpush2.msra.mxu0 0.0
  %481 = vmatprep.subr.mxu0 0.0
  %482 = vmatpush2.msra.mxu0 0.0
  %483 = vmatprep.mubr.f32.mxu0 0.0
  %484 = vmatmul.mubr.f32.gmra.mxu0 %v397
  %v485 = vpop.f32.mrf.mxu0
  %v486 = vadd.f32 0.0, %v485
  %v487 = vpop.f32.mrf.mxu0
  %v488 = vadd.f32 0.0, %v487
  %489 = vmatprep.mubr.f32.mxu0 0.0
  %490 = vmatmul.mubr.f32.gmra.mxu0 %v399
  %v491 = vpop.f32.mrf.mxu0
  %v492 = vadd.f32 0.0, %v491
  %v493 = vpop.f32.mrf.mxu0
  %v494 = vadd.f32 0.0, %v493
  %495 = vmatprep.mubr.f32.mxu0 0.0
  %496 = vmatmul.mubr.f32.gmra.mxu0 %v401
  %v497 = vpop.f32.mrf.mxu0
  %v498 = vadd.f32 0.0, %v497
  %v499 = vpop.f32.mrf.mxu0
  %v500 = vadd.f32 0.0, %v499
  %501 = vmatprep.mubr.f32.mxu0 0.0
  %502 = vmatmul.mubr.f32.gmra.mxu0 %v403
  %v503 = vpop.f32.mrf.mxu0
  %v504 = vadd.f32 0.0, %v503
  %v505 = vpop.f32.mrf.mxu0
  %v506 = vadd.f32 0.0, %v505
  %507 = vmatprep.mubr.f32.mxu0 0.0
  %508 = vmatmul.mubr.f32.gmra.mxu0 %v405
  %v509 = vpop.f32.mrf.mxu0
  %v510 = vadd.f32 0.0, %v509
  %v511 = vpop.f32.mrf.mxu0
  %v512 = vadd.f32 0.0, %v511
  %513 = vmatprep.mubr.f32.mxu0 0.0
  %514 = vmatmul.mubr.f32.gmra.mxu0 %v407
  %v515 = vpop.f32.mrf.mxu0
  %v516 = vadd.f32 0.0, %v515
  %v517 = vpop.f32.mrf.mxu0
  %v518 = vadd.f32 0.0, %v517
  %519 = vmatprep.mubr.f32.mxu0 0.0
  %520 = vmatmul.mubr.f32.gmra.mxu0 %v409
  %v521 = vpop.f32.mrf.mxu0
  %v522 = vadd.f32 0.0, %v521
  %v523 = vpop.f32.mrf.mxu0
  %v524 = vadd.f32 0.0, %v523
  %525 = vmatprep.mubr.f32.mxu0 0.0
  %526 = vmatmul.mubr.f32.gmra.mxu0 %v411
  %v527 = vpop.f32.mrf.mxu0
  %v528 = vadd.f32 0.0, %v527
  %v529 = vpop.f32.mrf.mxu0
  %v530 = vadd.f32 0.0, %v529
  %531 = vdwg.mxu0
  %v532 = vadd.f32 %v326, %v486
  %v533 = vadd.f32 %v328, %v488
  %v534 = vadd.f32 %v332, %v492
  %v535 = vadd.f32 %v334, %v494
  %v536 = vadd.f32 %v338, %v498
  %v537 = vadd.f32 %v340, %v500
  %v538 = vadd.f32 %v344, %v504
  %v539 = vadd.f32 %v346, %v506
  %v540 = vadd.f32 %v350, %v510
  %v541 = vadd.f32 %v352, %v512
  %v542 = vadd.f32 %v356, %v516
  %v543 = vadd.f32 %v358, %v518
  %v544 = vadd.f32 %v362, %v522
  %v545 = vadd.f32 %v364, %v524
  %v546 = vadd.f32 %v368, %v528
  %v547 = vadd.f32 %v370, %v530
  %s548 = scalar_lea.vmem %s1, 192
  %v549 = vld [vmem:[%s548] sm:$0xff]
  %v550 = vld [vmem:[%s548 + $0x8] sm:$0xff]
  %v551 = vld [vmem:[%s548 + $0x10] sm:$0xff]
  %v552 = vld [vmem:[%s548 + $0x18] sm:$0xff]
  %v553 = vld [vmem:[%s548 + $0x20] sm:$0xff]
  %v554 = vld [vmem:[%s548 + $0x28] sm:$0xff]
  %v555 = vld [vmem:[%s548 + $0x30] sm:$0x7f]
  %v556 = vld [vmem:[%s548 + $0x38] sm:$0x7f]
  %vm557 = vcmask 1044480
  %v558 = vrot.slane %v52, 3
  %v559 = vrot.slane %v53, 3
  %v560 = vsel %vm557, %v558, %v559
  %v561 = vrot.slane %v54, 3
  %v562 = vsel %vm557, %v559, %v561
  %v563 = vrot.slane %v55, 3
  %v564 = vsel %vm557, %v561, %v563
  %v565 = vrot.slane %v56, 3
  %v566 = vsel %vm557, %v563, %v565
  %v567 = vrot.slane %v57, 3
  %v568 = vsel %vm557, %v565, %v567
  %v569 = vrot.slane %v58, 3
  %v570 = vsel %vm557, %v567, %v569
  %v571 = vrot.slane %v59, 3
  %v572 = vsel %vm557, %v569, %v571
  %v573 = vsel %vm101, %v560, 0
  %v575 = vsel %vm101, %v562, 0
  %v577 = vsel %vm101, %v564, 0
  %v579 = vsel %vm101, %v566, 0
  %v581 = vsel %vm101, %v568, 0
  %v583 = vsel %vm101, %v570, 0
  %v585 = vsel %vm101, %v572, 0
  %v587 = vsel %vm101, %v571, 0
  %v590 = vsel %vm85, %v555, 0
  %v593 = vsel %vm85, %v556, 0
  %595 = vmatprep.subr.mxu0 0.0
  %596 = vmatpush1.msra.mxu0 0.0
  %597 = vmatprep.subr.mxu0 0.0
  %598 = vmatpush1.msra.mxu0 0.0
  %599 = vmatprep.subr.mxu0 0.0
  %600 = vmatpush1.msra.mxu0 0.0
  %601 = vmatprep.subr.mxu0 0.0
  %602 = vmatpush1.msra.mxu0 0.0
  %603 = vmatprep.subr.mxu0 0.0
  %604 = vmatpush1.msra.mxu0 0.0
  %605 = vmatprep.subr.mxu0 0.0
  %606 = vmatpush1.msra.mxu0 0.0
  %607 = vmatprep.subr.mxu0 0.0
  %608 = vmatpush1.msra.mxu0 0.0
  %609 = vmatprep.subr.mxu0 0.0
  %610 = vmatpush1.msra.mxu0 0.0
  %611 = vmatprep.subr.mxu0 0.0
  %612 = vmatpush1.msra.mxu0 0.0
  %613 = vmatprep.subr.mxu0 0.0
  %614 = vmatpush1.msra.mxu0 0.0
  %615 = vmatprep.subr.mxu0 0.0
  %616 = vmatpush1.msra.mxu0 0.0
  %617 = vmatprep.subr.mxu0 0.0
  %618 = vmatpush1.msra.mxu0 0.0
  %619 = vmatprep.subr.mxu0 %v593
  %620 = vmatpush1.msra.mxu0 %v590
  %621 = vmatprep.subr.mxu0 %v554
  %622 = vmatpush1.msra.mxu0 %v553
  %623 = vmatprep.subr.mxu0 %v552
  %624 = vmatpush1.msra.mxu0 %v551
  %625 = vmatprep.subr.mxu0 %v550
  %626 = vmatpush1.msra.mxu0 %v549
  %627 = vmatprep.subr.mxu0 0.0
  %628 = vmatpush2.msra.mxu0 0.0
  %629 = vmatprep.subr.mxu0 0.0
  %630 = vmatpush2.msra.mxu0 0.0
  %631 = vmatprep.subr.mxu0 0.0
  %632 = vmatpush2.msra.mxu0 0.0
  %633 = vmatprep.subr.mxu0 0.0
  %634 = vmatpush2.msra.mxu0 0.0
  %635 = vmatprep.subr.mxu0 0.0
  %636 = vmatpush2.msra.mxu0 0.0
  %637 = vmatprep.subr.mxu0 0.0
  %638 = vmatpush2.msra.mxu0 0.0
  %639 = vmatprep.subr.mxu0 0.0
  %640 = vmatpush2.msra.mxu0 0.0
  %641 = vmatprep.subr.mxu0 0.0
  %642 = vmatpush2.msra.mxu0 0.0
  %643 = vmatprep.subr.mxu0 0.0
  %644 = vmatpush2.msra.mxu0 0.0
  %645 = vmatprep.subr.mxu0 0.0
  %646 = vmatpush2.msra.mxu0 0.0
  %647 = vmatprep.subr.mxu0 0.0
  %648 = vmatpush2.msra.mxu0 0.0
  %649 = vmatprep.subr.mxu0 0.0
  %650 = vmatpush2.msra.mxu0 0.0
  %651 = vmatprep.subr.mxu0 0.0
  %652 = vmatpush2.msra.mxu0 0.0
  %653 = vmatprep.subr.mxu0 0.0
  %654 = vmatpush2.msra.mxu0 0.0
  %655 = vmatprep.subr.mxu0 0.0
  %656 = vmatpush2.msra.mxu0 0.0
  %657 = vmatprep.subr.mxu0 0.0
  %658 = vmatpush2.msra.mxu0 0.0
  %659 = vmatprep.mubr.f32.mxu0 0.0
  %660 = vmatmul.mubr.f32.gmra.mxu0 %v573
  %v661 = vpop.f32.mrf.mxu0
  %v662 = vadd.f32 0.0, %v661
  %v663 = vpop.f32.mrf.mxu0
  %v664 = vadd.f32 0.0, %v663
  %665 = vmatprep.mubr.f32.mxu0 0.0
  %666 = vmatmul.mubr.f32.gmra.mxu0 %v575
  %v667 = vpop.f32.mrf.mxu0
  %v668 = vadd.f32 0.0, %v667
  %v669 = vpop.f32.mrf.mxu0
  %v670 = vadd.f32 0.0, %v669
  %671 = vmatprep.mubr.f32.mxu0 0.0
  %672 = vmatmul.mubr.f32.gmra.mxu0 %v577
  %v673 = vpop.f32.mrf.mxu0
  %v674 = vadd.f32 0.0, %v673
  %v675 = vpop.f32.mrf.mxu0
  %v676 = vadd.f32 0.0, %v675
  %677 = vmatprep.mubr.f32.mxu0 0.0
  %678 = vmatmul.mubr.f32.gmra.mxu0 %v579
  %v679 = vpop.f32.mrf.mxu0
  %v680 = vadd.f32 0.0, %v679
  %v681 = vpop.f32.mrf.mxu0
  %v682 = vadd.f32 0.0, %v681
  %683 = vmatprep.mubr.f32.mxu0 0.0
  %684 = vmatmul.mubr.f32.gmra.mxu0 %v581
  %v685 = vpop.f32.mrf.mxu0
  %v686 = vadd.f32 0.0, %v685
  %v687 = vpop.f32.mrf.mxu0
  %v688 = vadd.f32 0.0, %v687
  %689 = vmatprep.mubr.f32.mxu0 0.0
  %690 = vmatmul.mubr.f32.gmra.mxu0 %v583
  %v691 = vpop.f32.mrf.mxu0
  %v692 = vadd.f32 0.0, %v691
  %v693 = vpop.f32.mrf.mxu0
  %v694 = vadd.f32 0.0, %v693
  %695 = vmatprep.mubr.f32.mxu0 0.0
  %696 = vmatmul.mubr.f32.gmra.mxu0 %v585
  %v697 = vpop.f32.mrf.mxu0
  %v698 = vadd.f32 0.0, %v697
  %v699 = vpop.f32.mrf.mxu0
  %v700 = vadd.f32 0.0, %v699
  %701 = vmatprep.mubr.f32.mxu0 0.0
  %702 = vmatmul.mubr.f32.gmra.mxu0 %v587
  %v703 = vpop.f32.mrf.mxu0
  %v704 = vadd.f32 0.0, %v703
  %v705 = vpop.f32.mrf.mxu0
  %v706 = vadd.f32 0.0, %v705
  %707 = vdwg.mxu0
  %v708 = vadd.f32 %v532, %v662
  %v709 = vadd.f32 %v533, %v664
  %v710 = vadd.f32 %v534, %v668
  %v711 = vadd.f32 %v535, %v670
  %v712 = vadd.f32 %v536, %v674
  %v713 = vadd.f32 %v537, %v676
  %v714 = vadd.f32 %v538, %v680
  %v715 = vadd.f32 %v539, %v682
  %v716 = vadd.f32 %v540, %v686
  %v717 = vadd.f32 %v541, %v688
  %v718 = vadd.f32 %v542, %v692
  %v719 = vadd.f32 %v543, %v694
  %v720 = vadd.f32 %v544, %v698
  %v721 = vadd.f32 %v545, %v700
  %v722 = vadd.f32 %v546, %v704
  %v723 = vadd.f32 %v547, %v706
  %s724 = scalar_lea.vmem %s1, 256
  %v725 = vld [vmem:[%s724] sm:$0xff]
  %v726 = vld [vmem:[%s724 + $0x8] sm:$0xff]
  %v727 = vld [vmem:[%s724 + $0x10] sm:$0xff]
  %v728 = vld [vmem:[%s724 + $0x18] sm:$0xff]
  %v729 = vld [vmem:[%s724 + $0x20] sm:$0xff]
  %v730 = vld [vmem:[%s724 + $0x28] sm:$0xff]
  %v731 = vld [vmem:[%s724 + $0x30] sm:$0x7f]
  %v732 = vld [vmem:[%s724 + $0x38] sm:$0x7f]
  %vm733 = vcmask 1043456
  %v734 = vrot.slane %v52, 4
  %v735 = vrot.slane %v53, 4
  %v736 = vsel %vm733, %v734, %v735
  %v737 = vrot.slane %v54, 4
  %v738 = vsel %vm733, %v735, %v737
  %v739 = vrot.slane %v55, 4
  %v740 = vsel %vm733, %v737, %v739
  %v741 = vrot.slane %v56, 4
  %v742 = vsel %vm733, %v739, %v741
  %v743 = vrot.slane %v57, 4
  %v744 = vsel %vm733, %v741, %v743
  %v745 = vrot.slane %v58, 4
  %v746 = vsel %vm733, %v743, %v745
  %v747 = vrot.slane %v59, 4
  %v748 = vsel %vm733, %v745, %v747
  %v749 = vsel %vm101, %v736, 0
  %v751 = vsel %vm101, %v738, 0
  %v753 = vsel %vm101, %v740, 0
  %v755 = vsel %vm101, %v742, 0
  %v757 = vsel %vm101, %v744, 0
  %v759 = vsel %vm101, %v746, 0
  %v761 = vsel %vm101, %v748, 0
  %v763 = vsel %vm101, %v747, 0
  %v766 = vsel %vm85, %v731, 0
  %v769 = vsel %vm85, %v732, 0
  %771 = vmatprep.subr.mxu0 0.0
  %772 = vmatpush1.msra.mxu0 0.0
  %773 = vmatprep.subr.mxu0 0.0
  %774 = vmatpush1.msra.mxu0 0.0
  %775 = vmatprep.subr.mxu0 0.0
  %776 = vmatpush1.msra.mxu0 0.0
  %777 = vmatprep.subr.mxu0 0.0
  %778 = vmatpush1.msra.mxu0 0.0
  %779 = vmatprep.subr.mxu0 0.0
  %780 = vmatpush1.msra.mxu0 0.0
  %781 = vmatprep.subr.mxu0 0.0
  %782 = vmatpush1.msra.mxu0 0.0
  %783 = vmatprep.subr.mxu0 0.0
  %784 = vmatpush1.msra.mxu0 0.0
  %785 = vmatprep.subr.mxu0 0.0
  %786 = vmatpush1.msra.mxu0 0.0
  %787 = vmatprep.subr.mxu0 0.0
  %788 = vmatpush1.msra.mxu0 0.0
  %789 = vmatprep.subr.mxu0 0.0
  %790 = vmatpush1.msra.mxu0 0.0
  %791 = vmatprep.subr.mxu0 0.0
  %792 = vmatpush1.msra.mxu0 0.0
  %793 = vmatprep.subr.mxu0 0.0
  %794 = vmatpush1.msra.mxu0 0.0
  %795 = vmatprep.subr.mxu0 %v769
  %796 = vmatpush1.msra.mxu0 %v766
  %797 = vmatprep.subr.mxu0 %v730
  %798 = vmatpush1.msra.mxu0 %v729
  %799 = vmatprep.subr.mxu0 %v728
  %800 = vmatpush1.msra.mxu0 %v727
  %801 = vmatprep.subr.mxu0 %v726
  %802 = vmatpush1.msra.mxu0 %v725
  %803 = vmatprep.subr.mxu0 0.0
  %804 = vmatpush2.msra.mxu0 0.0
  %805 = vmatprep.subr.mxu0 0.0
  %806 = vmatpush2.msra.mxu0 0.0
  %807 = vmatprep.subr.mxu0 0.0
  %808 = vmatpush2.msra.mxu0 0.0
  %809 = vmatprep.subr.mxu0 0.0
  %810 = vmatpush2.msra.mxu0 0.0
  %811 = vmatprep.subr.mxu0 0.0
  %812 = vmatpush2.msra.mxu0 0.0
  %813 = vmatprep.subr.mxu0 0.0
  %814 = vmatpush2.msra.mxu0 0.0
  %815 = vmatprep.subr.mxu0 0.0
  %816 = vmatpush2.msra.mxu0 0.0
  %817 = vmatprep.subr.mxu0 0.0
  %818 = vmatpush2.msra.mxu0 0.0
  %819 = vmatprep.subr.mxu0 0.0
  %820 = vmatpush2.msra.mxu0 0.0
  %821 = vmatprep.subr.mxu0 0.0
  %822 = vmatpush2.msra.mxu0 0.0
  %823 = vmatprep.subr.mxu0 0.0
  %824 = vmatpush2.msra.mxu0 0.0
  %825 = vmatprep.subr.mxu0 0.0
  %826 = vmatpush2.msra.mxu0 0.0
  %827 = vmatprep.subr.mxu0 0.0
  %828 = vmatpush2.msra.mxu0 0.0
  %829 = vmatprep.subr.mxu0 0.0
  %830 = vmatpush2.msra.mxu0 0.0
  %831 = vmatprep.subr.mxu0 0.0
  %832 = vmatpush2.msra.mxu0 0.0
  %833 = vmatprep.subr.mxu0 0.0
  %834 = vmatpush2.msra.mxu0 0.0
  %835 = vmatprep.mubr.f32.mxu0 0.0
  %836 = vmatmul.mubr.f32.gmra.mxu0 %v749
  %v837 = vpop.f32.mrf.mxu0
  %v838 = vadd.f32 0.0, %v837
  %v839 = vpop.f32.mrf.mxu0
  %v840 = vadd.f32 0.0, %v839
  %841 = vmatprep.mubr.f32.mxu0 0.0
  %842 = vmatmul.mubr.f32.gmra.mxu0 %v751
  %v843 = vpop.f32.mrf.mxu0
  %v844 = vadd.f32 0.0, %v843
  %v845 = vpop.f32.mrf.mxu0
  %v846 = vadd.f32 0.0, %v845
  %847 = vmatprep.mubr.f32.mxu0 0.0
  %848 = vmatmul.mubr.f32.gmra.mxu0 %v753
  %v849 = vpop.f32.mrf.mxu0
  %v850 = vadd.f32 0.0, %v849
  %v851 = vpop.f32.mrf.mxu0
  %v852 = vadd.f32 0.0, %v851
  %853 = vmatprep.mubr.f32.mxu0 0.0
  %854 = vmatmul.mubr.f32.gmra.mxu0 %v755
  %v855 = vpop.f32.mrf.mxu0
  %v856 = vadd.f32 0.0, %v855
  %v857 = vpop.f32.mrf.mxu0
  %v858 = vadd.f32 0.0, %v857
  %859 = vmatprep.mubr.f32.mxu0 0.0
  %860 = vmatmul.mubr.f32.gmra.mxu0 %v757
  %v861 = vpop.f32.mrf.mxu0
  %v862 = vadd.f32 0.0, %v861
  %v863 = vpop.f32.mrf.mxu0
  %v864 = vadd.f32 0.0, %v863
  %865 = vmatprep.mubr.f32.mxu0 0.0
  %866 = vmatmul.mubr.f32.gmra.mxu0 %v759
  %v867 = vpop.f32.mrf.mxu0
  %v868 = vadd.f32 0.0, %v867
  %v869 = vpop.f32.mrf.mxu0
  %v870 = vadd.f32 0.0, %v869
  %871 = vmatprep.mubr.f32.mxu0 0.0
  %872 = vmatmul.mubr.f32.gmra.mxu0 %v761
  %v873 = vpop.f32.mrf.mxu0
  %v874 = vadd.f32 0.0, %v873
  %v875 = vpop.f32.mrf.mxu0
  %v876 = vadd.f32 0.0, %v875
  %877 = vmatprep.mubr.f32.mxu0 0.0
  %878 = vmatmul.mubr.f32.gmra.mxu0 %v763
  %v879 = vpop.f32.mrf.mxu0
  %v880 = vadd.f32 0.0, %v879
  %v881 = vpop.f32.mrf.mxu0
  %v882 = vadd.f32 0.0, %v881
  %883 = vdwg.mxu0
  %v884 = vadd.f32 %v708, %v838
  %v885 = vadd.f32 %v709, %v840
  %v886 = vadd.f32 %v710, %v844
  %v887 = vadd.f32 %v711, %v846
  %v888 = vadd.f32 %v712, %v850
  %v889 = vadd.f32 %v713, %v852
  %v890 = vadd.f32 %v714, %v856
  %v891 = vadd.f32 %v715, %v858
  %v892 = vadd.f32 %v716, %v862
  %v893 = vadd.f32 %v717, %v864
  %v894 = vadd.f32 %v718, %v868
  %v895 = vadd.f32 %v719, %v870
  %v896 = vadd.f32 %v720, %v874
  %v897 = vadd.f32 %v721, %v876
  %v898 = vadd.f32 %v722, %v880
  %v899 = vadd.f32 %v723, %v882
  %v900 = vld [vmem:[%s2] sm:$0x3]
  %v902 = vlaneseq
  %v903 = vshrl.u32 %v902, 7
  %v904 = vsub.s32 0, %v903
  %v905 = vrot.slane %v900, %v904
  %v906 = vlaneseq
  %v907 = vshrl.u32 %v906, 7
  %v908 = vsub.s32 1, %v907
  %v909 = vrot.slane %v900, %v908
  %v912 = vadd.f32 %v884, %v905
  %v913 = vadd.f32 %v885, %v909
  %v914 = vadd.f32 %v886, %v905
  %v915 = vadd.f32 %v887, %v909
  %v916 = vadd.f32 %v888, %v905
  %v917 = vadd.f32 %v889, %v909
  %v918 = vadd.f32 %v890, %v905
  %v919 = vadd.f32 %v891, %v909
  %v920 = vadd.f32 %v892, %v905
  %v921 = vadd.f32 %v893, %v909
  %v922 = vadd.f32 %v894, %v905
  %v923 = vadd.f32 %v895, %v909
  %v924 = vadd.f32 %v896, %v905
  %v925 = vadd.f32 %v897, %v909
  %v926 = vadd.f32 %v898, %v905
  %v927 = vadd.f32 %v899, %v909
  %v928 = vand.u32 2147483647, %v912
  %v929 = vand.u32 2147483647, %v913
  %v930 = vand.u32 2147483647, %v914
  %v931 = vand.u32 2147483647, %v915
  %v932 = vand.u32 2147483647, %v916
  %v933 = vand.u32 2147483647, %v917
  %v934 = vand.u32 2147483647, %v918
  %v935 = vand.u32 2147483647, %v919
  %v936 = vand.u32 2147483647, %v920
  %v937 = vand.u32 2147483647, %v921
  %v938 = vand.u32 2147483647, %v922
  %v939 = vand.u32 2147483647, %v923
  %v940 = vand.u32 2147483647, %v924
  %v941 = vand.u32 2147483647, %v925
  %v942 = vand.u32 2147483647, %v926
  %v943 = vand.u32 2147483647, %v927
  %v944 = vsub.f32 0.0, %v928
  %v945 = vsub.f32 0.0, %v929
  %v946 = vsub.f32 0.0, %v930
  %v947 = vsub.f32 0.0, %v931
  %v948 = vsub.f32 0.0, %v932
  %v949 = vsub.f32 0.0, %v933
  %v950 = vsub.f32 0.0, %v934
  %v951 = vsub.f32 0.0, %v935
  %v952 = vsub.f32 0.0, %v936
  %v953 = vsub.f32 0.0, %v937
  %v954 = vsub.f32 0.0, %v938
  %v955 = vsub.f32 0.0, %v939
  %v956 = vsub.f32 0.0, %v940
  %v957 = vsub.f32 0.0, %v941
  %v958 = vsub.f32 0.0, %v942
  %v959 = vsub.f32 0.0, %v943
  %v960 = vmul.f32 %v944, 1.442695
  %v961 = vpow.pop %v960
  %v962 = vmul.f32 %v945, 1.442695
  %v963 = vpow.pop %v962
  %v964 = vmul.f32 %v946, 1.442695
  %v965 = vpow.pop %v964
  %v966 = vmul.f32 %v947, 1.442695
  %v967 = vpow.pop %v966
  %v968 = vmul.f32 %v948, 1.442695
  %v969 = vpow.pop %v968
  %v970 = vmul.f32 %v949, 1.442695
  %v971 = vpow.pop %v970
  %v972 = vmul.f32 %v950, 1.442695
  %v973 = vpow.pop %v972
  %v974 = vmul.f32 %v951, 1.442695
  %v975 = vpow.pop %v974
  %v976 = vmul.f32 %v952, 1.442695
  %v977 = vpow.pop %v976
  %v978 = vmul.f32 %v953, 1.442695
  %v979 = vpow.pop %v978
  %v980 = vmul.f32 %v954, 1.442695
  %v981 = vpow.pop %v980
  %v982 = vmul.f32 %v955, 1.442695
  %v983 = vpow.pop %v982
  %v984 = vmul.f32 %v956, 1.442695
  %v985 = vpow.pop %v984
  %v986 = vmul.f32 %v957, 1.442695
  %v987 = vpow.pop %v986
  %v988 = vmul.f32 %v958, 1.442695
  %v989 = vpow.pop %v988
  %v990 = vmul.f32 %v959, 1.442695
  %v991 = vpow.pop %v990
  %v992 = vadd.f32 %v961, 1.0
  %v993 = vadd.f32 %v963, 1.0
  %v994 = vadd.f32 %v965, 1.0
  %v995 = vadd.f32 %v967, 1.0
  %v996 = vadd.f32 %v969, 1.0
  %v997 = vadd.f32 %v971, 1.0
  %v998 = vadd.f32 %v973, 1.0
  %v999 = vadd.f32 %v975, 1.0
  %v1000 = vadd.f32 %v977, 1.0
  %v1001 = vadd.f32 %v979, 1.0
  %v1002 = vadd.f32 %v981, 1.0
  %v1003 = vadd.f32 %v983, 1.0
  %v1004 = vadd.f32 %v985, 1.0
  %v1005 = vadd.f32 %v987, 1.0
  %v1006 = vadd.f32 %v989, 1.0
  %v1007 = vadd.f32 %v991, 1.0
  %v1008 = vrcp.pop %v992
  %v1009 = vrcp.pop %v993
  %v1010 = vrcp.pop %v994
  %v1011 = vrcp.pop %v995
  %v1012 = vrcp.pop %v996
  %v1013 = vrcp.pop %v997
  %v1014 = vrcp.pop %v998
  %v1015 = vrcp.pop %v999
  %v1016 = vrcp.pop %v1000
  %v1017 = vrcp.pop %v1001
  %v1018 = vrcp.pop %v1002
  %v1019 = vrcp.pop %v1003
  %v1020 = vrcp.pop %v1004
  %v1021 = vrcp.pop %v1005
  %v1022 = vrcp.pop %v1006
  %v1023 = vrcp.pop %v1007
  %vm1024 = vcmp.ge.f32.partialorder %v912, 0.0
  %vm1025 = vcmp.ge.f32.partialorder %v913, 0.0
  %vm1026 = vcmp.ge.f32.partialorder %v914, 0.0
  %vm1027 = vcmp.ge.f32.partialorder %v915, 0.0
  %vm1028 = vcmp.ge.f32.partialorder %v916, 0.0
  %vm1029 = vcmp.ge.f32.partialorder %v917, 0.0
  %vm1030 = vcmp.ge.f32.partialorder %v918, 0.0
  %vm1031 = vcmp.ge.f32.partialorder %v919, 0.0
  %vm1032 = vcmp.ge.f32.partialorder %v920, 0.0
  %vm1033 = vcmp.ge.f32.partialorder %v921, 0.0
  %vm1034 = vcmp.ge.f32.partialorder %v922, 0.0
  %vm1035 = vcmp.ge.f32.partialorder %v923, 0.0
  %vm1036 = vcmp.ge.f32.partialorder %v924, 0.0
  %vm1037 = vcmp.ge.f32.partialorder %v925, 0.0
  %vm1038 = vcmp.ge.f32.partialorder %v926, 0.0
  %vm1039 = vcmp.ge.f32.partialorder %v927, 0.0
  %v1040 = vsub.f32 1.0, %v1008
  %v1041 = vsub.f32 1.0, %v1009
  %v1042 = vsub.f32 1.0, %v1010
  %v1043 = vsub.f32 1.0, %v1011
  %v1044 = vsub.f32 1.0, %v1012
  %v1045 = vsub.f32 1.0, %v1013
  %v1046 = vsub.f32 1.0, %v1014
  %v1047 = vsub.f32 1.0, %v1015
  %v1048 = vsub.f32 1.0, %v1016
  %v1049 = vsub.f32 1.0, %v1017
  %v1050 = vsub.f32 1.0, %v1018
  %v1051 = vsub.f32 1.0, %v1019
  %v1052 = vsub.f32 1.0, %v1020
  %v1053 = vsub.f32 1.0, %v1021
  %v1054 = vsub.f32 1.0, %v1022
  %v1055 = vsub.f32 1.0, %v1023
  %v1056 = vsel %vm1024, %v1008, %v1040
  %v1057 = vsel %vm1025, %v1009, %v1041
  %v1058 = vsel %vm1026, %v1010, %v1042
  %v1059 = vsel %vm1027, %v1011, %v1043
  %v1060 = vsel %vm1028, %v1012, %v1044
  %v1061 = vsel %vm1029, %v1013, %v1045
  %v1062 = vsel %vm1030, %v1014, %v1046
  %v1063 = vsel %vm1031, %v1015, %v1047
  %v1064 = vsel %vm1032, %v1016, %v1048
  %v1065 = vsel %vm1033, %v1017, %v1049
  %v1066 = vsel %vm1034, %v1018, %v1050
  %v1067 = vsel %vm1035, %v1019, %v1051
  %v1068 = vsel %vm1036, %v1020, %v1052
  %v1069 = vsel %vm1037, %v1021, %v1053
  %v1070 = vsel %vm1038, %v1022, %v1054
  %v1071 = vsel %vm1039, %v1023, %v1055
  %1088 = vrot.lane.b32.xlu0 %v1056, 127
  %v1089 = vpop.permute.xlu0 %1088
  %1090 = vrot.lane.b32.xlu0 %v1057, 127
  %v1091 = vpop.permute.xlu0 %1090
  %1092 = vrot.lane.b32.xlu0 %v1058, 127
  %v1093 = vpop.permute.xlu0 %1092
  %1094 = vrot.lane.b32.xlu0 %v1059, 127
  %v1095 = vpop.permute.xlu0 %1094
  %1096 = vrot.lane.b32.xlu0 %v1060, 127
  %v1097 = vpop.permute.xlu0 %1096
  %1098 = vrot.lane.b32.xlu0 %v1061, 127
  %v1099 = vpop.permute.xlu0 %1098
  %1100 = vrot.lane.b32.xlu0 %v1062, 127
  %v1101 = vpop.permute.xlu0 %1100
  %1102 = vrot.lane.b32.xlu0 %v1063, 127
  %v1103 = vpop.permute.xlu0 %1102
  %1104 = vrot.lane.b32.xlu0 %v1064, 127
  %v1105 = vpop.permute.xlu0 %1104
  %1106 = vrot.lane.b32.xlu0 %v1065, 127
  %v1107 = vpop.permute.xlu0 %1106
  %1108 = vrot.lane.b32.xlu0 %v1066, 127
  %v1109 = vpop.permute.xlu0 %1108
  %1110 = vrot.lane.b32.xlu0 %v1067, 127
  %v1111 = vpop.permute.xlu0 %1110
  %1112 = vrot.lane.b32.xlu0 %v1068, 127
  %v1113 = vpop.permute.xlu0 %1112
  %1114 = vrot.lane.b32.xlu0 %v1069, 127
  %v1115 = vpop.permute.xlu0 %1114
  %1116 = vrot.lane.b32.xlu0 %v1070, 127
  %v1117 = vpop.permute.xlu0 %1116
  %1118 = vrot.lane.b32.xlu0 %v1071, 127
  %v1119 = vpop.permute.xlu0 %1118
  %vm1120 = vcmask 1039360
  %v1121 = vsel %vm1120, %v1089, %v1091
  %v1122 = vsel %vm1120, %v1093, %v1095
  %v1123 = vsel %vm1120, %v1097, %v1099
  %v1124 = vsel %vm1120, %v1101, %v1103
  %v1125 = vsel %vm1120, %v1105, %v1107
  %v1126 = vsel %vm1120, %v1109, %v1111
  %v1127 = vsel %vm1120, %v1113, %v1115
  %v1128 = vsel %vm1120, %v1117, %v1119
  %v1145 = vmax.f32 %v1056, %v1121
  %v1146 = vmax.f32 %v1057, %v1091
  %v1147 = vmax.f32 %v1058, %v1122
  %v1148 = vmax.f32 %v1059, %v1095
  %v1149 = vmax.f32 %v1060, %v1123
  %v1150 = vmax.f32 %v1061, %v1099
  %v1151 = vmax.f32 %v1062, %v1124
  %v1152 = vmax.f32 %v1063, %v1103
  %v1153 = vmax.f32 %v1064, %v1125
  %v1154 = vmax.f32 %v1065, %v1107
  %v1155 = vmax.f32 %v1066, %v1126
  %v1156 = vmax.f32 %v1067, %v1111
  %v1157 = vmax.f32 %v1068, %v1127
  %v1158 = vmax.f32 %v1069, %v1115
  %v1159 = vmax.f32 %v1070, %v1128
  %v1160 = vmax.f32 %v1071, %v1119
  %v1177 = vrot.slane %v1145, 1
  %v1178 = vrot.slane %v1147, 1
  %v1179 = vsel %vm85, %v1177, %v1178
  %v1180 = vrot.slane %v1146, 1
  %v1181 = vrot.slane %v1148, 1
  %v1182 = vsel %vm85, %v1180, %v1181
  %v1183 = vrot.slane %v1149, 1
  %v1184 = vsel %vm85, %v1178, %v1183
  %v1185 = vrot.slane %v1150, 1
  %v1186 = vsel %vm85, %v1181, %v1185
  %v1187 = vrot.slane %v1151, 1
  %v1188 = vsel %vm85, %v1183, %v1187
  %v1189 = vrot.slane %v1152, 1
  %v1190 = vsel %vm85, %v1185, %v1189
  %v1191 = vrot.slane %v1153, 1
  %v1192 = vsel %vm85, %v1187, %v1191
  %v1193 = vrot.slane %v1154, 1
  %v1194 = vsel %vm85, %v1189, %v1193
  %v1195 = vrot.slane %v1155, 1
  %v1196 = vsel %vm85, %v1191, %v1195
  %v1197 = vrot.slane %v1156, 1
  %v1198 = vsel %vm85, %v1193, %v1197
  %v1199 = vrot.slane %v1157, 1
  %v1200 = vsel %vm85, %v1195, %v1199
  %v1201 = vrot.slane %v1158, 1
  %v1202 = vsel %vm85, %v1197, %v1201
  %v1203 = vrot.slane %v1159, 1
  %v1204 = vsel %vm85, %v1199, %v1203
  %v1205 = vrot.slane %v1160, 1
  %v1206 = vsel %vm85, %v1201, %v1205
  %v1223 = vmax.f32 %v1145, %v1179
  %v1224 = vmax.f32 %v1146, %v1182
  %v1225 = vmax.f32 %v1147, %v1184
  %v1226 = vmax.f32 %v1148, %v1186
  %v1227 = vmax.f32 %v1149, %v1188
  %v1228 = vmax.f32 %v1150, %v1190
  %v1229 = vmax.f32 %v1151, %v1192
  %v1230 = vmax.f32 %v1152, %v1194
  %v1231 = vmax.f32 %v1153, %v1196
  %v1232 = vmax.f32 %v1154, %v1198
  %v1233 = vmax.f32 %v1155, %v1200
  %v1234 = vmax.f32 %v1156, %v1202
  %v1235 = vmax.f32 %v1157, %v1204
  %v1236 = vmax.f32 %v1158, %v1206
  %v1237 = vmax.f32 %v1159, %v1203
  %v1238 = vmax.f32 %v1160, %v1205
  %v1239 = vld [vmem:[%s3] sm:$0xff]
  %v1240 = vld [vmem:[%s3 + $0x8] sm:$0xff]
  %v1241 = vld [vmem:[%s3 + $0x10] sm:$0xff]
  %v1242 = vld [vmem:[%s3 + $0x18] sm:$0x3]
  %v1243 = vld [vmem:[%s4] sm:$0xff]
  %v1244 = vld [vmem:[%s4 + $0x8] sm:$0xff]
  %v1245 = vld [vmem:[%s4 + $0x10] sm:$0xff]
  %v1246 = vld [vmem:[%s4 + $0x18] sm:$0xff]
  %v1247 = vld [vmem:[%s4 + $0x20] sm:$0xff]
  %v1248 = vld [vmem:[%s4 + $0x28] sm:$0xff]
  %v1249 = vld [vmem:[%s4 + $0x30] sm:$0xff]
  %v1250 = vld [vmem:[%s4 + $0x38] sm:$0xff]
  %v1251 = vld [vmem:[%s4 + $0x40] sm:$0xff]
  %v1252 = vld [vmem:[%s4 + $0x48] sm:$0xff]
  %v1253 = vld [vmem:[%s4 + $0x50] sm:$0xff]
  %v1254 = vld [vmem:[%s4 + $0x58] sm:$0xff]
  %v1255 = vld [vmem:[%s4 + $0x60] sm:$0xff]
  %v1256 = vld [vmem:[%s4 + $0x68] sm:$0xff]
  %v1257 = vld [vmem:[%s4 + $0x70] sm:$0xff]
  %v1258 = vld [vmem:[%s4 + $0x78] sm:$0xff]
  %v1259 = vld [vmem:[%s4 + $0x80] sm:$0xff]
  %v1260 = vld [vmem:[%s4 + $0x88] sm:$0xff]
  %v1261 = vld [vmem:[%s4 + $0x90] sm:$0xff]
  %v1262 = vld [vmem:[%s4 + $0x98] sm:$0xff]
  %v1263 = vld [vmem:[%s4 + $0xa0] sm:$0x1]
  %vm1264 = vcmask 269312
  %v1266 = vsel %vm1264, %v1224, 0
  %v1269 = vsel %vm1264, %v1226, 0
  %v1272 = vsel %vm1264, %v1228, 0
  %v1275 = vsel %vm1264, %v1230, 0
  %v1278 = vsel %vm1264, %v1232, 0
  %v1281 = vsel %vm1264, %v1234, 0
  %v1284 = vsel %vm1264, %v1236, 0
  %v1287 = vsel %vm1264, %v1238, 0
  %vm1289 = vcmask 1040384
  %v1291 = vsel %vm1289, %v1263, 0
  %1293 = vmatprep.subr.mxu0 0.0
  %1294 = vmatpush1.msra.mxu0 %v1258
  %1295 = vmatprep.subr.mxu0 0.0
  %1296 = vmatpush1.msra.mxu0 %v1257
  %1297 = vmatprep.subr.mxu0 0.0
  %1298 = vmatpush1.msra.mxu0 %v1256
  %1299 = vmatprep.subr.mxu0 0.0
  %1300 = vmatpush1.msra.mxu0 %v1255
  %1301 = vmatprep.subr.mxu0 0.0
  %1302 = vmatpush1.msra.mxu0 %v1254
  %1303 = vmatprep.subr.mxu0 0.0
  %1304 = vmatpush1.msra.mxu0 %v1253
  %1305 = vmatprep.subr.mxu0 0.0
  %1306 = vmatpush1.msra.mxu0 %v1252
  %1307 = vmatprep.subr.mxu0 0.0
  %1308 = vmatpush1.msra.mxu0 %v1251
  %1309 = vmatprep.subr.mxu0 0.0
  %1310 = vmatpush1.msra.mxu0 %v1250
  %1311 = vmatprep.subr.mxu0 0.0
  %1312 = vmatpush1.msra.mxu0 %v1249
  %1313 = vmatprep.subr.mxu0 0.0
  %1314 = vmatpush1.msra.mxu0 %v1248
  %1315 = vmatprep.subr.mxu0 0.0
  %1316 = vmatpush1.msra.mxu0 %v1247
  %1317 = vmatprep.subr.mxu0 0.0
  %1318 = vmatpush1.msra.mxu0 %v1246
  %1319 = vmatprep.subr.mxu0 0.0
  %1320 = vmatpush1.msra.mxu0 %v1245
  %1321 = vmatprep.subr.mxu0 0.0
  %1322 = vmatpush1.msra.mxu0 %v1244
  %1323 = vmatprep.subr.mxu0 0.0
  %1324 = vmatpush1.msra.mxu0 %v1243
  %1325 = vmatprep.subr.mxu0 0.0
  %1326 = vmatpush2.msra.mxu0 0.0
  %1327 = vmatprep.subr.mxu0 0.0
  %1328 = vmatpush2.msra.mxu0 0.0
  %1329 = vmatprep.subr.mxu0 0.0
  %1330 = vmatpush2.msra.mxu0 0.0
  %1331 = vmatprep.subr.mxu0 0.0
  %1332 = vmatpush2.msra.mxu0 0.0
  %1333 = vmatprep.subr.mxu0 0.0
  %1334 = vmatpush2.msra.mxu0 0.0
  %1335 = vmatprep.subr.mxu0 0.0
  %1336 = vmatpush2.msra.mxu0 0.0
  %1337 = vmatprep.subr.mxu0 0.0
  %1338 = vmatpush2.msra.mxu0 0.0
  %1339 = vmatprep.subr.mxu0 0.0
  %1340 = vmatpush2.msra.mxu0 0.0
  %1341 = vmatprep.subr.mxu0 0.0
  %1342 = vmatpush2.msra.mxu0 0.0
  %1343 = vmatprep.subr.mxu0 0.0
  %1344 = vmatpush2.msra.mxu0 0.0
  %1345 = vmatprep.subr.mxu0 0.0
  %1346 = vmatpush2.msra.mxu0 0.0
  %1347 = vmatprep.subr.mxu0 0.0
  %1348 = vmatpush2.msra.mxu0 %v1291
  %1349 = vmatprep.subr.mxu0 0.0
  %1350 = vmatpush2.msra.mxu0 %v1262
  %1351 = vmatprep.subr.mxu0 0.0
  %1352 = vmatpush2.msra.mxu0 %v1261
  %1353 = vmatprep.subr.mxu0 0.0
  %1354 = vmatpush2.msra.mxu0 %v1260
  %1355 = vmatprep.subr.mxu0 0.0
  %1356 = vmatpush2.msra.mxu0 %v1259
  %1357 = vmatprep.mubr.f32.mxu0 %v1266
  %1358 = vmatmul.mubr.f32.gmra.mxu0 %v1223
  %v1359 = vpop.f32.mrf.mxu0
  %v1360 = vadd.f32 0.0, %v1359
  %v1361 = vpop.f32.mrf.mxu0
  %1362 = vmatprep.mubr.f32.mxu0 %v1269
  %1363 = vmatmul.mubr.f32.gmra.mxu0 %v1225
  %v1364 = vpop.f32.mrf.mxu0
  %v1365 = vadd.f32 0.0, %v1364
  %v1366 = vpop.f32.mrf.mxu0
  %1367 = vmatprep.mubr.f32.mxu0 %v1272
  %1368 = vmatmul.mubr.f32.gmra.mxu0 %v1227
  %v1369 = vpop.f32.mrf.mxu0
  %v1370 = vadd.f32 0.0, %v1369
  %v1371 = vpop.f32.mrf.mxu0
  %1372 = vmatprep.mubr.f32.mxu0 %v1275
  %1373 = vmatmul.mubr.f32.gmra.mxu0 %v1229
  %v1374 = vpop.f32.mrf.mxu0
  %v1375 = vadd.f32 0.0, %v1374
  %v1376 = vpop.f32.mrf.mxu0
  %1377 = vmatprep.mubr.f32.mxu0 %v1278
  %1378 = vmatmul.mubr.f32.gmra.mxu0 %v1231
  %v1379 = vpop.f32.mrf.mxu0
  %v1380 = vadd.f32 0.0, %v1379
  %v1381 = vpop.f32.mrf.mxu0
  %1382 = vmatprep.mubr.f32.mxu0 %v1281
  %1383 = vmatmul.mubr.f32.gmra.mxu0 %v1233
  %v1384 = vpop.f32.mrf.mxu0
  %v1385 = vadd.f32 0.0, %v1384
  %v1386 = vpop.f32.mrf.mxu0
  %1387 = vmatprep.mubr.f32.mxu0 %v1284
  %1388 = vmatmul.mubr.f32.gmra.mxu0 %v1235
  %v1389 = vpop.f32.mrf.mxu0
  %v1390 = vadd.f32 0.0, %v1389
  %v1391 = vpop.f32.mrf.mxu0
  %1392 = vmatprep.mubr.f32.mxu0 %v1287
  %1393 = vmatmul.mubr.f32.gmra.mxu0 %v1237
  %v1394 = vpop.f32.mrf.mxu0
  %v1395 = vadd.f32 0.0, %v1394
  %v1396 = vpop.f32.mrf.mxu0
  %1397 = vdwg.mxu0
  %vm1398 = vcmask 465920
  %v1400 = vsel %vm1398, %v1239, 0
  %v1403 = vsel %vm1398, %v1240, 0
  %v1406 = vsel %vm1398, %v1241, 0
  %v1409 = vsel %vm1398, %v1242, 0
  %v1412 = vsel %vm1289, %v1395, 0
  %1414 = vmatprep.subr.mxu0 0.0
  %1415 = vmatpush1.msra.mxu0 0.0
  %1416 = vmatprep.subr.mxu0 0.0
  %1417 = vmatpush1.msra.mxu0 0.0
  %1418 = vmatprep.subr.mxu0 0.0
  %1419 = vmatpush1.msra.mxu0 0.0
  %1420 = vmatprep.subr.mxu0 0.0
  %1421 = vmatpush1.msra.mxu0 0.0
  %1422 = vmatprep.subr.mxu0 0.0
  %1423 = vmatpush1.msra.mxu0 0.0
  %1424 = vmatprep.subr.mxu0 0.0
  %1425 = vmatpush1.msra.mxu0 0.0
  %1426 = vmatprep.subr.mxu0 0.0
  %1427 = vmatpush1.msra.mxu0 0.0
  %1428 = vmatprep.subr.mxu0 0.0
  %1429 = vmatpush1.msra.mxu0 0.0
  %1430 = vmatprep.subr.mxu0 0.0
  %1431 = vmatpush1.msra.mxu0 %v1412
  %1432 = vmatprep.subr.mxu0 0.0
  %1433 = vmatpush1.msra.mxu0 %v1390
  %1434 = vmatprep.subr.mxu0 0.0
  %1435 = vmatpush1.msra.mxu0 %v1385
  %1436 = vmatprep.subr.mxu0 0.0
  %1437 = vmatpush1.msra.mxu0 %v1380
  %1438 = vmatprep.subr.mxu0 0.0
  %1439 = vmatpush1.msra.mxu0 %v1375
  %1440 = vmatprep.subr.mxu0 0.0
  %1441 = vmatpush1.msra.mxu0 %v1370
  %1442 = vmatprep.subr.mxu0 0.0
  %1443 = vmatpush1.msra.mxu0 %v1365
  %1444 = vmatprep.subr.mxu0 0.0
  %1445 = vmatpush1.msra.mxu0 %v1360
  %1446 = vmatprep.subr.mxu0 0.0
  %1447 = vmatpush2.msra.mxu0 0.0
  %1448 = vmatprep.subr.mxu0 0.0
  %1449 = vmatpush2.msra.mxu0 0.0
  %1450 = vmatprep.subr.mxu0 0.0
  %1451 = vmatpush2.msra.mxu0 0.0
  %1452 = vmatprep.subr.mxu0 0.0
  %1453 = vmatpush2.msra.mxu0 0.0
  %1454 = vmatprep.subr.mxu0 0.0
  %1455 = vmatpush2.msra.mxu0 0.0
  %1456 = vmatprep.subr.mxu0 0.0
  %1457 = vmatpush2.msra.mxu0 0.0
  %1458 = vmatprep.subr.mxu0 0.0
  %1459 = vmatpush2.msra.mxu0 0.0
  %1460 = vmatprep.subr.mxu0 0.0
  %1461 = vmatpush2.msra.mxu0 0.0
  %1462 = vmatprep.subr.mxu0 0.0
  %1463 = vmatpush2.msra.mxu0 0.0
  %1464 = vmatprep.subr.mxu0 0.0
  %1465 = vmatpush2.msra.mxu0 0.0
  %1466 = vmatprep.subr.mxu0 0.0
  %1467 = vmatpush2.msra.mxu0 0.0
  %1468 = vmatprep.subr.mxu0 0.0
  %1469 = vmatpush2.msra.mxu0 0.0
  %1470 = vmatprep.subr.mxu0 0.0
  %1471 = vmatpush2.msra.mxu0 0.0
  %1472 = vmatprep.subr.mxu0 0.0
  %1473 = vmatpush2.msra.mxu0 0.0
  %1474 = vmatprep.subr.mxu0 0.0
  %1475 = vmatpush2.msra.mxu0 0.0
  %1476 = vmatprep.subr.mxu0 0.0
  %1477 = vmatpush2.msra.mxu0 0.0
  %1478 = vmatprep.mubr.f32.mxu0 0.0
  %1479 = vmatmul.mubr.f32.gmra.mxu0 %v1400
  %v1480 = vpop.f32.mrf.mxu0
  %v1481 = vadd.f32 0.0, %v1480
  %v1482 = vpop.f32.mrf.mxu0
  %1483 = vmatprep.mubr.f32.mxu0 0.0
  %1484 = vmatmul.mubr.f32.gmra.mxu0 %v1403
  %v1485 = vpop.f32.mrf.mxu0
  %v1486 = vadd.f32 0.0, %v1485
  %v1487 = vpop.f32.mrf.mxu0
  %1488 = vmatprep.mubr.f32.mxu0 0.0
  %1489 = vmatmul.mubr.f32.gmra.mxu0 %v1406
  %v1490 = vpop.f32.mrf.mxu0
  %v1491 = vadd.f32 0.0, %v1490
  %v1492 = vpop.f32.mrf.mxu0
  %1493 = vmatprep.mubr.f32.mxu0 0.0
  %1494 = vmatmul.mubr.f32.gmra.mxu0 %v1409
  %v1495 = vpop.f32.mrf.mxu0
  %v1496 = vadd.f32 0.0, %v1495
  %v1497 = vpop.f32.mrf.mxu0
  %1498 = vdwg.mxu0
  %v1499 = vld [vmem:[%s5] sm:$0xff]
  %v1500 = vld [vmem:[%s5 + $0x8] sm:$0xff]
  %v1501 = vld [vmem:[%s5 + $0x10] sm:$0xff]
  %v1502 = vld [vmem:[%s5 + $0x18] sm:$0xff]
  %v1503 = vld [vmem:[%s5 + $0x20] sm:$0xff]
  %v1504 = vld [vmem:[%s5 + $0x28] sm:$0xff]
  %v1505 = vld [vmem:[%s5 + $0x30] sm:$0xff]
  %v1506 = vld [vmem:[%s5 + $0x38] sm:$0xff]
  %v1507 = vld [vmem:[%s5 + $0x40] sm:$0xff]
  %v1508 = vld [vmem:[%s5 + $0x48] sm:$0xff]
  %v1509 = vld [vmem:[%s5 + $0x50] sm:$0xff]
  %v1510 = vld [vmem:[%s5 + $0x58] sm:$0xff]
  %v1511 = vld [vmem:[%s5 + $0x60] sm:$0xff]
  %v1512 = vld [vmem:[%s5 + $0x68] sm:$0xff]
  %v1513 = vld [vmem:[%s5 + $0x70] sm:$0xff]
  %v1514 = vld [vmem:[%s5 + $0x78] sm:$0xff]
  %v1515 = vld [vmem:[%s5 + $0x80] sm:$0xff]
  %v1516 = vld [vmem:[%s5 + $0x88] sm:$0xff]
  %v1517 = vld [vmem:[%s5 + $0x90] sm:$0x3f]
  %v1518 = vld [vmem:[%s5 + $0x98] sm:$0x3f]
  %s1519 = scalar_lea.vmem %s5, 160
  %v1520 = vld [vmem:[%s1519] sm:$0xff]
  %v1521 = vld [vmem:[%s1519 + $0x8] sm:$0xff]
  %v1522 = vld [vmem:[%s1519 + $0x10] sm:$0xff]
  %v1523 = vld [vmem:[%s1519 + $0x18] sm:$0xff]
  %v1524 = vld [vmem:[%s1519 + $0x20] sm:$0xff]
  %v1525 = vld [vmem:[%s1519 + $0x28] sm:$0xff]
  %v1526 = vld [vmem:[%s1519 + $0x30] sm:$0xff]
  %v1527 = vld [vmem:[%s1519 + $0x38] sm:$0xff]
  %v1528 = vld [vmem:[%s1519 + $0x40] sm:$0xff]
  %v1529 = vld [vmem:[%s1519 + $0x48] sm:$0xff]
  %v1530 = vld [vmem:[%s1519 + $0x50] sm:$0xff]
  %v1531 = vld [vmem:[%s1519 + $0x58] sm:$0xff]
  %v1532 = vld [vmem:[%s1519 + $0x60] sm:$0xff]
  %v1533 = vld [vmem:[%s1519 + $0x68] sm:$0xff]
  %v1534 = vld [vmem:[%s1519 + $0x70] sm:$0xff]
  %v1535 = vld [vmem:[%s1519 + $0x78] sm:$0xff]
  %v1536 = vld [vmem:[%s1519 + $0x80] sm:$0xff]
  %v1537 = vld [vmem:[%s1519 + $0x88] sm:$0xff]
  %v1538 = vld [vmem:[%s1519 + $0x90] sm:$0x3f]
  %v1539 = vld [vmem:[%s1519 + $0x98] sm:$0x3f]
  %v1543 = vrot.slane %v1481, 1
  %v1544 = vrot.slane %v1486, 1
  %v1545 = vsel %vm85, %v1543, %v1544
  %v1546 = vrot.slane %v1491, 1
  %v1547 = vsel %vm85, %v1544, %v1546
  %vm1548 = vcmask 637952
  %v1549 = vsel %vm1548, %v1545, 0
  %v1551 = vsel %vm1548, %v1547, 0
  %v1553 = vsel %vm1548, %v1546, 0
  %v1556 = vsel %vm381, %v1538, 0
  %v1559 = vsel %vm381, %v1539, 0
  %1561 = vmatprep.subr.mxu0 0.0
  %1562 = vmatpush1.msra.mxu0 0.0
  %1563 = vmatprep.subr.mxu0 0.0
  %1564 = vmatpush1.msra.mxu0 0.0
  %1565 = vmatprep.subr.mxu0 0.0
  %1566 = vmatpush1.msra.mxu0 0.0
  %1567 = vmatprep.subr.mxu0 0.0
  %1568 = vmatpush1.msra.mxu0 0.0
  %1569 = vmatprep.subr.mxu0 0.0
  %1570 = vmatpush1.msra.mxu0 0.0
  %1571 = vmatprep.subr.mxu0 0.0
  %1572 = vmatpush1.msra.mxu0 0.0
  %1573 = vmatprep.subr.mxu0 %v1559
  %1574 = vmatpush1.msra.mxu0 %v1556
  %1575 = vmatprep.subr.mxu0 %v1537
  %1576 = vmatpush1.msra.mxu0 %v1536
  %1577 = vmatprep.subr.mxu0 %v1535
  %1578 = vmatpush1.msra.mxu0 %v1534
  %1579 = vmatprep.subr.mxu0 %v1533
  %1580 = vmatpush1.msra.mxu0 %v1532
  %1581 = vmatprep.subr.mxu0 %v1531
  %1582 = vmatpush1.msra.mxu0 %v1530
  %1583 = vmatprep.subr.mxu0 %v1529
  %1584 = vmatpush1.msra.mxu0 %v1528
  %1585 = vmatprep.subr.mxu0 %v1527
  %1586 = vmatpush1.msra.mxu0 %v1526
  %1587 = vmatprep.subr.mxu0 %v1525
  %1588 = vmatpush1.msra.mxu0 %v1524
  %1589 = vmatprep.subr.mxu0 %v1523
  %1590 = vmatpush1.msra.mxu0 %v1522
  %1591 = vmatprep.subr.mxu0 %v1521
  %1592 = vmatpush1.msra.mxu0 %v1520
  %1593 = vmatprep.subr.mxu0 0.0
  %1594 = vmatpush2.msra.mxu0 0.0
  %1595 = vmatprep.subr.mxu0 0.0
  %1596 = vmatpush2.msra.mxu0 0.0
  %1597 = vmatprep.subr.mxu0 0.0
  %1598 = vmatpush2.msra.mxu0 0.0
  %1599 = vmatprep.subr.mxu0 0.0
  %1600 = vmatpush2.msra.mxu0 0.0
  %1601 = vmatprep.subr.mxu0 0.0
  %1602 = vmatpush2.msra.mxu0 0.0
  %1603 = vmatprep.subr.mxu0 0.0
  %1604 = vmatpush2.msra.mxu0 0.0
  %1605 = vmatprep.subr.mxu0 0.0
  %1606 = vmatpush2.msra.mxu0 0.0
  %1607 = vmatprep.subr.mxu0 0.0
  %1608 = vmatpush2.msra.mxu0 0.0
  %1609 = vmatprep.subr.mxu0 0.0
  %1610 = vmatpush2.msra.mxu0 0.0
  %1611 = vmatprep.subr.mxu0 0.0
  %1612 = vmatpush2.msra.mxu0 0.0
  %1613 = vmatprep.subr.mxu0 0.0
  %1614 = vmatpush2.msra.mxu0 0.0
  %1615 = vmatprep.subr.mxu0 0.0
  %1616 = vmatpush2.msra.mxu0 0.0
  %1617 = vmatprep.subr.mxu0 0.0
  %1618 = vmatpush2.msra.mxu0 0.0
  %1619 = vmatprep.subr.mxu0 0.0
  %1620 = vmatpush2.msra.mxu0 0.0
  %1621 = vmatprep.subr.mxu0 0.0
  %1622 = vmatpush2.msra.mxu0 0.0
  %1623 = vmatprep.subr.mxu0 0.0
  %1624 = vmatpush2.msra.mxu0 0.0
  %1625 = vmatprep.mubr.f32.mxu0 0.0
  %1626 = vmatmul.mubr.f32.gmra.mxu0 %v1549
  %v1627 = vpop.f32.mrf.mxu0
  %v1628 = vadd.f32 0.0, %v1627
  %v1629 = vpop.f32.mrf.mxu0
  %v1630 = vadd.f32 0.0, %v1629
  %1631 = vmatprep.mubr.f32.mxu0 0.0
  %1632 = vmatmul.mubr.f32.gmra.mxu0 %v1551
  %v1633 = vpop.f32.mrf.mxu0
  %v1634 = vadd.f32 0.0, %v1633
  %v1635 = vpop.f32.mrf.mxu0
  %v1636 = vadd.f32 0.0, %v1635
  %1637 = vmatprep.mubr.f32.mxu0 0.0
  %1638 = vmatmul.mubr.f32.gmra.mxu0 %v1553
  %v1639 = vpop.f32.mrf.mxu0
  %v1640 = vadd.f32 0.0, %v1639
  %v1641 = vpop.f32.mrf.mxu0
  %v1642 = vadd.f32 0.0, %v1641
  %1643 = vdwg.mxu0
  %v1644 = vsel %vm1548, %v1481, 0
  %v1646 = vsel %vm1548, %v1486, 0
  %v1648 = vsel %vm1548, %v1491, 0
  %v1651 = vsel %vm381, %v1517, 0
  %v1654 = vsel %vm381, %v1518, 0
  %1656 = vmatprep.subr.mxu0 0.0
  %1657 = vmatpush1.msra.mxu0 0.0
  %1658 = vmatprep.subr.mxu0 0.0
  %1659 = vmatpush1.msra.mxu0 0.0
  %1660 = vmatprep.subr.mxu0 0.0
  %1661 = vmatpush1.msra.mxu0 0.0
  %1662 = vmatprep.subr.mxu0 0.0
  %1663 = vmatpush1.msra.mxu0 0.0
  %1664 = vmatprep.subr.mxu0 0.0
  %1665 = vmatpush1.msra.mxu0 0.0
  %1666 = vmatprep.subr.mxu0 0.0
  %1667 = vmatpush1.msra.mxu0 0.0
  %1668 = vmatprep.subr.mxu0 %v1654
  %1669 = vmatpush1.msra.mxu0 %v1651
  %1670 = vmatprep.subr.mxu0 %v1516
  %1671 = vmatpush1.msra.mxu0 %v1515
  %1672 = vmatprep.subr.mxu0 %v1514
  %1673 = vmatpush1.msra.mxu0 %v1513
  %1674 = vmatprep.subr.mxu0 %v1512
  %1675 = vmatpush1.msra.mxu0 %v1511
  %1676 = vmatprep.subr.mxu0 %v1510
  %1677 = vmatpush1.msra.mxu0 %v1509
  %1678 = vmatprep.subr.mxu0 %v1508
  %1679 = vmatpush1.msra.mxu0 %v1507
  %1680 = vmatprep.subr.mxu0 %v1506
  %1681 = vmatpush1.msra.mxu0 %v1505
  %1682 = vmatprep.subr.mxu0 %v1504
  %1683 = vmatpush1.msra.mxu0 %v1503
  %1684 = vmatprep.subr.mxu0 %v1502
  %1685 = vmatpush1.msra.mxu0 %v1501
  %1686 = vmatprep.subr.mxu0 %v1500
  %1687 = vmatpush1.msra.mxu0 %v1499
  %1688 = vmatprep.subr.mxu0 0.0
  %1689 = vmatpush2.msra.mxu0 0.0
  %1690 = vmatprep.subr.mxu0 0.0
  %1691 = vmatpush2.msra.mxu0 0.0
  %1692 = vmatprep.subr.mxu0 0.0
  %1693 = vmatpush2.msra.mxu0 0.0
  %1694 = vmatprep.subr.mxu0 0.0
  %1695 = vmatpush2.msra.mxu0 0.0
  %1696 = vmatprep.subr.mxu0 0.0
  %1697 = vmatpush2.msra.mxu0 0.0
  %1698 = vmatprep.subr.mxu0 0.0
  %1699 = vmatpush2.msra.mxu0 0.0
  %1700 = vmatprep.subr.mxu0 0.0
  %1701 = vmatpush2.msra.mxu0 0.0
  %1702 = vmatprep.subr.mxu0 0.0
  %1703 = vmatpush2.msra.mxu0 0.0
  %1704 = vmatprep.subr.mxu0 0.0
  %1705 = vmatpush2.msra.mxu0 0.0
  %1706 = vmatprep.subr.mxu0 0.0
  %1707 = vmatpush2.msra.mxu0 0.0
  %1708 = vmatprep.subr.mxu0 0.0
  %1709 = vmatpush2.msra.mxu0 0.0
  %1710 = vmatprep.subr.mxu0 0.0
  %1711 = vmatpush2.msra.mxu0 0.0
  %1712 = vmatprep.subr.mxu0 0.0
  %1713 = vmatpush2.msra.mxu0 0.0
  %1714 = vmatprep.subr.mxu0 0.0
  %1715 = vmatpush2.msra.mxu0 0.0
  %1716 = vmatprep.subr.mxu0 0.0
  %1717 = vmatpush2.msra.mxu0 0.0
  %1718 = vmatprep.subr.mxu0 0.0
  %1719 = vmatpush2.msra.mxu0 0.0
  %1720 = vmatprep.mubr.f32.mxu0 0.0
  %1721 = vmatmul.mubr.f32.gmra.mxu0 %v1644
  %v1722 = vpop.f32.mrf.mxu0
  %v1723 = vadd.f32 %v1628, %v1722
  %v1724 = vpop.f32.mrf.mxu0
  %v1725 = vadd.f32 %v1630, %v1724
  %1726 = vmatprep.mubr.f32.mxu0 0.0
  %1727 = vmatmul.mubr.f32.gmra.mxu0 %v1646
  %v1728 = vpop.f32.mrf.mxu0
  %v1729 = vadd.f32 %v1634, %v1728
  %v1730 = vpop.f32.mrf.mxu0
  %v1731 = vadd.f32 %v1636, %v1730
  %1732 = vmatprep.mubr.f32.mxu0 0.0
  %1733 = vmatmul.mubr.f32.gmra.mxu0 %v1648
  %v1734 = vpop.f32.mrf.mxu0
  %v1735 = vadd.f32 %v1640, %v1734
  %v1736 = vpop.f32.mrf.mxu0
  %v1737 = vadd.f32 %v1642, %v1736
  %1738 = vdwg.mxu0
  %s1739 = scalar_lea.vmem %s5, 320
  %v1740 = vld [vmem:[%s1739] sm:$0xff]
  %v1741 = vld [vmem:[%s1739 + $0x8] sm:$0xff]
  %v1742 = vld [vmem:[%s1739 + $0x10] sm:$0xff]
  %v1743 = vld [vmem:[%s1739 + $0x18] sm:$0xff]
  %v1744 = vld [vmem:[%s1739 + $0x20] sm:$0xff]
  %v1745 = vld [vmem:[%s1739 + $0x28] sm:$0xff]
  %v1746 = vld [vmem:[%s1739 + $0x30] sm:$0xff]
  %v1747 = vld [vmem:[%s1739 + $0x38] sm:$0xff]
  %v1748 = vld [vmem:[%s1739 + $0x40] sm:$0xff]
  %v1749 = vld [vmem:[%s1739 + $0x48] sm:$0xff]
  %v1750 = vld [vmem:[%s1739 + $0x50] sm:$0xff]
  %v1751 = vld [vmem:[%s1739 + $0x58] sm:$0xff]
  %v1752 = vld [vmem:[%s1739 + $0x60] sm:$0xff]
  %v1753 = vld [vmem:[%s1739 + $0x68] sm:$0xff]
  %v1754 = vld [vmem:[%s1739 + $0x70] sm:$0xff]
  %v1755 = vld [vmem:[%s1739 + $0x78] sm:$0xff]
  %v1756 = vld [vmem:[%s1739 + $0x80] sm:$0xff]
  %v1757 = vld [vmem:[%s1739 + $0x88] sm:$0xff]
  %v1758 = vld [vmem:[%s1739 + $0x90] sm:$0x3f]
  %v1759 = vld [vmem:[%s1739 + $0x98] sm:$0x3f]
  %v1760 = vrot.slane %v1481, 2
  %v1761 = vrot.slane %v1486, 2
  %v1762 = vsel %vm381, %v1760, %v1761
  %v1763 = vrot.slane %v1491, 2
  %v1764 = vsel %vm381, %v1761, %v1763
  %v1765 = vsel %vm1548, %v1762, 0
  %v1767 = vsel %vm1548, %v1764, 0
  %v1769 = vsel %vm1548, %v1763, 0
  %v1772 = vsel %vm381, %v1758, 0
  %v1775 = vsel %vm381, %v1759, 0
  %1777 = vmatprep.subr.mxu0 0.0
  %1778 = vmatpush1.msra.mxu0 0.0
  %1779 = vmatprep.subr.mxu0 0.0
  %1780 = vmatpush1.msra.mxu0 0.0
  %1781 = vmatprep.subr.mxu0 0.0
  %1782 = vmatpush1.msra.mxu0 0.0
  %1783 = vmatprep.subr.mxu0 0.0
  %1784 = vmatpush1.msra.mxu0 0.0
  %1785 = vmatprep.subr.mxu0 0.0
  %1786 = vmatpush1.msra.mxu0 0.0
  %1787 = vmatprep.subr.mxu0 0.0
  %1788 = vmatpush1.msra.mxu0 0.0
  %1789 = vmatprep.subr.mxu0 %v1775
  %1790 = vmatpush1.msra.mxu0 %v1772
  %1791 = vmatprep.subr.mxu0 %v1757
  %1792 = vmatpush1.msra.mxu0 %v1756
  %1793 = vmatprep.subr.mxu0 %v1755
  %1794 = vmatpush1.msra.mxu0 %v1754
  %1795 = vmatprep.subr.mxu0 %v1753
  %1796 = vmatpush1.msra.mxu0 %v1752
  %1797 = vmatprep.subr.mxu0 %v1751
  %1798 = vmatpush1.msra.mxu0 %v1750
  %1799 = vmatprep.subr.mxu0 %v1749
  %1800 = vmatpush1.msra.mxu0 %v1748
  %1801 = vmatprep.subr.mxu0 %v1747
  %1802 = vmatpush1.msra.mxu0 %v1746
  %1803 = vmatprep.subr.mxu0 %v1745
  %1804 = vmatpush1.msra.mxu0 %v1744
  %1805 = vmatprep.subr.mxu0 %v1743
  %1806 = vmatpush1.msra.mxu0 %v1742
  %1807 = vmatprep.subr.mxu0 %v1741
  %1808 = vmatpush1.msra.mxu0 %v1740
  %1809 = vmatprep.subr.mxu0 0.0
  %1810 = vmatpush2.msra.mxu0 0.0
  %1811 = vmatprep.subr.mxu0 0.0
  %1812 = vmatpush2.msra.mxu0 0.0
  %1813 = vmatprep.subr.mxu0 0.0
  %1814 = vmatpush2.msra.mxu0 0.0
  %1815 = vmatprep.subr.mxu0 0.0
  %1816 = vmatpush2.msra.mxu0 0.0
  %1817 = vmatprep.subr.mxu0 0.0
  %1818 = vmatpush2.msra.mxu0 0.0
  %1819 = vmatprep.subr.mxu0 0.0
  %1820 = vmatpush2.msra.mxu0 0.0
  %1821 = vmatprep.subr.mxu0 0.0
  %1822 = vmatpush2.msra.mxu0 0.0
  %1823 = vmatprep.subr.mxu0 0.0
  %1824 = vmatpush2.msra.mxu0 0.0
  %1825 = vmatprep.subr.mxu0 0.0
  %1826 = vmatpush2.msra.mxu0 0.0
  %1827 = vmatprep.subr.mxu0 0.0
  %1828 = vmatpush2.msra.mxu0 0.0
  %1829 = vmatprep.subr.mxu0 0.0
  %1830 = vmatpush2.msra.mxu0 0.0
  %1831 = vmatprep.subr.mxu0 0.0
  %1832 = vmatpush2.msra.mxu0 0.0
  %1833 = vmatprep.subr.mxu0 0.0
  %1834 = vmatpush2.msra.mxu0 0.0
  %1835 = vmatprep.subr.mxu0 0.0
  %1836 = vmatpush2.msra.mxu0 0.0
  %1837 = vmatprep.subr.mxu0 0.0
  %1838 = vmatpush2.msra.mxu0 0.0
  %1839 = vmatprep.subr.mxu0 0.0
  %1840 = vmatpush2.msra.mxu0 0.0
  %1841 = vmatprep.mubr.f32.mxu0 0.0
  %1842 = vmatmul.mubr.f32.gmra.mxu0 %v1765
  %v1843 = vpop.f32.mrf.mxu0
  %v1844 = vadd.f32 0.0, %v1843
  %v1845 = vpop.f32.mrf.mxu0
  %v1846 = vadd.f32 0.0, %v1845
  %1847 = vmatprep.mubr.f32.mxu0 0.0
  %1848 = vmatmul.mubr.f32.gmra.mxu0 %v1767
  %v1849 = vpop.f32.mrf.mxu0
  %v1850 = vadd.f32 0.0, %v1849
  %v1851 = vpop.f32.mrf.mxu0
  %v1852 = vadd.f32 0.0, %v1851
  %1853 = vmatprep.mubr.f32.mxu0 0.0
  %1854 = vmatmul.mubr.f32.gmra.mxu0 %v1769
  %v1855 = vpop.f32.mrf.mxu0
  %v1856 = vadd.f32 0.0, %v1855
  %v1857 = vpop.f32.mrf.mxu0
  %v1858 = vadd.f32 0.0, %v1857
  %1859 = vdwg.mxu0
  %v1860 = vadd.f32 %v1723, %v1844
  %v1861 = vadd.f32 %v1725, %v1846
  %v1862 = vadd.f32 %v1729, %v1850
  %v1863 = vadd.f32 %v1731, %v1852
  %v1864 = vadd.f32 %v1735, %v1856
  %v1865 = vadd.f32 %v1737, %v1858
  %s1866 = scalar_lea.vmem %s5, 480
  %v1867 = vld [vmem:[%s1866] sm:$0xff]
  %v1868 = vld [vmem:[%s1866 + $0x8] sm:$0xff]
  %v1869 = vld [vmem:[%s1866 + $0x10] sm:$0xff]
  %v1870 = vld [vmem:[%s1866 + $0x18] sm:$0xff]
  %v1871 = vld [vmem:[%s1866 + $0x20] sm:$0xff]
  %v1872 = vld [vmem:[%s1866 + $0x28] sm:$0xff]
  %v1873 = vld [vmem:[%s1866 + $0x30] sm:$0xff]
  %v1874 = vld [vmem:[%s1866 + $0x38] sm:$0xff]
  %v1875 = vld [vmem:[%s1866 + $0x40] sm:$0xff]
  %v1876 = vld [vmem:[%s1866 + $0x48] sm:$0xff]
  %v1877 = vld [vmem:[%s1866 + $0x50] sm:$0xff]
  %v1878 = vld [vmem:[%s1866 + $0x58] sm:$0xff]
  %v1879 = vld [vmem:[%s1866 + $0x60] sm:$0xff]
  %v1880 = vld [vmem:[%s1866 + $0x68] sm:$0xff]
  %v1881 = vld [vmem:[%s1866 + $0x70] sm:$0xff]
  %v1882 = vld [vmem:[%s1866 + $0x78] sm:$0xff]
  %v1883 = vld [vmem:[%s1866 + $0x80] sm:$0xff]
  %v1884 = vld [vmem:[%s1866 + $0x88] sm:$0xff]
  %v1885 = vld [vmem:[%s1866 + $0x90] sm:$0x3f]
  %v1886 = vld [vmem:[%s1866 + $0x98] sm:$0x3f]
  %v1888 = vrot.slane %v1481, 3
  %v1889 = vrot.slane %v1486, 3
  %v1890 = vsel %vm557, %v1888, %v1889
  %v1891 = vrot.slane %v1491, 3
  %v1892 = vsel %vm557, %v1889, %v1891
  %v1893 = vrot.slane %v1496, 3
  %v1894 = vsel %vm557, %v1891, %v1893
  %v1895 = vsel %vm1548, %v1890, 0
  %v1897 = vsel %vm1548, %v1892, 0
  %v1899 = vsel %vm1548, %v1894, 0
  %v1902 = vsel %vm381, %v1885, 0
  %v1905 = vsel %vm381, %v1886, 0
  %1907 = vmatprep.subr.mxu0 0.0
  %1908 = vmatpush1.msra.mxu0 0.0
  %1909 = vmatprep.subr.mxu0 0.0
  %1910 = vmatpush1.msra.mxu0 0.0
  %1911 = vmatprep.subr.mxu0 0.0
  %1912 = vmatpush1.msra.mxu0 0.0
  %1913 = vmatprep.subr.mxu0 0.0
  %1914 = vmatpush1.msra.mxu0 0.0
  %1915 = vmatprep.subr.mxu0 0.0
  %1916 = vmatpush1.msra.mxu0 0.0
  %1917 = vmatprep.subr.mxu0 0.0
  %1918 = vmatpush1.msra.mxu0 0.0
  %1919 = vmatprep.subr.mxu0 %v1905
  %1920 = vmatpush1.msra.mxu0 %v1902
  %1921 = vmatprep.subr.mxu0 %v1884
  %1922 = vmatpush1.msra.mxu0 %v1883
  %1923 = vmatprep.subr.mxu0 %v1882
  %1924 = vmatpush1.msra.mxu0 %v1881
  %1925 = vmatprep.subr.mxu0 %v1880
  %1926 = vmatpush1.msra.mxu0 %v1879
  %1927 = vmatprep.subr.mxu0 %v1878
  %1928 = vmatpush1.msra.mxu0 %v1877
  %1929 = vmatprep.subr.mxu0 %v1876
  %1930 = vmatpush1.msra.mxu0 %v1875
  %1931 = vmatprep.subr.mxu0 %v1874
  %1932 = vmatpush1.msra.mxu0 %v1873
  %1933 = vmatprep.subr.mxu0 %v1872
  %1934 = vmatpush1.msra.mxu0 %v1871
  %1935 = vmatprep.subr.mxu0 %v1870
  %1936 = vmatpush1.msra.mxu0 %v1869
  %1937 = vmatprep.subr.mxu0 %v1868
  %1938 = vmatpush1.msra.mxu0 %v1867
  %1939 = vmatprep.subr.mxu0 0.0
  %1940 = vmatpush2.msra.mxu0 0.0
  %1941 = vmatprep.subr.mxu0 0.0
  %1942 = vmatpush2.msra.mxu0 0.0
  %1943 = vmatprep.subr.mxu0 0.0
  %1944 = vmatpush2.msra.mxu0 0.0
  %1945 = vmatprep.subr.mxu0 0.0
  %1946 = vmatpush2.msra.mxu0 0.0
  %1947 = vmatprep.subr.mxu0 0.0
  %1948 = vmatpush2.msra.mxu0 0.0
  %1949 = vmatprep.subr.mxu0 0.0
  %1950 = vmatpush2.msra.mxu0 0.0
  %1951 = vmatprep.subr.mxu0 0.0
  %1952 = vmatpush2.msra.mxu0 0.0
  %1953 = vmatprep.subr.mxu0 0.0
  %1954 = vmatpush2.msra.mxu0 0.0
  %1955 = vmatprep.subr.mxu0 0.0
  %1956 = vmatpush2.msra.mxu0 0.0
  %1957 = vmatprep.subr.mxu0 0.0
  %1958 = vmatpush2.msra.mxu0 0.0
  %1959 = vmatprep.subr.mxu0 0.0
  %1960 = vmatpush2.msra.mxu0 0.0
  %1961 = vmatprep.subr.mxu0 0.0
  %1962 = vmatpush2.msra.mxu0 0.0
  %1963 = vmatprep.subr.mxu0 0.0
  %1964 = vmatpush2.msra.mxu0 0.0
  %1965 = vmatprep.subr.mxu0 0.0
  %1966 = vmatpush2.msra.mxu0 0.0
  %1967 = vmatprep.subr.mxu0 0.0
  %1968 = vmatpush2.msra.mxu0 0.0
  %1969 = vmatprep.subr.mxu0 0.0
  %1970 = vmatpush2.msra.mxu0 0.0
  %1971 = vmatprep.mubr.f32.mxu0 0.0
  %1972 = vmatmul.mubr.f32.gmra.mxu0 %v1895
  %v1973 = vpop.f32.mrf.mxu0
  %v1974 = vadd.f32 0.0, %v1973
  %v1975 = vpop.f32.mrf.mxu0
  %v1976 = vadd.f32 0.0, %v1975
  %1977 = vmatprep.mubr.f32.mxu0 0.0
  %1978 = vmatmul.mubr.f32.gmra.mxu0 %v1897
  %v1979 = vpop.f32.mrf.mxu0
  %v1980 = vadd.f32 0.0, %v1979
  %v1981 = vpop.f32.mrf.mxu0
  %v1982 = vadd.f32 0.0, %v1981
  %1983 = vmatprep.mubr.f32.mxu0 0.0
  %1984 = vmatmul.mubr.f32.gmra.mxu0 %v1899
  %v1985 = vpop.f32.mrf.mxu0
  %v1986 = vadd.f32 0.0, %v1985
  %v1987 = vpop.f32.mrf.mxu0
  %v1988 = vadd.f32 0.0, %v1987
  %1989 = vdwg.mxu0
  %v1990 = vadd.f32 %v1860, %v1974
  %v1991 = vadd.f32 %v1861, %v1976
  %v1992 = vadd.f32 %v1862, %v1980
  %v1993 = vadd.f32 %v1863, %v1982
  %v1994 = vadd.f32 %v1864, %v1986
  %v1995 = vadd.f32 %v1865, %v1988
  %s1996 = scalar_lea.vmem %s5, 640
  %v1997 = vld [vmem:[%s1996] sm:$0xff]
  %v1998 = vld [vmem:[%s1996 + $0x8] sm:$0xff]
  %v1999 = vld [vmem:[%s1996 + $0x10] sm:$0xff]
  %v2000 = vld [vmem:[%s1996 + $0x18] sm:$0xff]
  %v2001 = vld [vmem:[%s1996 + $0x20] sm:$0xff]
  %v2002 = vld [vmem:[%s1996 + $0x28] sm:$0xff]
  %v2003 = vld [vmem:[%s1996 + $0x30] sm:$0xff]
  %v2004 = vld [vmem:[%s1996 + $0x38] sm:$0xff]
  %v2005 = vld [vmem:[%s1996 + $0x40] sm:$0xff]
  %v2006 = vld [vmem:[%s1996 + $0x48] sm:$0xff]
  %v2007 = vld [vmem:[%s1996 + $0x50] sm:$0xff]
  %v2008 = vld [vmem:[%s1996 + $0x58] sm:$0xff]
  %v2009 = vld [vmem:[%s1996 + $0x60] sm:$0xff]
  %v2010 = vld [vmem:[%s1996 + $0x68] sm:$0xff]
  %v2011 = vld [vmem:[%s1996 + $0x70] sm:$0xff]
  %v2012 = vld [vmem:[%s1996 + $0x78] sm:$0xff]
  %v2013 = vld [vmem:[%s1996 + $0x80] sm:$0xff]
  %v2014 = vld [vmem:[%s1996 + $0x88] sm:$0xff]
  %v2015 = vld [vmem:[%s1996 + $0x90] sm:$0x3f]
  %v2016 = vld [vmem:[%s1996 + $0x98] sm:$0x3f]
  %v2017 = vrot.slane %v1481, 4
  %v2018 = vrot.slane %v1486, 4
  %v2019 = vsel %vm733, %v2017, %v2018
  %v2020 = vrot.slane %v1491, 4
  %v2021 = vsel %vm733, %v2018, %v2020
  %v2022 = vrot.slane %v1496, 4
  %v2023 = vsel %vm733, %v2020, %v2022
  %v2024 = vsel %vm1548, %v2019, 0
  %v2026 = vsel %vm1548, %v2021, 0
  %v2028 = vsel %vm1548, %v2023, 0
  %v2031 = vsel %vm381, %v2015, 0
  %v2034 = vsel %vm381, %v2016, 0
  %2036 = vmatprep.subr.mxu0 0.0
  %2037 = vmatpush1.msra.mxu0 0.0
  %2038 = vmatprep.subr.mxu0 0.0
  %2039 = vmatpush1.msra.mxu0 0.0
  %2040 = vmatprep.subr.mxu0 0.0
  %2041 = vmatpush1.msra.mxu0 0.0
  %2042 = vmatprep.subr.mxu0 0.0
  %2043 = vmatpush1.msra.mxu0 0.0
  %2044 = vmatprep.subr.mxu0 0.0
  %2045 = vmatpush1.msra.mxu0 0.0
  %2046 = vmatprep.subr.mxu0 0.0
  %2047 = vmatpush1.msra.mxu0 0.0
  %2048 = vmatprep.subr.mxu0 %v2034
  %2049 = vmatpush1.msra.mxu0 %v2031
  %2050 = vmatprep.subr.mxu0 %v2014
  %2051 = vmatpush1.msra.mxu0 %v2013
  %2052 = vmatprep.subr.mxu0 %v2012
  %2053 = vmatpush1.msra.mxu0 %v2011
  %2054 = vmatprep.subr.mxu0 %v2010
  %2055 = vmatpush1.msra.mxu0 %v2009
  %2056 = vmatprep.subr.mxu0 %v2008
  %2057 = vmatpush1.msra.mxu0 %v2007
  %2058 = vmatprep.subr.mxu0 %v2006
  %2059 = vmatpush1.msra.mxu0 %v2005
  %2060 = vmatprep.subr.mxu0 %v2004
  %2061 = vmatpush1.msra.mxu0 %v2003
  %2062 = vmatprep.subr.mxu0 %v2002
  %2063 = vmatpush1.msra.mxu0 %v2001
  %2064 = vmatprep.subr.mxu0 %v2000
  %2065 = vmatpush1.msra.mxu0 %v1999
  %2066 = vmatprep.subr.mxu0 %v1998
  %2067 = vmatpush1.msra.mxu0 %v1997
  %2068 = vmatprep.subr.mxu0 0.0
  %2069 = vmatpush2.msra.mxu0 0.0
  %2070 = vmatprep.subr.mxu0 0.0
  %2071 = vmatpush2.msra.mxu0 0.0
  %2072 = vmatprep.subr.mxu0 0.0
  %2073 = vmatpush2.msra.mxu0 0.0
  %2074 = vmatprep.subr.mxu0 0.0
  %2075 = vmatpush2.msra.mxu0 0.0
  %2076 = vmatprep.subr.mxu0 0.0
  %2077 = vmatpush2.msra.mxu0 0.0
  %2078 = vmatprep.subr.mxu0 0.0
  %2079 = vmatpush2.msra.mxu0 0.0
  %2080 = vmatprep.subr.mxu0 0.0
  %2081 = vmatpush2.msra.mxu0 0.0
  %2082 = vmatprep.subr.mxu0 0.0
  %2083 = vmatpush2.msra.mxu0 0.0
  %2084 = vmatprep.subr.mxu0 0.0
  %2085 = vmatpush2.msra.mxu0 0.0
  %2086 = vmatprep.subr.mxu0 0.0
  %2087 = vmatpush2.msra.mxu0 0.0
  %2088 = vmatprep.subr.mxu0 0.0
  %2089 = vmatpush2.msra.mxu0 0.0
  %2090 = vmatprep.subr.mxu0 0.0
  %2091 = vmatpush2.msra.mxu0 0.0
  %2092 = vmatprep.subr.mxu0 0.0
  %2093 = vmatpush2.msra.mxu0 0.0
  %2094 = vmatprep.subr.mxu0 0.0
  %2095 = vmatpush2.msra.mxu0 0.0
  %2096 = vmatprep.subr.mxu0 0.0
  %2097 = vmatpush2.msra.mxu0 0.0
  %2098 = vmatprep.subr.mxu0 0.0
  %2099 = vmatpush2.msra.mxu0 0.0
  %2100 = vmatprep.mubr.f32.mxu0 0.0
  %2101 = vmatmul.mubr.f32.gmra.mxu0 %v2024
  %v2102 = vpop.f32.mrf.mxu0
  %v2103 = vadd.f32 0.0, %v2102
  %v2104 = vpop.f32.mrf.mxu0
  %v2105 = vadd.f32 0.0, %v2104
  %2106 = vmatprep.mubr.f32.mxu0 0.0
  %2107 = vmatmul.mubr.f32.gmra.mxu0 %v2026
  %v2108 = vpop.f32.mrf.mxu0
  %v2109 = vadd.f32 0.0, %v2108
  %v2110 = vpop.f32.mrf.mxu0
  %v2111 = vadd.f32 0.0, %v2110
  %2112 = vmatprep.mubr.f32.mxu0 0.0
  %2113 = vmatmul.mubr.f32.gmra.mxu0 %v2028
  %v2114 = vpop.f32.mrf.mxu0
  %v2115 = vadd.f32 0.0, %v2114
  %v2116 = vpop.f32.mrf.mxu0
  %v2117 = vadd.f32 0.0, %v2116
  %2118 = vdwg.mxu0
  %v2119 = vadd.f32 %v1990, %v2103
  %v2120 = vadd.f32 %v1991, %v2105
  %v2121 = vadd.f32 %v1992, %v2109
  %v2122 = vadd.f32 %v1993, %v2111
  %v2123 = vadd.f32 %v1994, %v2115
  %v2124 = vadd.f32 %v1995, %v2117
  %v2125 = vld [vmem:[%s6] sm:$0x3]
  %v2127 = vlaneseq
  %v2128 = vshrl.u32 %v2127, 7
  %v2129 = vsub.s32 0, %v2128
  %v2130 = vrot.slane %v2125, %v2129
  %v2131 = vlaneseq
  %v2132 = vshrl.u32 %v2131, 7
  %v2133 = vsub.s32 1, %v2132
  %v2134 = vrot.slane %v2125, %v2133
  %v2137 = vadd.f32 %v2119, %v2130
  %v2138 = vadd.f32 %v2120, %v2134
  %v2139 = vadd.f32 %v2121, %v2130
  %v2140 = vadd.f32 %v2122, %v2134
  %v2141 = vadd.f32 %v2123, %v2130
  %v2142 = vadd.f32 %v2124, %v2134
  %v2143 = vand.u32 2147483647, %v2137
  %v2144 = vand.u32 2147483647, %v2138
  %v2145 = vand.u32 2147483647, %v2139
  %v2146 = vand.u32 2147483647, %v2140
  %v2147 = vand.u32 2147483647, %v2141
  %v2148 = vand.u32 2147483647, %v2142
  %v2149 = vsub.f32 0.0, %v2143
  %v2150 = vsub.f32 0.0, %v2144
  %v2151 = vsub.f32 0.0, %v2145
  %v2152 = vsub.f32 0.0, %v2146
  %v2153 = vsub.f32 0.0, %v2147
  %v2154 = vsub.f32 0.0, %v2148
  %v2155 = vmul.f32 %v2149, 1.442695
  %v2156 = vpow.pop %v2155
  %v2157 = vmul.f32 %v2150, 1.442695
  %v2158 = vpow.pop %v2157
  %v2159 = vmul.f32 %v2151, 1.442695
  %v2160 = vpow.pop %v2159
  %v2161 = vmul.f32 %v2152, 1.442695
  %v2162 = vpow.pop %v2161
  %v2163 = vmul.f32 %v2153, 1.442695
  %v2164 = vpow.pop %v2163
  %v2165 = vmul.f32 %v2154, 1.442695
  %v2166 = vpow.pop %v2165
  %v2167 = vadd.f32 %v2156, 1.0
  %v2168 = vadd.f32 %v2158, 1.0
  %v2169 = vadd.f32 %v2160, 1.0
  %v2170 = vadd.f32 %v2162, 1.0
  %v2171 = vadd.f32 %v2164, 1.0
  %v2172 = vadd.f32 %v2166, 1.0
  %v2173 = vrcp.pop %v2167
  %v2174 = vrcp.pop %v2168
  %v2175 = vrcp.pop %v2169
  %v2176 = vrcp.pop %v2170
  %v2177 = vrcp.pop %v2171
  %v2178 = vrcp.pop %v2172
  %vm2179 = vcmp.ge.f32.partialorder %v2137, 0.0
  %vm2180 = vcmp.ge.f32.partialorder %v2138, 0.0
  %vm2181 = vcmp.ge.f32.partialorder %v2139, 0.0
  %vm2182 = vcmp.ge.f32.partialorder %v2140, 0.0
  %vm2183 = vcmp.ge.f32.partialorder %v2141, 0.0
  %vm2184 = vcmp.ge.f32.partialorder %v2142, 0.0
  %v2185 = vsub.f32 1.0, %v2173
  %v2186 = vsub.f32 1.0, %v2174
  %v2187 = vsub.f32 1.0, %v2175
  %v2188 = vsub.f32 1.0, %v2176
  %v2189 = vsub.f32 1.0, %v2177
  %v2190 = vsub.f32 1.0, %v2178
  %v2191 = vsel %vm2179, %v2173, %v2185
  %v2192 = vsel %vm2180, %v2174, %v2186
  %v2193 = vsel %vm2181, %v2175, %v2187
  %v2194 = vsel %vm2182, %v2176, %v2188
  %v2195 = vsel %vm2183, %v2177, %v2189
  %v2196 = vsel %vm2184, %v2178, %v2190
  %2203 = vrot.lane.b32.xlu0 %v2191, 127
  %v2204 = vpop.permute.xlu0 %2203
  %2205 = vrot.lane.b32.xlu0 %v2192, 127
  %v2206 = vpop.permute.xlu0 %2205
  %2207 = vrot.lane.b32.xlu0 %v2193, 127
  %v2208 = vpop.permute.xlu0 %2207
  %2209 = vrot.lane.b32.xlu0 %v2194, 127
  %v2210 = vpop.permute.xlu0 %2209
  %2211 = vrot.lane.b32.xlu0 %v2195, 127
  %v2212 = vpop.permute.xlu0 %2211
  %2213 = vrot.lane.b32.xlu0 %v2196, 127
  %v2214 = vpop.permute.xlu0 %2213
  %v2215 = vsel %vm1120, %v2204, %v2206
  %v2216 = vsel %vm1120, %v2208, %v2210
  %v2217 = vsel %vm1120, %v2212, %v2214
  %v2224 = vmax.f32 %v2191, %v2215
  %v2225 = vmax.f32 %v2192, %v2206
  %v2226 = vmax.f32 %v2193, %v2216
  %v2227 = vmax.f32 %v2194, %v2210
  %v2228 = vmax.f32 %v2195, %v2217
  %v2229 = vmax.f32 %v2196, %v2214
  %v2236 = vrot.slane %v2224, 1
  %v2237 = vrot.slane %v2226, 1
  %v2238 = vsel %vm85, %v2236, %v2237
  %v2239 = vrot.slane %v2225, 1
  %v2240 = vrot.slane %v2227, 1
  %v2241 = vsel %vm85, %v2239, %v2240
  %v2242 = vrot.slane %v2228, 1
  %v2243 = vsel %vm85, %v2237, %v2242
  %v2244 = vrot.slane %v2229, 1
  %v2245 = vsel %vm85, %v2240, %v2244
  %v2252 = vmax.f32 %v2224, %v2238
  %v2253 = vmax.f32 %v2225, %v2241
  %v2254 = vmax.f32 %v2226, %v2243
  %v2255 = vmax.f32 %v2227, %v2245
  %v2256 = vmax.f32 %v2228, %v2242
  %v2257 = vmax.f32 %v2229, %v2244
  %v2258 = vld [vmem:[%s7] sm:$0xff]
  %v2259 = vld [vmem:[%s8] sm:$0xff]
  %v2260 = vld [vmem:[%s8 + $0x8] sm:$0xff]
  %v2261 = vld [vmem:[%s8 + $0x10] sm:$0xff]
  %v2262 = vld [vmem:[%s8 + $0x18] sm:$0xff]
  %v2263 = vld [vmem:[%s8 + $0x20] sm:$0xff]
  %v2264 = vld [vmem:[%s8 + $0x28] sm:$0xff]
  %v2265 = vld [vmem:[%s8 + $0x30] sm:$0xff]
  %v2266 = vld [vmem:[%s8 + $0x38] sm:$0xff]
  %v2267 = vld [vmem:[%s8 + $0x40] sm:$0xff]
  %v2268 = vld [vmem:[%s8 + $0x48] sm:$0xff]
  %v2269 = vld [vmem:[%s8 + $0x50] sm:$0xff]
  %v2270 = vld [vmem:[%s8 + $0x58] sm:$0xff]
  %v2271 = vld [vmem:[%s8 + $0x60] sm:$0xff]
  %v2272 = vld [vmem:[%s8 + $0x68] sm:$0xff]
  %v2273 = vld [vmem:[%s8 + $0x70] sm:$0xff]
  %v2274 = vld [vmem:[%s8 + $0x78] sm:$0xff]
  %v2275 = vld [vmem:[%s8 + $0x80] sm:$0xff]
  %v2276 = vld [vmem:[%s8 + $0x88] sm:$0x7f]
  %vm2277 = vcmask 121856
  %v2279 = vsel %vm2277, %v2253, 0
  %v2282 = vsel %vm2277, %v2255, 0
  %v2285 = vsel %vm2277, %v2257, 0
  %v2288 = vsel %vm85, %v2276, 0
  %2290 = vmatprep.subr.mxu0 0.0
  %2291 = vmatpush1.msra.mxu0 %v2274
  %2292 = vmatprep.subr.mxu0 0.0
  %2293 = vmatpush1.msra.mxu0 %v2273
  %2294 = vmatprep.subr.mxu0 0.0
  %2295 = vmatpush1.msra.mxu0 %v2272
  %2296 = vmatprep.subr.mxu0 0.0
  %2297 = vmatpush1.msra.mxu0 %v2271
  %2298 = vmatprep.subr.mxu0 0.0
  %2299 = vmatpush1.msra.mxu0 %v2270
  %2300 = vmatprep.subr.mxu0 0.0
  %2301 = vmatpush1.msra.mxu0 %v2269
  %2302 = vmatprep.subr.mxu0 0.0
  %2303 = vmatpush1.msra.mxu0 %v2268
  %2304 = vmatprep.subr.mxu0 0.0
  %2305 = vmatpush1.msra.mxu0 %v2267
  %2306 = vmatprep.subr.mxu0 0.0
  %2307 = vmatpush1.msra.mxu0 %v2266
  %2308 = vmatprep.subr.mxu0 0.0
  %2309 = vmatpush1.msra.mxu0 %v2265
  %2310 = vmatprep.subr.mxu0 0.0
  %2311 = vmatpush1.msra.mxu0 %v2264
  %2312 = vmatprep.subr.mxu0 0.0
  %2313 = vmatpush1.msra.mxu0 %v2263
  %2314 = vmatprep.subr.mxu0 0.0
  %2315 = vmatpush1.msra.mxu0 %v2262
  %2316 = vmatprep.subr.mxu0 0.0
  %2317 = vmatpush1.msra.mxu0 %v2261
  %2318 = vmatprep.subr.mxu0 0.0
  %2319 = vmatpush1.msra.mxu0 %v2260
  %2320 = vmatprep.subr.mxu0 0.0
  %2321 = vmatpush1.msra.mxu0 %v2259
  %2322 = vmatprep.subr.mxu0 0.0
  %2323 = vmatpush2.msra.mxu0 0.0
  %2324 = vmatprep.subr.mxu0 0.0
  %2325 = vmatpush2.msra.mxu0 0.0
  %2326 = vmatprep.subr.mxu0 0.0
  %2327 = vmatpush2.msra.mxu0 0.0
  %2328 = vmatprep.subr.mxu0 0.0
  %2329 = vmatpush2.msra.mxu0 0.0
  %2330 = vmatprep.subr.mxu0 0.0
  %2331 = vmatpush2.msra.mxu0 0.0
  %2332 = vmatprep.subr.mxu0 0.0
  %2333 = vmatpush2.msra.mxu0 0.0
  %2334 = vmatprep.subr.mxu0 0.0
  %2335 = vmatpush2.msra.mxu0 0.0
  %2336 = vmatprep.subr.mxu0 0.0
  %2337 = vmatpush2.msra.mxu0 0.0
  %2338 = vmatprep.subr.mxu0 0.0
  %2339 = vmatpush2.msra.mxu0 0.0
  %2340 = vmatprep.subr.mxu0 0.0
  %2341 = vmatpush2.msra.mxu0 0.0
  %2342 = vmatprep.subr.mxu0 0.0
  %2343 = vmatpush2.msra.mxu0 0.0
  %2344 = vmatprep.subr.mxu0 0.0
  %2345 = vmatpush2.msra.mxu0 0.0
  %2346 = vmatprep.subr.mxu0 0.0
  %2347 = vmatpush2.msra.mxu0 0.0
  %2348 = vmatprep.subr.mxu0 0.0
  %2349 = vmatpush2.msra.mxu0 0.0
  %2350 = vmatprep.subr.mxu0 0.0
  %2351 = vmatpush2.msra.mxu0 %v2288
  %2352 = vmatprep.subr.mxu0 0.0
  %2353 = vmatpush2.msra.mxu0 %v2275
  %2354 = vmatprep.mubr.f32.mxu0 %v2279
  %2355 = vmatmul.mubr.f32.gmra.mxu0 %v2252
  %v2356 = vpop.f32.mrf.mxu0
  %v2357 = vadd.f32 0.0, %v2356
  %v2358 = vpop.f32.mrf.mxu0
  %2359 = vmatprep.mubr.f32.mxu0 %v2282
  %2360 = vmatmul.mubr.f32.gmra.mxu0 %v2254
  %v2361 = vpop.f32.mrf.mxu0
  %v2362 = vadd.f32 0.0, %v2361
  %v2363 = vpop.f32.mrf.mxu0
  %2364 = vmatprep.mubr.f32.mxu0 %v2285
  %2365 = vmatmul.mubr.f32.gmra.mxu0 %v2256
  %v2366 = vpop.f32.mrf.mxu0
  %v2367 = vadd.f32 0.0, %v2366
  %v2368 = vpop.f32.mrf.mxu0
  %2369 = vdwg.mxu0
  %vm2370 = vcmask 171008
  %v2372 = vsel %vm2370, %v2258, 0
  %v2375 = vsel %vm557, %v2367, 0
  %2377 = vmatprep.subr.mxu0 0.0
  %2378 = vmatpush1.msra.mxu0 0.0
  %2379 = vmatprep.subr.mxu0 0.0
  %2380 = vmatpush1.msra.mxu0 0.0
  %2381 = vmatprep.subr.mxu0 0.0
  %2382 = vmatpush1.msra.mxu0 0.0
  %2383 = vmatprep.subr.mxu0 0.0
  %2384 = vmatpush1.msra.mxu0 0.0
  %2385 = vmatprep.subr.mxu0 0.0
  %2386 = vmatpush1.msra.mxu0 0.0
  %2387 = vmatprep.subr.mxu0 0.0
  %2388 = vmatpush1.msra.mxu0 0.0
  %2389 = vmatprep.subr.mxu0 0.0
  %2390 = vmatpush1.msra.mxu0 0.0
  %2391 = vmatprep.subr.mxu0 0.0
  %2392 = vmatpush1.msra.mxu0 0.0
  %2393 = vmatprep.subr.mxu0 0.0
  %2394 = vmatpush1.msra.mxu0 0.0
  %2395 = vmatprep.subr.mxu0 0.0
  %2396 = vmatpush1.msra.mxu0 0.0
  %2397 = vmatprep.subr.mxu0 0.0
  %2398 = vmatpush1.msra.mxu0 0.0
  %2399 = vmatprep.subr.mxu0 0.0
  %2400 = vmatpush1.msra.mxu0 0.0
  %2401 = vmatprep.subr.mxu0 0.0
  %2402 = vmatpush1.msra.mxu0 0.0
  %2403 = vmatprep.subr.mxu0 0.0
  %2404 = vmatpush1.msra.mxu0 %v2375
  %2405 = vmatprep.subr.mxu0 0.0
  %2406 = vmatpush1.msra.mxu0 %v2362
  %2407 = vmatprep.subr.mxu0 0.0
  %2408 = vmatpush1.msra.mxu0 %v2357
  %2409 = vmatprep.subr.mxu0 0.0
  %2410 = vmatpush2.msra.mxu0 0.0
  %2411 = vmatprep.subr.mxu0 0.0
  %2412 = vmatpush2.msra.mxu0 0.0
  %2413 = vmatprep.subr.mxu0 0.0
  %2414 = vmatpush2.msra.mxu0 0.0
  %2415 = vmatprep.subr.mxu0 0.0
  %2416 = vmatpush2.msra.mxu0 0.0
  %2417 = vmatprep.subr.mxu0 0.0
  %2418 = vmatpush2.msra.mxu0 0.0
  %2419 = vmatprep.subr.mxu0 0.0
  %2420 = vmatpush2.msra.mxu0 0.0
  %2421 = vmatprep.subr.mxu0 0.0
  %2422 = vmatpush2.msra.mxu0 0.0
  %2423 = vmatprep.subr.mxu0 0.0
  %2424 = vmatpush2.msra.mxu0 0.0
  %2425 = vmatprep.subr.mxu0 0.0
  %2426 = vmatpush2.msra.mxu0 0.0
  %2427 = vmatprep.subr.mxu0 0.0
  %2428 = vmatpush2.msra.mxu0 0.0
  %2429 = vmatprep.subr.mxu0 0.0
  %2430 = vmatpush2.msra.mxu0 0.0
  %2431 = vmatprep.subr.mxu0 0.0
  %2432 = vmatpush2.msra.mxu0 0.0
  %2433 = vmatprep.subr.mxu0 0.0
  %2434 = vmatpush2.msra.mxu0 0.0
  %2435 = vmatprep.subr.mxu0 0.0
  %2436 = vmatpush2.msra.mxu0 0.0
  %2437 = vmatprep.subr.mxu0 0.0
  %2438 = vmatpush2.msra.mxu0 0.0
  %2439 = vmatprep.subr.mxu0 0.0
  %2440 = vmatpush2.msra.mxu0 0.0
  %2441 = vmatprep.mubr.f32.mxu0 0.0
  %2442 = vmatmul.mubr.f32.gmra.mxu0 %v2372
  %v2443 = vpop.f32.mrf.mxu0
  %v2444 = vadd.f32 0.0, %v2443
  %v2445 = vpop.f32.mrf.mxu0
  %2446 = vdwg.mxu0
  %v2447 = vld [vmem:[%s10] sm:$0x1]
  %v2448 = vld [vmem:[%s9] sm:$0xff]
  %v2449 = vld [vmem:[%s9 + $0x8] sm:$0xff]
  %v2450 = vld [vmem:[%s9 + $0x10] sm:$0xff]
  %v2451 = vld [vmem:[%s9 + $0x18] sm:$0xff]
  %v2452 = vld [vmem:[%s9 + $0x20] sm:$0xff]
  %v2453 = vld [vmem:[%s9 + $0x28] sm:$0xff]
  %v2454 = vld [vmem:[%s9 + $0x30] sm:$0xff]
  %v2455 = vld [vmem:[%s9 + $0x38] sm:$0xff]
  %vm2456 = vcmask 523264
  %v2458 = vsel %vm2456, %v2444, 0
  %2460 = vmatprep.subr.mxu0 0.0
  %2461 = vmatpush1.msra.mxu0 0.0
  %2462 = vmatprep.subr.mxu0 0.0
  %2463 = vmatpush1.msra.mxu0 0.0
  %2464 = vmatprep.subr.mxu0 0.0
  %2465 = vmatpush1.msra.mxu0 0.0
  %2466 = vmatprep.subr.mxu0 0.0
  %2467 = vmatpush1.msra.mxu0 0.0
  %2468 = vmatprep.subr.mxu0 0.0
  %2469 = vmatpush1.msra.mxu0 0.0
  %2470 = vmatprep.subr.mxu0 0.0
  %2471 = vmatpush1.msra.mxu0 0.0
  %2472 = vmatprep.subr.mxu0 0.0
  %2473 = vmatpush1.msra.mxu0 0.0
  %2474 = vmatprep.subr.mxu0 0.0
  %2475 = vmatpush1.msra.mxu0 0.0
  %2476 = vmatprep.subr.mxu0 0.0
  %2477 = vmatpush1.msra.mxu0 %v2455
  %2478 = vmatprep.subr.mxu0 0.0
  %2479 = vmatpush1.msra.mxu0 %v2454
  %2480 = vmatprep.subr.mxu0 0.0
  %2481 = vmatpush1.msra.mxu0 %v2453
  %2482 = vmatprep.subr.mxu0 0.0
  %2483 = vmatpush1.msra.mxu0 %v2452
  %2484 = vmatprep.subr.mxu0 0.0
  %2485 = vmatpush1.msra.mxu0 %v2451
  %2486 = vmatprep.subr.mxu0 0.0
  %2487 = vmatpush1.msra.mxu0 %v2450
  %2488 = vmatprep.subr.mxu0 0.0
  %2489 = vmatpush1.msra.mxu0 %v2449
  %2490 = vmatprep.subr.mxu0 0.0
  %2491 = vmatpush1.msra.mxu0 %v2448
  %2492 = vmatprep.subr.mxu0 0.0
  %2493 = vmatpush2.msra.mxu0 0.0
  %2494 = vmatprep.subr.mxu0 0.0
  %2495 = vmatpush2.msra.mxu0 0.0
  %2496 = vmatprep.subr.mxu0 0.0
  %2497 = vmatpush2.msra.mxu0 0.0
  %2498 = vmatprep.subr.mxu0 0.0
  %2499 = vmatpush2.msra.mxu0 0.0
  %2500 = vmatprep.subr.mxu0 0.0
  %2501 = vmatpush2.msra.mxu0 0.0
  %2502 = vmatprep.subr.mxu0 0.0
  %2503 = vmatpush2.msra.mxu0 0.0
  %2504 = vmatprep.subr.mxu0 0.0
  %2505 = vmatpush2.msra.mxu0 0.0
  %2506 = vmatprep.subr.mxu0 0.0
  %2507 = vmatpush2.msra.mxu0 0.0
  %2508 = vmatprep.subr.mxu0 0.0
  %2509 = vmatpush2.msra.mxu0 0.0
  %2510 = vmatprep.subr.mxu0 0.0
  %2511 = vmatpush2.msra.mxu0 0.0
  %2512 = vmatprep.subr.mxu0 0.0
  %2513 = vmatpush2.msra.mxu0 0.0
  %2514 = vmatprep.subr.mxu0 0.0
  %2515 = vmatpush2.msra.mxu0 0.0
  %2516 = vmatprep.subr.mxu0 0.0
  %2517 = vmatpush2.msra.mxu0 0.0
  %2518 = vmatprep.subr.mxu0 0.0
  %2519 = vmatpush2.msra.mxu0 0.0
  %2520 = vmatprep.subr.mxu0 0.0
  %2521 = vmatpush2.msra.mxu0 0.0
  %2522 = vmatprep.subr.mxu0 0.0
  %2523 = vmatpush2.msra.mxu0 0.0
  %2524 = vmatprep.mubr.f32.mxu0 0.0
  %2525 = vmatmul.mubr.f32.gmra.mxu0 %v2458
  %v2526 = vpop.f32.mrf.mxu0
  %v2527 = vadd.f32 0.0, %v2526
  %v2528 = vpop.f32.mrf.mxu0
  %2529 = vdwg.mxu0
  %v2531 = vlaneseq
  %v2532 = vshrl.u32 %v2531, 7
  %v2533 = vsub.s32 0, %v2532
  %v2534 = vrot.slane %v2447, %v2533
  %v2536 = vadd.f32 %v2534, %v2527
  %s2537 = scalar_lea.vmem %s9, 64
  %v2538 = vld [vmem:[%s2537] sm:$0xff]
  %v2539 = vld [vmem:[%s2537 + $0x8] sm:$0xff]
  %v2540 = vld [vmem:[%s2537 + $0x10] sm:$0xff]
  %v2541 = vld [vmem:[%s2537 + $0x18] sm:$0xff]
  %v2542 = vld [vmem:[%s2537 + $0x20] sm:$0xff]
  %v2543 = vld [vmem:[%s2537 + $0x28] sm:$0xff]
  %v2544 = vld [vmem:[%s2537 + $0x30] sm:$0xff]
  %v2545 = vld [vmem:[%s2537 + $0x38] sm:$0xff]
  %v2546 = vrot.slane %v2444, 2
  %v2547 = vsel %vm2456, %v2546, 0
  %2549 = vmatprep.subr.mxu0 0.0
  %2550 = vmatpush1.msra.mxu0 0.0
  %2551 = vmatprep.subr.mxu0 0.0
  %2552 = vmatpush1.msra.mxu0 0.0
  %2553 = vmatprep.subr.mxu0 0.0
  %2554 = vmatpush1.msra.mxu0 0.0
  %2555 = vmatprep.subr.mxu0 0.0
  %2556 = vmatpush1.msra.mxu0 0.0
  %2557 = vmatprep.subr.mxu0 0.0
  %2558 = vmatpush1.msra.mxu0 0.0
  %2559 = vmatprep.subr.mxu0 0.0
  %2560 = vmatpush1.msra.mxu0 0.0
  %2561 = vmatprep.subr.mxu0 0.0
  %2562 = vmatpush1.msra.mxu0 0.0
  %2563 = vmatprep.subr.mxu0 0.0
  %2564 = vmatpush1.msra.mxu0 0.0
  %2565 = vmatprep.subr.mxu0 0.0
  %2566 = vmatpush1.msra.mxu0 %v2545
  %2567 = vmatprep.subr.mxu0 0.0
  %2568 = vmatpush1.msra.mxu0 %v2544
  %2569 = vmatprep.subr.mxu0 0.0
  %2570 = vmatpush1.msra.mxu0 %v2543
  %2571 = vmatprep.subr.mxu0 0.0
  %2572 = vmatpush1.msra.mxu0 %v2542
  %2573 = vmatprep.subr.mxu0 0.0
  %2574 = vmatpush1.msra.mxu0 %v2541
  %2575 = vmatprep.subr.mxu0 0.0
  %2576 = vmatpush1.msra.mxu0 %v2540
  %2577 = vmatprep.subr.mxu0 0.0
  %2578 = vmatpush1.msra.mxu0 %v2539
  %2579 = vmatprep.subr.mxu0 0.0
  %2580 = vmatpush1.msra.mxu0 %v2538
  %2581 = vmatprep.subr.mxu0 0.0
  %2582 = vmatpush2.msra.mxu0 0.0
  %2583 = vmatprep.subr.mxu0 0.0
  %2584 = vmatpush2.msra.mxu0 0.0
  %2585 = vmatprep.subr.mxu0 0.0
  %2586 = vmatpush2.msra.mxu0 0.0
  %2587 = vmatprep.subr.mxu0 0.0
  %2588 = vmatpush2.msra.mxu0 0.0
  %2589 = vmatprep.subr.mxu0 0.0
  %2590 = vmatpush2.msra.mxu0 0.0
  %2591 = vmatprep.subr.mxu0 0.0
  %2592 = vmatpush2.msra.mxu0 0.0
  %2593 = vmatprep.subr.mxu0 0.0
  %2594 = vmatpush2.msra.mxu0 0.0
  %2595 = vmatprep.subr.mxu0 0.0
  %2596 = vmatpush2.msra.mxu0 0.0
  %2597 = vmatprep.subr.mxu0 0.0
  %2598 = vmatpush2.msra.mxu0 0.0
  %2599 = vmatprep.subr.mxu0 0.0
  %2600 = vmatpush2.msra.mxu0 0.0
  %2601 = vmatprep.subr.mxu0 0.0
  %2602 = vmatpush2.msra.mxu0 0.0
  %2603 = vmatprep.subr.mxu0 0.0
  %2604 = vmatpush2.msra.mxu0 0.0
  %2605 = vmatprep.subr.mxu0 0.0
  %2606 = vmatpush2.msra.mxu0 0.0
  %2607 = vmatprep.subr.mxu0 0.0
  %2608 = vmatpush2.msra.mxu0 0.0
  %2609 = vmatprep.subr.mxu0 0.0
  %2610 = vmatpush2.msra.mxu0 0.0
  %2611 = vmatprep.subr.mxu0 0.0
  %2612 = vmatpush2.msra.mxu0 0.0
  %2613 = vmatprep.mubr.f32.mxu0 0.0
  %2614 = vmatmul.mubr.f32.gmra.mxu0 %v2547
  %v2615 = vpop.f32.mrf.mxu0
  %v2616 = vadd.f32 0.0, %v2615
  %v2617 = vpop.f32.mrf.mxu0
  %2618 = vdwg.mxu0
  %v2619 = vadd.f32 %v2536, %v2616
  %s2620 = scalar_lea.vmem %s9, 128
  %v2621 = vld [vmem:[%s2620] sm:$0xff]
  %v2622 = vld [vmem:[%s2620 + $0x8] sm:$0xff]
  %v2623 = vld [vmem:[%s2620 + $0x10] sm:$0xff]
  %v2624 = vld [vmem:[%s2620 + $0x18] sm:$0xff]
  %v2625 = vld [vmem:[%s2620 + $0x20] sm:$0xff]
  %v2626 = vld [vmem:[%s2620 + $0x28] sm:$0xff]
  %v2627 = vld [vmem:[%s2620 + $0x30] sm:$0xff]
  %v2628 = vld [vmem:[%s2620 + $0x38] sm:$0xff]
  %v2629 = vrot.slane %v2444, 4
  %v2630 = vsel %vm2456, %v2629, 0
  %2632 = vmatprep.subr.mxu0 0.0
  %2633 = vmatpush1.msra.mxu0 0.0
  %2634 = vmatprep.subr.mxu0 0.0
  %2635 = vmatpush1.msra.mxu0 0.0
  %2636 = vmatprep.subr.mxu0 0.0
  %2637 = vmatpush1.msra.mxu0 0.0
  %2638 = vmatprep.subr.mxu0 0.0
  %2639 = vmatpush1.msra.mxu0 0.0
  %2640 = vmatprep.subr.mxu0 0.0
  %2641 = vmatpush1.msra.mxu0 0.0
  %2642 = vmatprep.subr.mxu0 0.0
  %2643 = vmatpush1.msra.mxu0 0.0
  %2644 = vmatprep.subr.mxu0 0.0
  %2645 = vmatpush1.msra.mxu0 0.0
  %2646 = vmatprep.subr.mxu0 0.0
  %2647 = vmatpush1.msra.mxu0 0.0
  %2648 = vmatprep.subr.mxu0 0.0
  %2649 = vmatpush1.msra.mxu0 %v2628
  %2650 = vmatprep.subr.mxu0 0.0
  %2651 = vmatpush1.msra.mxu0 %v2627
  %2652 = vmatprep.subr.mxu0 0.0
  %2653 = vmatpush1.msra.mxu0 %v2626
  %2654 = vmatprep.subr.mxu0 0.0
  %2655 = vmatpush1.msra.mxu0 %v2625
  %2656 = vmatprep.subr.mxu0 0.0
  %2657 = vmatpush1.msra.mxu0 %v2624
  %2658 = vmatprep.subr.mxu0 0.0
  %2659 = vmatpush1.msra.mxu0 %v2623
  %2660 = vmatprep.subr.mxu0 0.0
  %2661 = vmatpush1.msra.mxu0 %v2622
  %2662 = vmatprep.subr.mxu0 0.0
  %2663 = vmatpush1.msra.mxu0 %v2621
  %2664 = vmatprep.subr.mxu0 0.0
  %2665 = vmatpush2.msra.mxu0 0.0
  %2666 = vmatprep.subr.mxu0 0.0
  %2667 = vmatpush2.msra.mxu0 0.0
  %2668 = vmatprep.subr.mxu0 0.0
  %2669 = vmatpush2.msra.mxu0 0.0
  %2670 = vmatprep.subr.mxu0 0.0
  %2671 = vmatpush2.msra.mxu0 0.0
  %2672 = vmatprep.subr.mxu0 0.0
  %2673 = vmatpush2.msra.mxu0 0.0
  %2674 = vmatprep.subr.mxu0 0.0
  %2675 = vmatpush2.msra.mxu0 0.0
  %2676 = vmatprep.subr.mxu0 0.0
  %2677 = vmatpush2.msra.mxu0 0.0
  %2678 = vmatprep.subr.mxu0 0.0
  %2679 = vmatpush2.msra.mxu0 0.0
  %2680 = vmatprep.subr.mxu0 0.0
  %2681 = vmatpush2.msra.mxu0 0.0
  %2682 = vmatprep.subr.mxu0 0.0
  %2683 = vmatpush2.msra.mxu0 0.0
  %2684 = vmatprep.subr.mxu0 0.0
  %2685 = vmatpush2.msra.mxu0 0.0
  %2686 = vmatprep.subr.mxu0 0.0
  %2687 = vmatpush2.msra.mxu0 0.0
  %2688 = vmatprep.subr.mxu0 0.0
  %2689 = vmatpush2.msra.mxu0 0.0
  %2690 = vmatprep.subr.mxu0 0.0
  %2691 = vmatpush2.msra.mxu0 0.0
  %2692 = vmatprep.subr.mxu0 0.0
  %2693 = vmatpush2.msra.mxu0 0.0
  %2694 = vmatprep.subr.mxu0 0.0
  %2695 = vmatpush2.msra.mxu0 0.0
  %2696 = vmatprep.mubr.f32.mxu0 0.0
  %2697 = vmatmul.mubr.f32.gmra.mxu0 %v2630
  %v2698 = vpop.f32.mrf.mxu0
  %v2699 = vadd.f32 0.0, %v2698
  %v2700 = vpop.f32.mrf.mxu0
  %2701 = vdwg.mxu0
  %v2702 = vadd.f32 %v2619, %v2699
  %s2703 = scalar_lea.vmem %s9, 192
  %v2704 = vld [vmem:[%s2703] sm:$0xff]
  %v2705 = vld [vmem:[%s2703 + $0x8] sm:$0xff]
  %v2706 = vld [vmem:[%s2703 + $0x10] sm:$0xff]
  %v2707 = vld [vmem:[%s2703 + $0x18] sm:$0xff]
  %v2708 = vld [vmem:[%s2703 + $0x20] sm:$0xff]
  %v2709 = vld [vmem:[%s2703 + $0x28] sm:$0xff]
  %v2710 = vld [vmem:[%s2703 + $0x30] sm:$0xff]
  %v2711 = vld [vmem:[%s2703 + $0x38] sm:$0xff]
  %v2712 = vrot.slane %v2444, 6
  %v2713 = vsel %vm2456, %v2712, 0
  %2715 = vmatprep.subr.mxu0 0.0
  %2716 = vmatpush1.msra.mxu0 0.0
  %2717 = vmatprep.subr.mxu0 0.0
  %2718 = vmatpush1.msra.mxu0 0.0
  %2719 = vmatprep.subr.mxu0 0.0
  %2720 = vmatpush1.msra.mxu0 0.0
  %2721 = vmatprep.subr.mxu0 0.0
  %2722 = vmatpush1.msra.mxu0 0.0
  %2723 = vmatprep.subr.mxu0 0.0
  %2724 = vmatpush1.msra.mxu0 0.0
  %2725 = vmatprep.subr.mxu0 0.0
  %2726 = vmatpush1.msra.mxu0 0.0
  %2727 = vmatprep.subr.mxu0 0.0
  %2728 = vmatpush1.msra.mxu0 0.0
  %2729 = vmatprep.subr.mxu0 0.0
  %2730 = vmatpush1.msra.mxu0 0.0
  %2731 = vmatprep.subr.mxu0 0.0
  %2732 = vmatpush1.msra.mxu0 %v2711
  %2733 = vmatprep.subr.mxu0 0.0
  %2734 = vmatpush1.msra.mxu0 %v2710
  %2735 = vmatprep.subr.mxu0 0.0
  %2736 = vmatpush1.msra.mxu0 %v2709
  %2737 = vmatprep.subr.mxu0 0.0
  %2738 = vmatpush1.msra.mxu0 %v2708
  %2739 = vmatprep.subr.mxu0 0.0
  %2740 = vmatpush1.msra.mxu0 %v2707
  %2741 = vmatprep.subr.mxu0 0.0
  %2742 = vmatpush1.msra.mxu0 %v2706
  %2743 = vmatprep.subr.mxu0 0.0
  %2744 = vmatpush1.msra.mxu0 %v2705
  %2745 = vmatprep.subr.mxu0 0.0
  %2746 = vmatpush1.msra.mxu0 %v2704
  %2747 = vmatprep.subr.mxu0 0.0
  %2748 = vmatpush2.msra.mxu0 0.0
  %2749 = vmatprep.subr.mxu0 0.0
  %2750 = vmatpush2.msra.mxu0 0.0
  %2751 = vmatprep.subr.mxu0 0.0
  %2752 = vmatpush2.msra.mxu0 0.0
  %2753 = vmatprep.subr.mxu0 0.0
  %2754 = vmatpush2.msra.mxu0 0.0
  %2755 = vmatprep.subr.mxu0 0.0
  %2756 = vmatpush2.msra.mxu0 0.0
  %2757 = vmatprep.subr.mxu0 0.0
  %2758 = vmatpush2.msra.mxu0 0.0
  %2759 = vmatprep.subr.mxu0 0.0
  %2760 = vmatpush2.msra.mxu0 0.0
  %2761 = vmatprep.subr.mxu0 0.0
  %2762 = vmatpush2.msra.mxu0 0.0
  %2763 = vmatprep.subr.mxu0 0.0
  %2764 = vmatpush2.msra.mxu0 0.0
  %2765 = vmatprep.subr.mxu0 0.0
  %2766 = vmatpush2.msra.mxu0 0.0
  %2767 = vmatprep.subr.mxu0 0.0
  %2768 = vmatpush2.msra.mxu0 0.0
  %2769 = vmatprep.subr.mxu0 0.0
  %2770 = vmatpush2.msra.mxu0 0.0
  %2771 = vmatprep.subr.mxu0 0.0
  %2772 = vmatpush2.msra.mxu0 0.0
  %2773 = vmatprep.subr.mxu0 0.0
  %2774 = vmatpush2.msra.mxu0 0.0
  %2775 = vmatprep.subr.mxu0 0.0
  %2776 = vmatpush2.msra.mxu0 0.0
  %2777 = vmatprep.subr.mxu0 0.0
  %2778 = vmatpush2.msra.mxu0 0.0
  %2779 = vmatprep.mubr.f32.mxu0 0.0
  %2780 = vmatmul.mubr.f32.gmra.mxu0 %v2713
  %v2781 = vpop.f32.mrf.mxu0
  %v2782 = vadd.f32 0.0, %v2781
  %v2783 = vpop.f32.mrf.mxu0
  %2784 = vdwg.mxu0
  %v2785 = vadd.f32 %v2702, %v2782
  %v2786 = vld [vmem:[%s11] sm:$0xff]
  %v2787 = vld [vmem:[%s11 + $0x8] sm:$0xff]
  %v2788 = vld [vmem:[%s11 + $0x10] sm:$0xff]
  %v2789 = vld [vmem:[%s11 + $0x18] sm:$0xff]
  %v2790 = vld [vmem:[%s11 + $0x20] sm:$0xff]
  %v2791 = vld [vmem:[%s11 + $0x28] sm:$0xff]
  %v2792 = vld [vmem:[%s11 + $0x30] sm:$0xff]
  %v2793 = vld [vmem:[%s11 + $0x38] sm:$0xff]
  %v2794 = vld [vmem:[%s12] sm:$0x1]
  %v2796 = vlaneseq
  %v2797 = vshrl.u32 %v2796, 7
  %v2798 = vsub.s32 0, %v2797
  %v2799 = vrot.slane %v2794, %v2798
  %v2802 = vsel %vm2456, %v2785, 0
  %2804 = vmatprep.subr.mxu0 0.0
  %2805 = vmatpush1.msra.mxu0 0.0
  %2806 = vmatprep.subr.mxu0 0.0
  %2807 = vmatpush1.msra.mxu0 0.0
  %2808 = vmatprep.subr.mxu0 0.0
  %2809 = vmatpush1.msra.mxu0 0.0
  %2810 = vmatprep.subr.mxu0 0.0
  %2811 = vmatpush1.msra.mxu0 0.0
  %2812 = vmatprep.subr.mxu0 0.0
  %2813 = vmatpush1.msra.mxu0 0.0
  %2814 = vmatprep.subr.mxu0 0.0
  %2815 = vmatpush1.msra.mxu0 0.0
  %2816 = vmatprep.subr.mxu0 0.0
  %2817 = vmatpush1.msra.mxu0 0.0
  %2818 = vmatprep.subr.mxu0 0.0
  %2819 = vmatpush1.msra.mxu0 0.0
  %2820 = vmatprep.subr.mxu0 0.0
  %2821 = vmatpush1.msra.mxu0 %v2793
  %2822 = vmatprep.subr.mxu0 0.0
  %2823 = vmatpush1.msra.mxu0 %v2792
  %2824 = vmatprep.subr.mxu0 0.0
  %2825 = vmatpush1.msra.mxu0 %v2791
  %2826 = vmatprep.subr.mxu0 0.0
  %2827 = vmatpush1.msra.mxu0 %v2790
  %2828 = vmatprep.subr.mxu0 0.0
  %2829 = vmatpush1.msra.mxu0 %v2789
  %2830 = vmatprep.subr.mxu0 0.0
  %2831 = vmatpush1.msra.mxu0 %v2788
  %2832 = vmatprep.subr.mxu0 0.0
  %2833 = vmatpush1.msra.mxu0 %v2787
  %2834 = vmatprep.subr.mxu0 0.0
  %2835 = vmatpush1.msra.mxu0 %v2786
  %2836 = vmatprep.subr.mxu0 0.0
  %2837 = vmatpush2.msra.mxu0 0.0
  %2838 = vmatprep.subr.mxu0 0.0
  %2839 = vmatpush2.msra.mxu0 0.0
  %2840 = vmatprep.subr.mxu0 0.0
  %2841 = vmatpush2.msra.mxu0 0.0
  %2842 = vmatprep.subr.mxu0 0.0
  %2843 = vmatpush2.msra.mxu0 0.0
  %2844 = vmatprep.subr.mxu0 0.0
  %2845 = vmatpush2.msra.mxu0 0.0
  %2846 = vmatprep.subr.mxu0 0.0
  %2847 = vmatpush2.msra.mxu0 0.0
  %2848 = vmatprep.subr.mxu0 0.0
  %2849 = vmatpush2.msra.mxu0 0.0
  %2850 = vmatprep.subr.mxu0 0.0
  %2851 = vmatpush2.msra.mxu0 0.0
  %2852 = vmatprep.subr.mxu0 0.0
  %2853 = vmatpush2.msra.mxu0 0.0
  %2854 = vmatprep.subr.mxu0 0.0
  %2855 = vmatpush2.msra.mxu0 0.0
  %2856 = vmatprep.subr.mxu0 0.0
  %2857 = vmatpush2.msra.mxu0 0.0
  %2858 = vmatprep.subr.mxu0 0.0
  %2859 = vmatpush2.msra.mxu0 0.0
  %2860 = vmatprep.subr.mxu0 0.0
  %2861 = vmatpush2.msra.mxu0 0.0
  %2862 = vmatprep.subr.mxu0 0.0
  %2863 = vmatpush2.msra.mxu0 0.0
  %2864 = vmatprep.subr.mxu0 0.0
  %2865 = vmatpush2.msra.mxu0 0.0
  %2866 = vmatprep.subr.mxu0 0.0
  %2867 = vmatpush2.msra.mxu0 0.0
  %2868 = vmatprep.mubr.f32.mxu0 0.0
  %2869 = vmatmul.mubr.f32.gmra.mxu0 %v2802
  %v2870 = vpop.f32.mrf.mxu0
  %v2871 = vadd.f32 %v2799, %v2870
  %v2872 = vpop.f32.mrf.mxu0
  %2873 = vdwg.mxu0
  %v2874 = vld [vmem:[%s13] sm:$0xff]
  %v2875 = vld [vmem:[%s13 + $0x8] sm:$0xff]
  %v2876 = vld [vmem:[%s13 + $0x10] sm:$0xff]
  %v2877 = vld [vmem:[%s13 + $0x18] sm:$0xff]
  %v2878 = vld [vmem:[#allocation2] sm:$0x1]
  %v2880 = vlaneseq
  %v2881 = vshrl.u32 %v2880, 7
  %v2882 = vsub.s32 0, %v2881
  %v2883 = vrot.slane %v2878, %v2882
  %vm2885 = vcmask 261120
  %v2887 = vsel %vm2885, %v2871, 0
  %2889 = vmatprep.subr.mxu0 0.0
  %2890 = vmatpush1.msra.mxu0 0.0
  %2891 = vmatprep.subr.mxu0 0.0
  %2892 = vmatpush1.msra.mxu0 0.0
  %2893 = vmatprep.subr.mxu0 0.0
  %2894 = vmatpush1.msra.mxu0 0.0
  %2895 = vmatprep.subr.mxu0 0.0
  %2896 = vmatpush1.msra.mxu0 0.0
  %2897 = vmatprep.subr.mxu0 0.0
  %2898 = vmatpush1.msra.mxu0 0.0
  %2899 = vmatprep.subr.mxu0 0.0
  %2900 = vmatpush1.msra.mxu0 0.0
  %2901 = vmatprep.subr.mxu0 0.0
  %2902 = vmatpush1.msra.mxu0 0.0
  %2903 = vmatprep.subr.mxu0 0.0
  %2904 = vmatpush1.msra.mxu0 0.0
  %2905 = vmatprep.subr.mxu0 0.0
  %2906 = vmatpush1.msra.mxu0 0.0
  %2907 = vmatprep.subr.mxu0 0.0
  %2908 = vmatpush1.msra.mxu0 0.0
  %2909 = vmatprep.subr.mxu0 0.0
  %2910 = vmatpush1.msra.mxu0 0.0
  %2911 = vmatprep.subr.mxu0 0.0
  %2912 = vmatpush1.msra.mxu0 0.0
  %2913 = vmatprep.subr.mxu0 0.0
  %2914 = vmatpush1.msra.mxu0 %v2877
  %2915 = vmatprep.subr.mxu0 0.0
  %2916 = vmatpush1.msra.mxu0 %v2876
  %2917 = vmatprep.subr.mxu0 0.0
  %2918 = vmatpush1.msra.mxu0 %v2875
  %2919 = vmatprep.subr.mxu0 0.0
  %2920 = vmatpush1.msra.mxu0 %v2874
  %2921 = vmatprep.subr.mxu0 0.0
  %2922 = vmatpush2.msra.mxu0 0.0
  %2923 = vmatprep.subr.mxu0 0.0
  %2924 = vmatpush2.msra.mxu0 0.0
  %2925 = vmatprep.subr.mxu0 0.0
  %2926 = vmatpush2.msra.mxu0 0.0
  %2927 = vmatprep.subr.mxu0 0.0
  %2928 = vmatpush2.msra.mxu0 0.0
  %2929 = vmatprep.subr.mxu0 0.0
  %2930 = vmatpush2.msra.mxu0 0.0
  %2931 = vmatprep.subr.mxu0 0.0
  %2932 = vmatpush2.msra.mxu0 0.0
  %2933 = vmatprep.subr.mxu0 0.0
  %2934 = vmatpush2.msra.mxu0 0.0
  %2935 = vmatprep.subr.mxu0 0.0
  %2936 = vmatpush2.msra.mxu0 0.0
  %2937 = vmatprep.subr.mxu0 0.0
  %2938 = vmatpush2.msra.mxu0 0.0
  %2939 = vmatprep.subr.mxu0 0.0
  %2940 = vmatpush2.msra.mxu0 0.0
  %2941 = vmatprep.subr.mxu0 0.0
  %2942 = vmatpush2.msra.mxu0 0.0
  %2943 = vmatprep.subr.mxu0 0.0
  %2944 = vmatpush2.msra.mxu0 0.0
  %2945 = vmatprep.subr.mxu0 0.0
  %2946 = vmatpush2.msra.mxu0 0.0
  %2947 = vmatprep.subr.mxu0 0.0
  %2948 = vmatpush2.msra.mxu0 0.0
  %2949 = vmatprep.subr.mxu0 0.0
  %2950 = vmatpush2.msra.mxu0 0.0
  %2951 = vmatprep.subr.mxu0 0.0
  %2952 = vmatpush2.msra.mxu0 0.0
  %2953 = vmatprep.mubr.f32.mxu0 0.0
  %2954 = vmatmul.mubr.f32.gmra.mxu0 %v2887
  %v2955 = vpop.f32.mrf.mxu0
  %v2956 = vadd.f32 %v2883, %v2955
  %v2957 = vpop.f32.mrf.mxu0
  %2958 = vdwg.mxu0
  %v2959 = vand.u32 2147483647, %v2956
  %v2960 = vsub.f32 0.0, %v2959
  %v2961 = vmul.f32 %v2960, 1.442695
  %v2962 = vpow.pop %v2961
  %v2963 = vadd.f32 %v2962, 1.0
  %v2964 = vrcp.pop %v2963
  %v2965 = vmul.f32 1.0, %v2964
  %vm2966 = vcmp.ge.f32.partialorder %v2956, 0.0
  %v2967 = vsub.f32 1.0, %v2965
  %v2968 = vsel %vm2966, %v2965, %v2967
  %vm2969 = vcmask 1024
  %2970 = vst.msk [vmem:[%s15] sm:$0x3] %vm2969, %v2968
  // Predicated region
  $region62: #{cnn_forward.1} parent=0 // pred_check
    _
  $region63: #{cnn_forward.1} parent=0 // pred_check_branch
    %2972 = sbr.rel (0) target = $region65
  $region64: #{cnn_forward.1} parent=0 // pred_region
    _
  $region65: #{cnn_forward.1} parent=0 // pred_fallthru
    _
  // Predicated region
  $region66: #{cnn_forward.1} parent=0 // pred_check
    _
  $region67: #{cnn_forward.1} parent=0 // pred_check_branch
    %2974 = sbr.rel (0) target = $region69
  $region68: #{cnn_forward.1} parent=0 // pred_region
    _
  $region69: #{cnn_forward.1} parent=0 // pred_fallthru
    _

</llo_original>
